<compile_context>
chip_gen: v5e
topology: v5e:2x2
jax: 0.10.0
libtpu: 0.0.40
codegen_flags: <defaults>
</compile_context>

<pallas_src>
import math

import jax
import jax.numpy as jnp
from jax.experimental import pallas as pl
from jax.experimental.pallas import tpu as pltpu

# ----------------------------- config ---------------------------------------
VOCAB = 128        # synthetic vocab (real model: 30522)
SEQ = 8            # max_seq_length
HIDDEN = 32        # real model: 768
HEADS = 4          # real model: 12
HEAD_DIM = HIDDEN // HEADS
FFN = 64           # real model: 3072
LAYERS = 2         # real model: 6
DENSE_OUT = 256    # matches models.Dense(out_features=256)
LN_EPS = 1e-12
COS_EPS = 1e-6
SIM_LANES = 128    # lane-dense similarity output block


# ----------------------------- fused kernel ---------------------------------
def _layernorm(x, g, b):
    mu = jnp.mean(x, axis=-1, keepdims=True)
    var = jnp.mean(jnp.square(x - mu), axis=-1, keepdims=True)
    return (x - mu) * jax.lax.rsqrt(var + LN_EPS) * g + b


def _former_kernel(ids_ref, mask_ref,
                   wemb_ref, pemb_ref, eln_g_ref, eln_b_ref,
                   wqkv_ref, bqkv_ref, wo_ref, bo_ref,
                   saln_g_ref, saln_b_ref,
                   w1_ref, b1_ref, w2_ref, b2_ref,
                   oln_g_ref, oln_b_ref,
                   dense_w_ref, dense_b_ref,
                   sim_ref, emb_ref):
    S, H, Dh, NH = SEQ, HIDDEN, HEAD_DIM, HEADS
    B2 = 2                                     # two sentences per pair
    scale = 1.0 / math.sqrt(Dh)

    pair = pl.program_id(0)
    nb = pl.num_programs(0)

    # ---- embedding gather: dynamic row slices of the VMEM table -------------
    # ids_ref is flat (2B*S,) int32 in SMEM: rows [0, B) = sentence1, [B, 2B) = sentence2.
    for s_i in range(B2):
        sent_row = pair + s_i * nb
        for t in range(S):
            tok_id = ids_ref[sent_row * S + t]
            emb_ref[pl.ds(s_i * S + t, 1), :] = wemb_ref[pl.ds(tok_id, 1), :]

    tok = emb_ref[...]                                            # (2S, H) f32
    h = (tok.reshape(B2, S, H) + pemb_ref[...]).reshape(B2 * S, H)
    h = _layernorm(h, eln_g_ref[...], eln_b_ref[...])

    # ---- additive padding bias, hoisted & pre-broadcast once -----------------
    maskf = mask_ref[0]                                           # (2, S) f32
    bias = jnp.broadcast_to(((1.0 - maskf) * -1e9)[:, None, None, :],
                            (B2, NH, S, S)).reshape(B2 * NH, S, S)

    # ---- transformer layers (post-norm, unrolled) ----------------------------
    for l in range(LAYERS):
        # packed QKV projection: one (2S, H) x (H, 3H) matmul, bf16 operands
        qkv = jnp.dot(h.astype(jnp.bfloat16), wqkv_ref[l],
                      preferred_element_type=jnp.float32) + bqkv_ref[l]

        # fold (batch, head) into one batch axis: (B2*NH, S, Dh)
        def split_heads(x):
            x4 = x.reshape(B2, S, NH, Dh)
            return jnp.swapaxes(x4, 1, 2).reshape(B2 * NH, S, Dh)

        q = split_heads(qkv[:, :H]).astype(jnp.bfloat16)
        k = split_heads(qkv[:, H:2 * H]).astype(jnp.bfloat16)
        v = split_heads(qkv[:, 2 * H:]).astype(jnp.bfloat16)

        s = jnp.einsum('bqd,bkd->bqk', q, k,
                       preferred_element_type=jnp.float32) * scale + bias
        s = s - jnp.max(s, axis=-1, keepdims=True)
        p = jnp.exp(s)
        p = p * pl.reciprocal(jnp.sum(p, axis=-1, keepdims=True), approx=True)

        ctx = jnp.einsum('bqk,bkd->bqd', p.astype(jnp.bfloat16), v,
                         preferred_element_type=jnp.float32)      # (B2*NH, S, Dh)
        ctx = jnp.swapaxes(ctx.reshape(B2, NH, S, Dh), 1, 2).reshape(B2 * S, H)

        attn_out = jnp.dot(ctx.astype(jnp.bfloat16), wo_ref[l],
                           preferred_element_type=jnp.float32) + bo_ref[l]
        h1 = _layernorm(attn_out + h, saln_g_ref[l], saln_b_ref[l])

        ffn = jnp.dot(h1.astype(jnp.bfloat16), w1_ref[l],
                      preferred_element_type=jnp.float32) + b1_ref[l]
        # TODO(synk): HF DistilBERT uses exact erf-GELU; tanh approximation used
        # because erf is not guaranteed to lower in Mosaic.
        ffn = jax.nn.gelu(ffn, approximate=True)
        ffn = jnp.dot(ffn.astype(jnp.bfloat16), w2_ref[l],
                      preferred_element_type=jnp.float32) + b2_ref[l]
        h = _layernorm(ffn + h1, oln_g_ref[l], oln_b_ref[l])

    # ---- masked mean pooling (sentence-transformers semantics) --------------
    h3 = h.reshape(B2, S, H)
    summed = jnp.sum(h3 * maskf[:, :, None], axis=1)              # (2, H)
    count = jnp.maximum(jnp.sum(maskf, axis=1, keepdims=True), 1e-9)
    pooled = summed / count

    # ---- Dense(256) + Tanh ---------------------------------------------------
    sent = jnp.tanh(jnp.dot(pooled.astype(jnp.bfloat16), dense_w_ref[...],
                            preferred_element_type=jnp.float32) + dense_b_ref[...])

    # ---- cosine similarity: dot / max(||a||*||b||, eps) ----------------------
    a, b = sent[0:1, :], sent[1:2, :]
    dot_ab = jnp.sum(a * b, axis=-1, keepdims=True)               # (1, 1)
    na = jnp.sqrt(jnp.sum(a * a, axis=-1, keepdims=True))
    nbn = jnp.sqrt(jnp.sum(b * b, axis=-1, keepdims=True))
    sim = dot_ab / jnp.maximum(na * nbn, COS_EPS)
    # lane-dense store (unmasked vst): broadcast the scalar across 128 lanes
    sim_ref[...] = jnp.broadcast_to(sim.reshape(1, 1, 1),
                                    (1, 1, SIM_LANES)).astype(sim_ref.dtype)


# ----------------------------- params & wrapper ------------------------------
PARAM_ORDER = ("word_emb", "pos_emb", "emb_ln_g", "emb_ln_b",
               "wqkv", "bqkv", "wo", "bo", "sa_ln_g", "sa_ln_b",
               "w1", "b1", "w2", "b2", "out_ln_g", "out_ln_b",
               "dense_w", "dense_b")


def init_params(key):
    keys = iter(jax.random.split(key, 8 + 4 * LAYERS))

    def w(shape, dtype=jnp.float32, scale=0.02):
        return (scale * jax.random.normal(next(keys), shape)).astype(dtype)

    def z(shape):
        return jnp.zeros(shape, jnp.float32)

    def o(shape):
        return jnp.ones(shape, jnp.float32)

    bf = jnp.bfloat16
    return {
        "word_emb": w((VOCAB, HIDDEN)),                    # f32 (gather only)
        "pos_emb": w((SEQ, HIDDEN)),
        "emb_ln_g": o((1, HIDDEN)), "emb_ln_b": z((1, HIDDEN)),
        "wqkv": jnp.stack([w((HIDDEN, 3 * HIDDEN), bf) for _ in range(LAYERS)]),
        "bqkv": z((LAYERS, 1, 3 * HIDDEN)),
        "wo": jnp.stack([w((HIDDEN, HIDDEN), bf) for _ in range(LAYERS)]),
        "bo": z((LAYERS, 1, HIDDEN)),
        "sa_ln_g": o((LAYERS, 1, HIDDEN)), "sa_ln_b": z((LAYERS, 1, HIDDEN)),
        "w1": jnp.stack([w((HIDDEN, FFN), bf) for _ in range(LAYERS)]),
        "b1": z((LAYERS, 1, FFN)),
        "w2": jnp.stack([w((FFN, HIDDEN), bf) for _ in range(LAYERS)]),
        "b2": z((LAYERS, 1, HIDDEN)),
        "out_ln_g": o((LAYERS, 1, HIDDEN)), "out_ln_b": z((LAYERS, 1, HIDDEN)),
        "dense_w": w((HIDDEN, DENSE_OUT), bf),
        "dense_b": z((1, DENSE_OUT)),
    }


def _resident_spec(shape):
    """Full-array block whose index is constant over the grid (stays in VMEM)."""
    n = len(shape)
    return pl.BlockSpec(tuple(shape), lambda i, n=n: (0,) * n)


@jax.jit
def shroom_forward(params, ids1, mask1, ids2, mask2):
    B, S = ids1.shape
    # ids flat in SMEM: rows [0,B) = sentence1, [B,2B) = sentence2
    ids_flat = jnp.concatenate([ids1, ids2], axis=0).reshape(-1).astype(jnp.int32)
    # mask per pair: (B, 2, S) — [:,0]=sentence1, [:,1]=sentence2
    mask = jnp.stack([mask1, mask2], axis=1).astype(jnp.float32)

    grid_spec = pltpu.PrefetchScalarGridSpec(
        num_scalar_prefetch=0,
        grid=(B,),
        in_specs=[
            pl.BlockSpec(memory_space=pltpu.MemorySpace.SMEM),       # token ids
            pl.BlockSpec((1, 2, S), lambda i: (i, 0, 0)),            # pair mask
            *[_resident_spec(params[k].shape) for k in PARAM_ORDER],  # weights
        ],
        out_specs=pl.BlockSpec((1, 1, SIM_LANES), lambda i: (i, 0, 0)),
        scratch_shapes=[pltpu.VMEM((2 * SEQ, HIDDEN), jnp.float32)],
    )

    sim = pl.pallas_call(
        _former_kernel,
        out_shape=jax.ShapeDtypeStruct((B, 1, SIM_LANES), jnp.float32),
        grid_spec=grid_spec,
        compiler_params=pltpu.CompilerParams(
            dimension_semantics=("parallel",)),
    )(ids_flat, mask, *[params[k] for k in PARAM_ORDER])
    return sim[:, 0, 0]                                              # (B,)


# ----------------------------- main ------------------------------------------
if __name__ == "__main__":
    key = jax.random.PRNGKey(0)
    k_params, k_ids1, k_ids2 = jax.random.split(key, 3)

    params = init_params(k_params)

    B = 2
    ids1 = jax.random.randint(k_ids1, (B, SEQ), 1, VOCAB, dtype=jnp.int32)
    ids2 = jax.random.randint(k_ids2, (B, SEQ), 1, VOCAB, dtype=jnp.int32)
    # attention masks with some padding (lengths 6/8 and 8/5)
    pos = jnp.arange(SEQ)[None, :]
    mask1 = (pos < jnp.array([[6], [8]])).astype(jnp.int32)
    mask2 = (pos < jnp.array([[8], [5]])).astype(jnp.int32)

    sim = shroom_forward(params, ids1, mask1, ids2, mask2)
    sim = jax.block_until_ready(sim)
    assert sim.shape == (B,) and sim.dtype == jnp.float32
    assert bool(jnp.all(jnp.isfinite(sim)))
    print("KERNEL_OK")
</pallas_src>

<mosaic_0001>
module attributes {stable_mosaic.version = 11 : i64} {
  func.func @_former_kernel(%arg0: i32, %arg1: memref<32xi32, #tpu.memory_space<smem>>, %arg2: memref<1x2x8xf32, #tpu.memory_space<vmem>>, %arg3: memref<128x32xf32, #tpu.memory_space<vmem>>, %arg4: memref<8x32xf32, #tpu.memory_space<vmem>>, %arg5: memref<1x32xf32, #tpu.memory_space<vmem>>, %arg6: memref<1x32xf32, #tpu.memory_space<vmem>>, %arg7: memref<2x32x96xbf16, #tpu.memory_space<vmem>>, %arg8: memref<2x1x96xf32, #tpu.memory_space<vmem>>, %arg9: memref<2x32x32xbf16, #tpu.memory_space<vmem>>, %arg10: memref<2x1x32xf32, #tpu.memory_space<vmem>>, %arg11: memref<2x1x32xf32, #tpu.memory_space<vmem>>, %arg12: memref<2x1x32xf32, #tpu.memory_space<vmem>>, %arg13: memref<2x32x64xbf16, #tpu.memory_space<vmem>>, %arg14: memref<2x1x64xf32, #tpu.memory_space<vmem>>, %arg15: memref<2x64x32xbf16, #tpu.memory_space<vmem>>, %arg16: memref<2x1x32xf32, #tpu.memory_space<vmem>>, %arg17: memref<2x1x32xf32, #tpu.memory_space<vmem>>, %arg18: memref<2x1x32xf32, #tpu.memory_space<vmem>>, %arg19: memref<32x256xbf16, #tpu.memory_space<vmem>>, %arg20: memref<1x256xf32, #tpu.memory_space<vmem>>, %arg21: memref<1x1x128xf32, #tpu.memory_space<vmem>>, %arg22: memref<16x32xf32, #tpu.memory_space<vmem>>) attributes {dimension_semantics = [#tpu.dimension_semantics<parallel>], iteration_bounds = array<i64: 2>, scalar_prefetch = 0 : i64, scratch_operands = 1 : i64, tpu.core_type = #tpu.core_type<tc>, window_params = [{transform_indices = @transform_0, window_bounds = array<i64: 32>}, {transform_indices = @transform_1, window_bounds = array<i64: 1, 2, 8>}, {pipeline_mode = #tpu.pipeline_mode<synchronous>, transform_indices = @transform_2, window_bounds = array<i64: 128, 32>}, {pipeline_mode = #tpu.pipeline_mode<synchronous>, transform_indices = @transform_3, window_bounds = array<i64: 8, 32>}, {pipeline_mode = #tpu.pipeline_mode<synchronous>, transform_indices = @transform_4, window_bounds = array<i64: 1, 32>}, {pipeline_mode = #tpu.pipeline_mode<synchronous>, transform_indices = @transform_5, window_bounds = array<i64: 1, 32>}, {pipeline_mode = #tpu.pipeline_mode<synchronous>, transform_indices = @transform_6, window_bounds = array<i64: 2, 32, 96>}, {pipeline_mode = #tpu.pipeline_mode<synchronous>, transform_indices = @transform_7, window_bounds = array<i64: 2, 1, 96>}, {pipeline_mode = #tpu.pipeline_mode<synchronous>, transform_indices = @transform_8, window_bounds = array<i64: 2, 32, 32>}, {pipeline_mode = #tpu.pipeline_mode<synchronous>, transform_indices = @transform_9, window_bounds = array<i64: 2, 1, 32>}, {pipeline_mode = #tpu.pipeline_mode<synchronous>, transform_indices = @transform_10, window_bounds = array<i64: 2, 1, 32>}, {pipeline_mode = #tpu.pipeline_mode<synchronous>, transform_indices = @transform_11, window_bounds = array<i64: 2, 1, 32>}, {pipeline_mode = #tpu.pipeline_mode<synchronous>, transform_indices = @transform_12, window_bounds = array<i64: 2, 32, 64>}, {pipeline_mode = #tpu.pipeline_mode<synchronous>, transform_indices = @transform_13, window_bounds = array<i64: 2, 1, 64>}, {pipeline_mode = #tpu.pipeline_mode<synchronous>, transform_indices = @transform_14, window_bounds = array<i64: 2, 64, 32>}, {pipeline_mode = #tpu.pipeline_mode<synchronous>, transform_indices = @transform_15, window_bounds = array<i64: 2, 1, 32>}, {pipeline_mode = #tpu.pipeline_mode<synchronous>, transform_indices = @transform_16, window_bounds = array<i64: 2, 1, 32>}, {pipeline_mode = #tpu.pipeline_mode<synchronous>, transform_indices = @transform_17, window_bounds = array<i64: 2, 1, 32>}, {pipeline_mode = #tpu.pipeline_mode<synchronous>, transform_indices = @transform_18, window_bounds = array<i64: 32, 256>}, {pipeline_mode = #tpu.pipeline_mode<synchronous>, transform_indices = @transform_19, window_bounds = array<i64: 1, 256>}, {transform_indices = @transform_20, window_bounds = array<i64: 1, 1, 128>}]} {
    %c0_i32 = arith.constant 0 : i32
    %0 = arith.addi %arg0, %c0_i32 : i32
    %c8_i32 = arith.constant 8 : i32
    %1 = arith.muli %0, %c8_i32 : i32
    %c0_i32_0 = arith.constant 0 : i32
    %2 = arith.addi %1, %c0_i32_0 : i32
    %3 = arith.index_cast %2 : i32 to index
    %4 = memref.load %arg1[%3] : memref<32xi32, #tpu.memory_space<smem>>
    %5 = arith.index_cast %4 : i32 to index
    %c0 = arith.constant 0 : index
    %6 = vector.load %arg3[%5, %c0] : memref<128x32xf32, #tpu.memory_space<vmem>>, vector<1x32xf32>
    %c0_1 = arith.constant 0 : index
    %c0_2 = arith.constant 0 : index
    %7 = vector.load %arg22[%c0_1, %c0_2] : memref<16x32xf32, #tpu.memory_space<vmem>>, vector<1x32xf32>
    tpu.vector_store %arg22[%c0_1, %c0_2], %6 {strides = array<i32>} : memref<16x32xf32, #tpu.memory_space<vmem>>, vector<1x32xf32>,
    %c8_i32_3 = arith.constant 8 : i32
    %8 = arith.muli %0, %c8_i32_3 : i32
    %c1_i32 = arith.constant 1 : i32
    %9 = arith.addi %8, %c1_i32 : i32
    %10 = arith.index_cast %9 : i32 to index
    %11 = memref.load %arg1[%10] : memref<32xi32, #tpu.memory_space<smem>>
    %12 = arith.index_cast %11 : i32 to index
    %c0_4 = arith.constant 0 : index
    %13 = vector.load %arg3[%12, %c0_4] : memref<128x32xf32, #tpu.memory_space<vmem>>, vector<1x32xf32>
    %c1 = arith.constant 1 : index
    %c0_5 = arith.constant 0 : index
    %14 = vector.load %arg22[%c1, %c0_5] : memref<16x32xf32, #tpu.memory_space<vmem>>, vector<1x32xf32>
    tpu.vector_store %arg22[%c1, %c0_5], %13 {strides = array<i32>} : memref<16x32xf32, #tpu.memory_space<vmem>>, vector<1x32xf32>,
    %c8_i32_6 = arith.constant 8 : i32
    %15 = arith.muli %0, %c8_i32_6 : i32
    %c2_i32 = arith.constant 2 : i32
    %16 = arith.addi %15, %c2_i32 : i32
    %17 = arith.index_cast %16 : i32 to index
    %18 = memref.load %arg1[%17] : memref<32xi32, #tpu.memory_space<smem>>
    %19 = arith.index_cast %18 : i32 to index
    %c0_7 = arith.constant 0 : index
    %20 = vector.load %arg3[%19, %c0_7] : memref<128x32xf32, #tpu.memory_space<vmem>>, vector<1x32xf32>
    %c2 = arith.constant 2 : index
    %c0_8 = arith.constant 0 : index
    %21 = vector.load %arg22[%c2, %c0_8] : memref<16x32xf32, #tpu.memory_space<vmem>>, vector<1x32xf32>
    tpu.vector_store %arg22[%c2, %c0_8], %20 {strides = array<i32>} : memref<16x32xf32, #tpu.memory_space<vmem>>, vector<1x32xf32>,
    %c8_i32_9 = arith.constant 8 : i32
    %22 = arith.muli %0, %c8_i32_9 : i32
    %c3_i32 = arith.constant 3 : i32
    %23 = arith.addi %22, %c3_i32 : i32
    %24 = arith.index_cast %23 : i32 to index
    %25 = memref.load %arg1[%24] : memref<32xi32, #tpu.memory_space<smem>>
    %26 = arith.index_cast %25 : i32 to index
    %c0_10 = arith.constant 0 : index
    %27 = vector.load %arg3[%26, %c0_10] : memref<128x32xf32, #tpu.memory_space<vmem>>, vector<1x32xf32>
    %c3 = arith.constant 3 : index
    %c0_11 = arith.constant 0 : index
    %28 = vector.load %arg22[%c3, %c0_11] : memref<16x32xf32, #tpu.memory_space<vmem>>, vector<1x32xf32>
    tpu.vector_store %arg22[%c3, %c0_11], %27 {strides = array<i32>} : memref<16x32xf32, #tpu.memory_space<vmem>>, vector<1x32xf32>,
    %c8_i32_12 = arith.constant 8 : i32
    %29 = arith.muli %0, %c8_i32_12 : i32
    %c4_i32 = arith.constant 4 : i32
    %30 = arith.addi %29, %c4_i32 : i32
    %31 = arith.index_cast %30 : i32 to index
    %32 = memref.load %arg1[%31] : memref<32xi32, #tpu.memory_space<smem>>
    %33 = arith.index_cast %32 : i32 to index
    %c0_13 = arith.constant 0 : index
    %34 = vector.load %arg3[%33, %c0_13] : memref<128x32xf32, #tpu.memory_space<vmem>>, vector<1x32xf32>
    %c4 = arith.constant 4 : index
    %c0_14 = arith.constant 0 : index
    %35 = vector.load %arg22[%c4, %c0_14] : memref<16x32xf32, #tpu.memory_space<vmem>>, vector<1x32xf32>
    tpu.vector_store %arg22[%c4, %c0_14], %34 {strides = array<i32>} : memref<16x32xf32, #tpu.memory_space<vmem>>, vector<1x32xf32>,
    %c8_i32_15 = arith.constant 8 : i32
    %36 = arith.muli %0, %c8_i32_15 : i32
    %c5_i32 = arith.constant 5 : i32
    %37 = arith.addi %36, %c5_i32 : i32
    %38 = arith.index_cast %37 : i32 to index
    %39 = memref.load %arg1[%38] : memref<32xi32, #tpu.memory_space<smem>>
    %40 = arith.index_cast %39 : i32 to index
    %c0_16 = arith.constant 0 : index
    %41 = vector.load %arg3[%40, %c0_16] : memref<128x32xf32, #tpu.memory_space<vmem>>, vector<1x32xf32>
    %c5 = arith.constant 5 : index
    %c0_17 = arith.constant 0 : index
    %42 = vector.load %arg22[%c5, %c0_17] : memref<16x32xf32, #tpu.memory_space<vmem>>, vector<1x32xf32>
    tpu.vector_store %arg22[%c5, %c0_17], %41 {strides = array<i32>} : memref<16x32xf32, #tpu.memory_space<vmem>>, vector<1x32xf32>,
    %c8_i32_18 = arith.constant 8 : i32
    %43 = arith.muli %0, %c8_i32_18 : i32
    %c6_i32 = arith.constant 6 : i32
    %44 = arith.addi %43, %c6_i32 : i32
    %45 = arith.index_cast %44 : i32 to index
    %46 = memref.load %arg1[%45] : memref<32xi32, #tpu.memory_space<smem>>
    %47 = arith.index_cast %46 : i32 to index
    %c0_19 = arith.constant 0 : index
    %48 = vector.load %arg3[%47, %c0_19] : memref<128x32xf32, #tpu.memory_space<vmem>>, vector<1x32xf32>
    %c6 = arith.constant 6 : index
    %c0_20 = arith.constant 0 : index
    %49 = vector.load %arg22[%c6, %c0_20] : memref<16x32xf32, #tpu.memory_space<vmem>>, vector<1x32xf32>
    tpu.vector_store %arg22[%c6, %c0_20], %48 {strides = array<i32>} : memref<16x32xf32, #tpu.memory_space<vmem>>, vector<1x32xf32>,
    %c8_i32_21 = arith.constant 8 : i32
    %50 = arith.muli %0, %c8_i32_21 : i32
    %c7_i32 = arith.constant 7 : i32
    %51 = arith.addi %50, %c7_i32 : i32
    %52 = arith.index_cast %51 : i32 to index
    %53 = memref.load %arg1[%52] : memref<32xi32, #tpu.memory_space<smem>>
    %54 = arith.index_cast %53 : i32 to index
    %c0_22 = arith.constant 0 : index
    %55 = vector.load %arg3[%54, %c0_22] : memref<128x32xf32, #tpu.memory_space<vmem>>, vector<1x32xf32>
    %c7 = arith.constant 7 : index
    %c0_23 = arith.constant 0 : index
    %56 = vector.load %arg22[%c7, %c0_23] : memref<16x32xf32, #tpu.memory_space<vmem>>, vector<1x32xf32>
    tpu.vector_store %arg22[%c7, %c0_23], %55 {strides = array<i32>} : memref<16x32xf32, #tpu.memory_space<vmem>>, vector<1x32xf32>,
    %c2_i32_24 = arith.constant 2 : i32
    %57 = arith.addi %arg0, %c2_i32_24 : i32
    %c8_i32_25 = arith.constant 8 : i32
    %58 = arith.muli %57, %c8_i32_25 : i32
    %c0_i32_26 = arith.constant 0 : i32
    %59 = arith.addi %58, %c0_i32_26 : i32
    %60 = arith.index_cast %59 : i32 to index
    %61 = memref.load %arg1[%60] : memref<32xi32, #tpu.memory_space<smem>>
    %62 = arith.index_cast %61 : i32 to index
    %c0_27 = arith.constant 0 : index
    %63 = vector.load %arg3[%62, %c0_27] : memref<128x32xf32, #tpu.memory_space<vmem>>, vector<1x32xf32>
    %c8 = arith.constant 8 : index
    %c0_28 = arith.constant 0 : index
    %64 = vector.load %arg22[%c8, %c0_28] : memref<16x32xf32, #tpu.memory_space<vmem>>, vector<1x32xf32>
    tpu.vector_store %arg22[%c8, %c0_28], %63 {strides = array<i32>} : memref<16x32xf32, #tpu.memory_space<vmem>>, vector<1x32xf32>,
    %c8_i32_29 = arith.constant 8 : i32
    %65 = arith.muli %57, %c8_i32_29 : i32
    %c1_i32_30 = arith.constant 1 : i32
    %66 = arith.addi %65, %c1_i32_30 : i32
    %67 = arith.index_cast %66 : i32 to index
    %68 = memref.load %arg1[%67] : memref<32xi32, #tpu.memory_space<smem>>
    %69 = arith.index_cast %68 : i32 to index
    %c0_31 = arith.constant 0 : index
    %70 = vector.load %arg3[%69, %c0_31] : memref<128x32xf32, #tpu.memory_space<vmem>>, vector<1x32xf32>
    %c9 = arith.constant 9 : index
    %c0_32 = arith.constant 0 : index
    %71 = vector.load %arg22[%c9, %c0_32] : memref<16x32xf32, #tpu.memory_space<vmem>>, vector<1x32xf32>
    tpu.vector_store %arg22[%c9, %c0_32], %70 {strides = array<i32>} : memref<16x32xf32, #tpu.memory_space<vmem>>, vector<1x32xf32>,
    %c8_i32_33 = arith.constant 8 : i32
    %72 = arith.muli %57, %c8_i32_33 : i32
    %c2_i32_34 = arith.constant 2 : i32
    %73 = arith.addi %72, %c2_i32_34 : i32
    %74 = arith.index_cast %73 : i32 to index
    %75 = memref.load %arg1[%74] : memref<32xi32, #tpu.memory_space<smem>>
    %76 = arith.index_cast %75 : i32 to index
    %c0_35 = arith.constant 0 : index
    %77 = vector.load %arg3[%76, %c0_35] : memref<128x32xf32, #tpu.memory_space<vmem>>, vector<1x32xf32>
    %c10 = arith.constant 10 : index
    %c0_36 = arith.constant 0 : index
    %78 = vector.load %arg22[%c10, %c0_36] : memref<16x32xf32, #tpu.memory_space<vmem>>, vector<1x32xf32>
    tpu.vector_store %arg22[%c10, %c0_36], %77 {strides = array<i32>} : memref<16x32xf32, #tpu.memory_space<vmem>>, vector<1x32xf32>,
    %c8_i32_37 = arith.constant 8 : i32
    %79 = arith.muli %57, %c8_i32_37 : i32
    %c3_i32_38 = arith.constant 3 : i32
    %80 = arith.addi %79, %c3_i32_38 : i32
    %81 = arith.index_cast %80 : i32 to index
    %82 = memref.load %arg1[%81] : memref<32xi32, #tpu.memory_space<smem>>
    %83 = arith.index_cast %82 : i32 to index
    %c0_39 = arith.constant 0 : index
    %84 = vector.load %arg3[%83, %c0_39] : memref<128x32xf32, #tpu.memory_space<vmem>>, vector<1x32xf32>
    %c11 = arith.constant 11 : index
    %c0_40 = arith.constant 0 : index
    %85 = vector.load %arg22[%c11, %c0_40] : memref<16x32xf32, #tpu.memory_space<vmem>>, vector<1x32xf32>
    tpu.vector_store %arg22[%c11, %c0_40], %84 {strides = array<i32>} : memref<16x32xf32, #tpu.memory_space<vmem>>, vector<1x32xf32>,
    %c8_i32_41 = arith.constant 8 : i32
    %86 = arith.muli %57, %c8_i32_41 : i32
    %c4_i32_42 = arith.constant 4 : i32
    %87 = arith.addi %86, %c4_i32_42 : i32
    %88 = arith.index_cast %87 : i32 to index
    %89 = memref.load %arg1[%88] : memref<32xi32, #tpu.memory_space<smem>>
    %90 = arith.index_cast %89 : i32 to index
    %c0_43 = arith.constant 0 : index
    %91 = vector.load %arg3[%90, %c0_43] : memref<128x32xf32, #tpu.memory_space<vmem>>, vector<1x32xf32>
    %c12 = arith.constant 12 : index
    %c0_44 = arith.constant 0 : index
    %92 = vector.load %arg22[%c12, %c0_44] : memref<16x32xf32, #tpu.memory_space<vmem>>, vector<1x32xf32>
    tpu.vector_store %arg22[%c12, %c0_44], %91 {strides = array<i32>} : memref<16x32xf32, #tpu.memory_space<vmem>>, vector<1x32xf32>,
    %c8_i32_45 = arith.constant 8 : i32
    %93 = arith.muli %57, %c8_i32_45 : i32
    %c5_i32_46 = arith.constant 5 : i32
    %94 = arith.addi %93, %c5_i32_46 : i32
    %95 = arith.index_cast %94 : i32 to index
    %96 = memref.load %arg1[%95] : memref<32xi32, #tpu.memory_space<smem>>
    %97 = arith.index_cast %96 : i32 to index
    %c0_47 = arith.constant 0 : index
    %98 = vector.load %arg3[%97, %c0_47] : memref<128x32xf32, #tpu.memory_space<vmem>>, vector<1x32xf32>
    %c13 = arith.constant 13 : index
    %c0_48 = arith.constant 0 : index
    %99 = vector.load %arg22[%c13, %c0_48] : memref<16x32xf32, #tpu.memory_space<vmem>>, vector<1x32xf32>
    tpu.vector_store %arg22[%c13, %c0_48], %98 {strides = array<i32>} : memref<16x32xf32, #tpu.memory_space<vmem>>, vector<1x32xf32>,
    %c8_i32_49 = arith.constant 8 : i32
    %100 = arith.muli %57, %c8_i32_49 : i32
    %c6_i32_50 = arith.constant 6 : i32
    %101 = arith.addi %100, %c6_i32_50 : i32
    %102 = arith.index_cast %101 : i32 to index
    %103 = memref.load %arg1[%102] : memref<32xi32, #tpu.memory_space<smem>>
    %104 = arith.index_cast %103 : i32 to index
    %c0_51 = arith.constant 0 : index
    %105 = vector.load %arg3[%104, %c0_51] : memref<128x32xf32, #tpu.memory_space<vmem>>, vector<1x32xf32>
    %c14 = arith.constant 14 : index
    %c0_52 = arith.constant 0 : index
    %106 = vector.load %arg22[%c14, %c0_52] : memref<16x32xf32, #tpu.memory_space<vmem>>, vector<1x32xf32>
    tpu.vector_store %arg22[%c14, %c0_52], %105 {strides = array<i32>} : memref<16x32xf32, #tpu.memory_space<vmem>>, vector<1x32xf32>,
    %c8_i32_53 = arith.constant 8 : i32
    %107 = arith.muli %57, %c8_i32_53 : i32
    %c7_i32_54 = arith.constant 7 : i32
    %108 = arith.addi %107, %c7_i32_54 : i32
    %109 = arith.index_cast %108 : i32 to index
    %110 = memref.load %arg1[%109] : memref<32xi32, #tpu.memory_space<smem>>
    %111 = arith.index_cast %110 : i32 to index
    %c0_55 = arith.constant 0 : index
    %112 = vector.load %arg3[%111, %c0_55] : memref<128x32xf32, #tpu.memory_space<vmem>>, vector<1x32xf32>
    %c15 = arith.constant 15 : index
    %c0_56 = arith.constant 0 : index
    %113 = vector.load %arg22[%c15, %c0_56] : memref<16x32xf32, #tpu.memory_space<vmem>>, vector<1x32xf32>
    tpu.vector_store %arg22[%c15, %c0_56], %112 {strides = array<i32>} : memref<16x32xf32, #tpu.memory_space<vmem>>, vector<1x32xf32>,
    %c0_57 = arith.constant 0 : index
    %c0_58 = arith.constant 0 : index
    %114 = vector.load %arg22[%c0_57, %c0_58] : memref<16x32xf32, #tpu.memory_space<vmem>>, vector<16x32xf32>
    %115 = vector.shape_cast %114 : vector<16x32xf32> to vector<2x8x32xf32>
    %c0_59 = arith.constant 0 : index
    %c0_60 = arith.constant 0 : index
    %116 = vector.load %arg4[%c0_59, %c0_60] : memref<8x32xf32, #tpu.memory_space<vmem>>, vector<8x32xf32>
    %117 = vector.shape_cast %116 : vector<8x32xf32> to vector<1x8x32xf32>
    %118 = vector.broadcast %117 : vector<1x8x32xf32> to vector<2x8x32xf32>
    %119 = arith.addf %115, %118 : vector<2x8x32xf32>
    %120 = vector.shape_cast %119 : vector<2x8x32xf32> to vector<16x32xf32>
    %c0_61 = arith.constant 0 : index
    %c0_62 = arith.constant 0 : index
    %121 = vector.load %arg5[%c0_61, %c0_62] : memref<1x32xf32, #tpu.memory_space<vmem>>, vector<1x32xf32>
    %c0_63 = arith.constant 0 : index
    %c0_64 = arith.constant 0 : index
    %122 = vector.load %arg6[%c0_63, %c0_64] : memref<1x32xf32, #tpu.memory_space<vmem>>, vector<1x32xf32>
    %cst = arith.constant dense<0.000000e+00> : vector<16xf32>
    %123 = vector.multi_reduction <add>, %120, %cst [1] : vector<16x32xf32> to vector<16xf32>
    %124 = vector.shape_cast %123 : vector<16xf32> to vector<16x1xf32>
    %cst_65 = arith.constant 3.200000e+01 : f32
    %125 = vector.broadcast %cst_65 : f32 to vector<16x1xf32>
    %126 = arith.divf %124, %125 : vector<16x1xf32>
    %127 = vector.broadcast %126 : vector<16x1xf32> to vector<16x32xf32>
    %128 = arith.subf %120, %127 : vector<16x32xf32>
    %129 = arith.mulf %128, %128 : vector<16x32xf32>
    %cst_66 = arith.constant dense<0.000000e+00> : vector<16xf32>
    %130 = vector.multi_reduction <add>, %129, %cst_66 [1] : vector<16x32xf32> to vector<16xf32>
    %131 = vector.shape_cast %130 : vector<16xf32> to vector<16x1xf32>
    %cst_67 = arith.constant 3.200000e+01 : f32
    %132 = vector.broadcast %cst_67 : f32 to vector<16x1xf32>
    %133 = arith.divf %131, %132 : vector<16x1xf32>
    %134 = vector.broadcast %126 : vector<16x1xf32> to vector<16x32xf32>
    %135 = arith.subf %120, %134 : vector<16x32xf32>
    %cst_68 = arith.constant 9.99999996E-13 : f32
    %136 = vector.broadcast %cst_68 : f32 to vector<16x1xf32>
    %137 = arith.addf %133, %136 : vector<16x1xf32>
    %138 = math.rsqrt %137 : vector<16x1xf32>
    %139 = vector.broadcast %138 : vector<16x1xf32> to vector<16x32xf32>
    %140 = arith.mulf %135, %139 : vector<16x32xf32>
    %141 = vector.broadcast %121 : vector<1x32xf32> to vector<16x32xf32>
    %142 = arith.mulf %140, %141 : vector<16x32xf32>
    %143 = vector.broadcast %122 : vector<1x32xf32> to vector<16x32xf32>
    %144 = arith.addf %142, %143 : vector<16x32xf32>
    %c0_69 = arith.constant 0 : index
    %c0_70 = arith.constant 0 : index
    %c0_71 = arith.constant 0 : index
    %145 = vector.load %arg2[%c0_69, %c0_70, %c0_71] : memref<1x2x8xf32, #tpu.memory_space<vmem>>, vector<1x2x8xf32>
    %146 = vector.shape_cast %145 : vector<1x2x8xf32> to vector<2x8xf32>
    %cst_72 = arith.constant 1.000000e+00 : f32
    %147 = vector.broadcast %cst_72 : f32 to vector<2x8xf32>
    %148 = arith.subf %147, %146 : vector<2x8xf32>
    %cst_73 = arith.constant -1.000000e+09 : f32
    %149 = vector.broadcast %cst_73 : f32 to vector<2x8xf32>
    %150 = arith.mulf %148, %149 : vector<2x8xf32>
    %151 = vector.shape_cast %150 : vector<2x8xf32> to vector<2x1x1x8xf32>
    %152 = vector.shape_cast %151 : vector<2x1x1x8xf32> to vector<2x1x1x8xf32>
    %153 = vector.broadcast %152 : vector<2x1x1x8xf32> to vector<2x4x8x8xf32>
    %154 = vector.shape_cast %153 : vector<2x4x8x8xf32> to vector<8x8x8xf32>
    %155 = arith.truncf %144 : vector<16x32xf32> to vector<16x32xbf16>
    %c0_74 = arith.constant 0 : index
    %c0_75 = arith.constant 0 : index
    %c0_76 = arith.constant 0 : index
    %156 = vector.load %arg7[%c0_74, %c0_75, %c0_76] : memref<2x32x96xbf16, #tpu.memory_space<vmem>>, vector<1x32x96xbf16>
    %157 = vector.shape_cast %156 : vector<1x32x96xbf16> to vector<32x96xbf16>
    %cst_77 = arith.constant dense<0.000000e+00> : vector<16x96xf32>
    %158 = tpu.matmul %155, %157, %cst_77 {dimension_numbers = #tpu.dot_dimension_numbers<[1], [0], [0], [1], [0, 0, 1, 1], [], []>} : vector<16x32xbf16>, vector<32x96xbf16>, vector<16x96xf32> -> vector<16x96xf32>
    %c0_78 = arith.constant 0 : index
    %c0_79 = arith.constant 0 : index
    %c0_80 = arith.constant 0 : index
    %159 = vector.load %arg8[%c0_78, %c0_79, %c0_80] : memref<2x1x96xf32, #tpu.memory_space<vmem>>, vector<1x1x96xf32>
    %160 = vector.shape_cast %159 : vector<1x1x96xf32> to vector<1x96xf32>
    %161 = vector.broadcast %160 : vector<1x96xf32> to vector<16x96xf32>
    %162 = arith.addf %158, %161 : vector<16x96xf32>
    %163 = vector.extract_strided_slice %162 {offsets = [0, 0], sizes = [16, 32], strides = [1, 1]} : vector<16x96xf32> to vector<16x32xf32>
    %164 = vector.shape_cast %163 : vector<16x32xf32> to vector<2x8x4x8xf32>
    %165 = tpu.transpose %164, [0, 2, 1, 3] : vector<2x8x4x8xf32> -> vector<2x4x8x8xf32>
    %166 = vector.shape_cast %165 : vector<2x4x8x8xf32> to vector<8x8x8xf32>
    %167 = arith.truncf %166 : vector<8x8x8xf32> to vector<8x8x8xbf16>
    %168 = vector.extract_strided_slice %162 {offsets = [0, 32], sizes = [16, 32], strides = [1, 1]} : vector<16x96xf32> to vector<16x32xf32>
    %169 = vector.shape_cast %168 : vector<16x32xf32> to vector<2x8x4x8xf32>
    %170 = tpu.transpose %169, [0, 2, 1, 3] : vector<2x8x4x8xf32> -> vector<2x4x8x8xf32>
    %171 = vector.shape_cast %170 : vector<2x4x8x8xf32> to vector<8x8x8xf32>
    %172 = arith.truncf %171 : vector<8x8x8xf32> to vector<8x8x8xbf16>
    %173 = vector.extract_strided_slice %162 {offsets = [0, 64], sizes = [16, 32], strides = [1, 1]} : vector<16x96xf32> to vector<16x32xf32>
    %174 = vector.shape_cast %173 : vector<16x32xf32> to vector<2x8x4x8xf32>
    %175 = tpu.transpose %174, [0, 2, 1, 3] : vector<2x8x4x8xf32> -> vector<2x4x8x8xf32>
    %176 = vector.shape_cast %175 : vector<2x4x8x8xf32> to vector<8x8x8xf32>
    %177 = arith.truncf %176 : vector<8x8x8xf32> to vector<8x8x8xbf16>
    "tpu.trace_start"() <{level = 10 : i32, message = "bqd,bkd->bqk"}> : () -> ()
    %cst_81 = arith.constant dense<0.000000e+00> : vector<8x8x8xf32>
    %178 = tpu.matmul %167, %172, %cst_81 {dimension_numbers = #tpu.dot_dimension_numbers<[2], [2], [1], [1], [0, 0, 0, 1, 1, 1], [0], [0]>} : vector<8x8x8xbf16>, vector<8x8x8xbf16>, vector<8x8x8xf32> -> vector<8x8x8xf32>
    "tpu.trace_stop"() : () -> ()
    %cst_82 = arith.constant 0.353553385 : f32
    %179 = vector.broadcast %cst_82 : f32 to vector<8x8x8xf32>
    %180 = arith.mulf %178, %179 : vector<8x8x8xf32>
    %181 = arith.addf %180, %154 : vector<8x8x8xf32>
    %cst_83 = arith.constant dense<0xFF800000> : vector<8x8xf32>
    %182 = vector.multi_reduction <maximumf>, %181, %cst_83 [2] : vector<8x8x8xf32> to vector<8x8xf32>
    %183 = vector.shape_cast %182 : vector<8x8xf32> to vector<8x8x1xf32>
    %184 = vector.broadcast %183 : vector<8x8x1xf32> to vector<8x8x8xf32>
    %185 = arith.subf %181, %184 : vector<8x8x8xf32>
    %186 = math.exp %185 : vector<8x8x8xf32>
    %cst_84 = arith.constant dense<0.000000e+00> : vector<8x8xf32>
    %187 = vector.multi_reduction <add>, %186, %cst_84 [2] : vector<8x8x8xf32> to vector<8x8xf32>
    %188 = vector.shape_cast %187 : vector<8x8xf32> to vector<8x8x1xf32>
    %189 = tpu.reciprocal %188 {approx = true} : vector<8x8x1xf32> -> vector<8x8x1xf32>
    %190 = vector.broadcast %189 : vector<8x8x1xf32> to vector<8x8x8xf32>
    %191 = arith.mulf %186, %190 : vector<8x8x8xf32>
    %192 = arith.truncf %191 : vector<8x8x8xf32> to vector<8x8x8xbf16>
    "tpu.trace_start"() <{level = 10 : i32, message = "bqk,bkd->bqd"}> : () -> ()
    %cst_85 = arith.constant dense<0.000000e+00> : vector<8x8x8xf32>
    %193 = tpu.matmul %192, %177, %cst_85 {dimension_numbers = #tpu.dot_dimension_numbers<[2], [1], [1], [2], [0, 0, 0, 1, 1, 2], [0], [0]>} : vector<8x8x8xbf16>, vector<8x8x8xbf16>, vector<8x8x8xf32> -> vector<8x8x8xf32>
    "tpu.trace_stop"() : () -> ()
    %194 = vector.shape_cast %193 : vector<8x8x8xf32> to vector<2x4x8x8xf32>
    %195 = tpu.transpose %194, [0, 2, 1, 3] : vector<2x4x8x8xf32> -> vector<2x8x4x8xf32>
    %196 = vector.shape_cast %195 : vector<2x8x4x8xf32> to vector<16x32xf32>
    %197 = arith.truncf %196 : vector<16x32xf32> to vector<16x32xbf16>
    %c0_86 = arith.constant 0 : index
    %c0_87 = arith.constant 0 : index
    %c0_88 = arith.constant 0 : index
    %198 = vector.load %arg9[%c0_86, %c0_87, %c0_88] : memref<2x32x32xbf16, #tpu.memory_space<vmem>>, vector<1x32x32xbf16>
    %199 = vector.shape_cast %198 : vector<1x32x32xbf16> to vector<32x32xbf16>
    %cst_89 = arith.constant dense<0.000000e+00> : vector<16x32xf32>
    %200 = tpu.matmul %197, %199, %cst_89 {dimension_numbers = #tpu.dot_dimension_numbers<[1], [0], [0], [1], [0, 0, 1, 1], [], []>} : vector<16x32xbf16>, vector<32x32xbf16>, vector<16x32xf32> -> vector<16x32xf32>
    %c0_90 = arith.constant 0 : index
    %c0_91 = arith.constant 0 : index
    %c0_92 = arith.constant 0 : index
    %201 = vector.load %arg10[%c0_90, %c0_91, %c0_92] : memref<2x1x32xf32, #tpu.memory_space<vmem>>, vector<1x1x32xf32>
    %202 = vector.shape_cast %201 : vector<1x1x32xf32> to vector<1x32xf32>
    %203 = vector.broadcast %202 : vector<1x32xf32> to vector<16x32xf32>
    %204 = arith.addf %200, %203 : vector<16x32xf32>
    %205 = arith.addf %204, %144 : vector<16x32xf32>
    %c0_93 = arith.constant 0 : index
    %c0_94 = arith.constant 0 : index
    %c0_95 = arith.constant 0 : index
    %206 = vector.load %arg11[%c0_93, %c0_94, %c0_95] : memref<2x1x32xf32, #tpu.memory_space<vmem>>, vector<1x1x32xf32>
    %207 = vector.shape_cast %206 : vector<1x1x32xf32> to vector<1x32xf32>
    %c0_96 = arith.constant 0 : index
    %c0_97 = arith.constant 0 : index
    %c0_98 = arith.constant 0 : index
    %208 = vector.load %arg12[%c0_96, %c0_97, %c0_98] : memref<2x1x32xf32, #tpu.memory_space<vmem>>, vector<1x1x32xf32>
    %209 = vector.shape_cast %208 : vector<1x1x32xf32> to vector<1x32xf32>
    %cst_99 = arith.constant dense<0.000000e+00> : vector<16xf32>
    %210 = vector.multi_reduction <add>, %205, %cst_99 [1] : vector<16x32xf32> to vector<16xf32>
    %211 = vector.shape_cast %210 : vector<16xf32> to vector<16x1xf32>
    %cst_100 = arith.constant 3.200000e+01 : f32
    %212 = vector.broadcast %cst_100 : f32 to vector<16x1xf32>
    %213 = arith.divf %211, %212 : vector<16x1xf32>
    %214 = vector.broadcast %213 : vector<16x1xf32> to vector<16x32xf32>
    %215 = arith.subf %205, %214 : vector<16x32xf32>
    %216 = arith.mulf %215, %215 : vector<16x32xf32>
    %cst_101 = arith.constant dense<0.000000e+00> : vector<16xf32>
    %217 = vector.multi_reduction <add>, %216, %cst_101 [1] : vector<16x32xf32> to vector<16xf32>
    %218 = vector.shape_cast %217 : vector<16xf32> to vector<16x1xf32>
    %cst_102 = arith.constant 3.200000e+01 : f32
    %219 = vector.broadcast %cst_102 : f32 to vector<16x1xf32>
    %220 = arith.divf %218, %219 : vector<16x1xf32>
    %221 = vector.broadcast %213 : vector<16x1xf32> to vector<16x32xf32>
    %222 = arith.subf %205, %221 : vector<16x32xf32>
    %cst_103 = arith.constant 9.99999996E-13 : f32
    %223 = vector.broadcast %cst_103 : f32 to vector<16x1xf32>
    %224 = arith.addf %220, %223 : vector<16x1xf32>
    %225 = math.rsqrt %224 : vector<16x1xf32>
    %226 = vector.broadcast %225 : vector<16x1xf32> to vector<16x32xf32>
    %227 = arith.mulf %222, %226 : vector<16x32xf32>
    %228 = vector.broadcast %207 : vector<1x32xf32> to vector<16x32xf32>
    %229 = arith.mulf %227, %228 : vector<16x32xf32>
    %230 = vector.broadcast %209 : vector<1x32xf32> to vector<16x32xf32>
    %231 = arith.addf %229, %230 : vector<16x32xf32>
    %232 = arith.truncf %231 : vector<16x32xf32> to vector<16x32xbf16>
    %c0_104 = arith.constant 0 : index
    %c0_105 = arith.constant 0 : index
    %c0_106 = arith.constant 0 : index
    %233 = vector.load %arg13[%c0_104, %c0_105, %c0_106] : memref<2x32x64xbf16, #tpu.memory_space<vmem>>, vector<1x32x64xbf16>
    %234 = vector.shape_cast %233 : vector<1x32x64xbf16> to vector<32x64xbf16>
    %cst_107 = arith.constant dense<0.000000e+00> : vector<16x64xf32>
    %235 = tpu.matmul %232, %234, %cst_107 {dimension_numbers = #tpu.dot_dimension_numbers<[1], [0], [0], [1], [0, 0, 1, 1], [], []>} : vector<16x32xbf16>, vector<32x64xbf16>, vector<16x64xf32> -> vector<16x64xf32>
    %c0_108 = arith.constant 0 : index
    %c0_109 = arith.constant 0 : index
    %c0_110 = arith.constant 0 : index
    %236 = vector.load %arg14[%c0_108, %c0_109, %c0_110] : memref<2x1x64xf32, #tpu.memory_space<vmem>>, vector<1x1x64xf32>
    %237 = vector.shape_cast %236 : vector<1x1x64xf32> to vector<1x64xf32>
    %238 = vector.broadcast %237 : vector<1x64xf32> to vector<16x64xf32>
    %239 = arith.addf %235, %238 : vector<16x64xf32>
    %240 = arith.mulf %239, %239 : vector<16x64xf32>
    %241 = arith.mulf %239, %240 : vector<16x64xf32>
    %cst_111 = arith.constant 4.471500e-02 : f32
    %242 = vector.broadcast %cst_111 : f32 to vector<16x64xf32>
    %243 = arith.mulf %242, %241 : vector<16x64xf32>
    %244 = arith.addf %239, %243 : vector<16x64xf32>
    %cst_112 = arith.constant 0.797884583 : f32
    %245 = vector.broadcast %cst_112 : f32 to vector<16x64xf32>
    %246 = arith.mulf %245, %244 : vector<16x64xf32>
    %247 = math.tanh %246 : vector<16x64xf32>
    %cst_113 = arith.constant 1.000000e+00 : f32
    %248 = vector.broadcast %cst_113 : f32 to vector<16x64xf32>
    %249 = arith.addf %248, %247 : vector<16x64xf32>
    %cst_114 = arith.constant 5.000000e-01 : f32
    %250 = vector.broadcast %cst_114 : f32 to vector<16x64xf32>
    %251 = arith.mulf %250, %249 : vector<16x64xf32>
    %252 = arith.mulf %239, %251 : vector<16x64xf32>
    %253 = arith.truncf %252 : vector<16x64xf32> to vector<16x64xbf16>
    %c0_115 = arith.constant 0 : index
    %c0_116 = arith.constant 0 : index
    %c0_117 = arith.constant 0 : index
    %254 = vector.load %arg15[%c0_115, %c0_116, %c0_117] : memref<2x64x32xbf16, #tpu.memory_space<vmem>>, vector<1x64x32xbf16>
    %255 = vector.shape_cast %254 : vector<1x64x32xbf16> to vector<64x32xbf16>
    %cst_118 = arith.constant dense<0.000000e+00> : vector<16x32xf32>
    %256 = tpu.matmul %253, %255, %cst_118 {dimension_numbers = #tpu.dot_dimension_numbers<[1], [0], [0], [1], [0, 0, 1, 1], [], []>} : vector<16x64xbf16>, vector<64x32xbf16>, vector<16x32xf32> -> vector<16x32xf32>
    %c0_119 = arith.constant 0 : index
    %c0_120 = arith.constant 0 : index
    %c0_121 = arith.constant 0 : index
    %257 = vector.load %arg16[%c0_119, %c0_120, %c0_121] : memref<2x1x32xf32, #tpu.memory_space<vmem>>, vector<1x1x32xf32>
    %258 = vector.shape_cast %257 : vector<1x1x32xf32> to vector<1x32xf32>
    %259 = vector.broadcast %258 : vector<1x32xf32> to vector<16x32xf32>
    %260 = arith.addf %256, %259 : vector<16x32xf32>
    %261 = arith.addf %260, %231 : vector<16x32xf32>
    %c0_122 = arith.constant 0 : index
    %c0_123 = arith.constant 0 : index
    %c0_124 = arith.constant 0 : index
    %262 = vector.load %arg17[%c0_122, %c0_123, %c0_124] : memref<2x1x32xf32, #tpu.memory_space<vmem>>, vector<1x1x32xf32>
    %263 = vector.shape_cast %262 : vector<1x1x32xf32> to vector<1x32xf32>
    %c0_125 = arith.constant 0 : index
    %c0_126 = arith.constant 0 : index
    %c0_127 = arith.constant 0 : index
    %264 = vector.load %arg18[%c0_125, %c0_126, %c0_127] : memref<2x1x32xf32, #tpu.memory_space<vmem>>, vector<1x1x32xf32>
    %265 = vector.shape_cast %264 : vector<1x1x32xf32> to vector<1x32xf32>
    %cst_128 = arith.constant dense<0.000000e+00> : vector<16xf32>
    %266 = vector.multi_reduction <add>, %261, %cst_128 [1] : vector<16x32xf32> to vector<16xf32>
    %267 = vector.shape_cast %266 : vector<16xf32> to vector<16x1xf32>
    %cst_129 = arith.constant 3.200000e+01 : f32
    %268 = vector.broadcast %cst_129 : f32 to vector<16x1xf32>
    %269 = arith.divf %267, %268 : vector<16x1xf32>
    %270 = vector.broadcast %269 : vector<16x1xf32> to vector<16x32xf32>
    %271 = arith.subf %261, %270 : vector<16x32xf32>
    %272 = arith.mulf %271, %271 : vector<16x32xf32>
    %cst_130 = arith.constant dense<0.000000e+00> : vector<16xf32>
    %273 = vector.multi_reduction <add>, %272, %cst_130 [1] : vector<16x32xf32> to vector<16xf32>
    %274 = vector.shape_cast %273 : vector<16xf32> to vector<16x1xf32>
    %cst_131 = arith.constant 3.200000e+01 : f32
    %275 = vector.broadcast %cst_131 : f32 to vector<16x1xf32>
    %276 = arith.divf %274, %275 : vector<16x1xf32>
    %277 = vector.broadcast %269 : vector<16x1xf32> to vector<16x32xf32>
    %278 = arith.subf %261, %277 : vector<16x32xf32>
    %cst_132 = arith.constant 9.99999996E-13 : f32
    %279 = vector.broadcast %cst_132 : f32 to vector<16x1xf32>
    %280 = arith.addf %276, %279 : vector<16x1xf32>
    %281 = math.rsqrt %280 : vector<16x1xf32>
    %282 = vector.broadcast %281 : vector<16x1xf32> to vector<16x32xf32>
    %283 = arith.mulf %278, %282 : vector<16x32xf32>
    %284 = vector.broadcast %263 : vector<1x32xf32> to vector<16x32xf32>
    %285 = arith.mulf %283, %284 : vector<16x32xf32>
    %286 = vector.broadcast %265 : vector<1x32xf32> to vector<16x32xf32>
    %287 = arith.addf %285, %286 : vector<16x32xf32>
    %288 = arith.truncf %287 : vector<16x32xf32> to vector<16x32xbf16>
    %c1_133 = arith.constant 1 : index
    %c0_134 = arith.constant 0 : index
    %c0_135 = arith.constant 0 : index
    %289 = vector.load %arg7[%c1_133, %c0_134, %c0_135] : memref<2x32x96xbf16, #tpu.memory_space<vmem>>, vector<1x32x96xbf16>
    %290 = vector.shape_cast %289 : vector<1x32x96xbf16> to vector<32x96xbf16>
    %cst_136 = arith.constant dense<0.000000e+00> : vector<16x96xf32>
    %291 = tpu.matmul %288, %290, %cst_136 {dimension_numbers = #tpu.dot_dimension_numbers<[1], [0], [0], [1], [0, 0, 1, 1], [], []>} : vector<16x32xbf16>, vector<32x96xbf16>, vector<16x96xf32> -> vector<16x96xf32>
    %c1_137 = arith.constant 1 : index
    %c0_138 = arith.constant 0 : index
    %c0_139 = arith.constant 0 : index
    %292 = vector.load %arg8[%c1_137, %c0_138, %c0_139] : memref<2x1x96xf32, #tpu.memory_space<vmem>>, vector<1x1x96xf32>
    %293 = vector.shape_cast %292 : vector<1x1x96xf32> to vector<1x96xf32>
    %294 = vector.broadcast %293 : vector<1x96xf32> to vector<16x96xf32>
    %295 = arith.addf %291, %294 : vector<16x96xf32>
    %296 = vector.extract_strided_slice %295 {offsets = [0, 0], sizes = [16, 32], strides = [1, 1]} : vector<16x96xf32> to vector<16x32xf32>
    %297 = vector.shape_cast %296 : vector<16x32xf32> to vector<2x8x4x8xf32>
    %298 = tpu.transpose %297, [0, 2, 1, 3] : vector<2x8x4x8xf32> -> vector<2x4x8x8xf32>
    %299 = vector.shape_cast %298 : vector<2x4x8x8xf32> to vector<8x8x8xf32>
    %300 = arith.truncf %299 : vector<8x8x8xf32> to vector<8x8x8xbf16>
    %301 = vector.extract_strided_slice %295 {offsets = [0, 32], sizes = [16, 32], strides = [1, 1]} : vector<16x96xf32> to vector<16x32xf32>
    %302 = vector.shape_cast %301 : vector<16x32xf32> to vector<2x8x4x8xf32>
    %303 = tpu.transpose %302, [0, 2, 1, 3] : vector<2x8x4x8xf32> -> vector<2x4x8x8xf32>
    %304 = vector.shape_cast %303 : vector<2x4x8x8xf32> to vector<8x8x8xf32>
    %305 = arith.truncf %304 : vector<8x8x8xf32> to vector<8x8x8xbf16>
    %306 = vector.extract_strided_slice %295 {offsets = [0, 64], sizes = [16, 32], strides = [1, 1]} : vector<16x96xf32> to vector<16x32xf32>
    %307 = vector.shape_cast %306 : vector<16x32xf32> to vector<2x8x4x8xf32>
    %308 = tpu.transpose %307, [0, 2, 1, 3] : vector<2x8x4x8xf32> -> vector<2x4x8x8xf32>
    %309 = vector.shape_cast %308 : vector<2x4x8x8xf32> to vector<8x8x8xf32>
    %310 = arith.truncf %309 : vector<8x8x8xf32> to vector<8x8x8xbf16>
    "tpu.trace_start"() <{level = 10 : i32, message = "bqd,bkd->bqk"}> : () -> ()
    %cst_140 = arith.constant dense<0.000000e+00> : vector<8x8x8xf32>
    %311 = tpu.matmul %300, %305, %cst_140 {dimension_numbers = #tpu.dot_dimension_numbers<[2], [2], [1], [1], [0, 0, 0, 1, 1, 1], [0], [0]>} : vector<8x8x8xbf16>, vector<8x8x8xbf16>, vector<8x8x8xf32> -> vector<8x8x8xf32>
    "tpu.trace_stop"() : () -> ()
    %cst_141 = arith.constant 0.353553385 : f32
    %312 = vector.broadcast %cst_141 : f32 to vector<8x8x8xf32>
    %313 = arith.mulf %311, %312 : vector<8x8x8xf32>
    %314 = arith.addf %313, %154 : vector<8x8x8xf32>
    %cst_142 = arith.constant dense<0xFF800000> : vector<8x8xf32>
    %315 = vector.multi_reduction <maximumf>, %314, %cst_142 [2] : vector<8x8x8xf32> to vector<8x8xf32>
    %316 = vector.shape_cast %315 : vector<8x8xf32> to vector<8x8x1xf32>
    %317 = vector.broadcast %316 : vector<8x8x1xf32> to vector<8x8x8xf32>
    %318 = arith.subf %314, %317 : vector<8x8x8xf32>
    %319 = math.exp %318 : vector<8x8x8xf32>
    %cst_143 = arith.constant dense<0.000000e+00> : vector<8x8xf32>
    %320 = vector.multi_reduction <add>, %319, %cst_143 [2] : vector<8x8x8xf32> to vector<8x8xf32>
    %321 = vector.shape_cast %320 : vector<8x8xf32> to vector<8x8x1xf32>
    %322 = tpu.reciprocal %321 {approx = true} : vector<8x8x1xf32> -> vector<8x8x1xf32>
    %323 = vector.broadcast %322 : vector<8x8x1xf32> to vector<8x8x8xf32>
    %324 = arith.mulf %319, %323 : vector<8x8x8xf32>
    %325 = arith.truncf %324 : vector<8x8x8xf32> to vector<8x8x8xbf16>
    "tpu.trace_start"() <{level = 10 : i32, message = "bqk,bkd->bqd"}> : () -> ()
    %cst_144 = arith.constant dense<0.000000e+00> : vector<8x8x8xf32>
    %326 = tpu.matmul %325, %310, %cst_144 {dimension_numbers = #tpu.dot_dimension_numbers<[2], [1], [1], [2], [0, 0, 0, 1, 1, 2], [0], [0]>} : vector<8x8x8xbf16>, vector<8x8x8xbf16>, vector<8x8x8xf32> -> vector<8x8x8xf32>
    "tpu.trace_stop"() : () -> ()
    %327 = vector.shape_cast %326 : vector<8x8x8xf32> to vector<2x4x8x8xf32>
    %328 = tpu.transpose %327, [0, 2, 1, 3] : vector<2x4x8x8xf32> -> vector<2x8x4x8xf32>
    %329 = vector.shape_cast %328 : vector<2x8x4x8xf32> to vector<16x32xf32>
    %330 = arith.truncf %329 : vector<16x32xf32> to vector<16x32xbf16>
    %c1_145 = arith.constant 1 : index
    %c0_146 = arith.constant 0 : index
    %c0_147 = arith.constant 0 : index
    %331 = vector.load %arg9[%c1_145, %c0_146, %c0_147] : memref<2x32x32xbf16, #tpu.memory_space<vmem>>, vector<1x32x32xbf16>
    %332 = vector.shape_cast %331 : vector<1x32x32xbf16> to vector<32x32xbf16>
    %cst_148 = arith.constant dense<0.000000e+00> : vector<16x32xf32>
    %333 = tpu.matmul %330, %332, %cst_148 {dimension_numbers = #tpu.dot_dimension_numbers<[1], [0], [0], [1], [0, 0, 1, 1], [], []>} : vector<16x32xbf16>, vector<32x32xbf16>, vector<16x32xf32> -> vector<16x32xf32>
    %c1_149 = arith.constant 1 : index
    %c0_150 = arith.constant 0 : index
    %c0_151 = arith.constant 0 : index
    %334 = vector.load %arg10[%c1_149, %c0_150, %c0_151] : memref<2x1x32xf32, #tpu.memory_space<vmem>>, vector<1x1x32xf32>
    %335 = vector.shape_cast %334 : vector<1x1x32xf32> to vector<1x32xf32>
    %336 = vector.broadcast %335 : vector<1x32xf32> to vector<16x32xf32>
    %337 = arith.addf %333, %336 : vector<16x32xf32>
    %338 = arith.addf %337, %287 : vector<16x32xf32>
    %c1_152 = arith.constant 1 : index
    %c0_153 = arith.constant 0 : index
    %c0_154 = arith.constant 0 : index
    %339 = vector.load %arg11[%c1_152, %c0_153, %c0_154] : memref<2x1x32xf32, #tpu.memory_space<vmem>>, vector<1x1x32xf32>
    %340 = vector.shape_cast %339 : vector<1x1x32xf32> to vector<1x32xf32>
    %c1_155 = arith.constant 1 : index
    %c0_156 = arith.constant 0 : index
    %c0_157 = arith.constant 0 : index
    %341 = vector.load %arg12[%c1_155, %c0_156, %c0_157] : memref<2x1x32xf32, #tpu.memory_space<vmem>>, vector<1x1x32xf32>
    %342 = vector.shape_cast %341 : vector<1x1x32xf32> to vector<1x32xf32>
    %cst_158 = arith.constant dense<0.000000e+00> : vector<16xf32>
    %343 = vector.multi_reduction <add>, %338, %cst_158 [1] : vector<16x32xf32> to vector<16xf32>
    %344 = vector.shape_cast %343 : vector<16xf32> to vector<16x1xf32>
    %cst_159 = arith.constant 3.200000e+01 : f32
    %345 = vector.broadcast %cst_159 : f32 to vector<16x1xf32>
    %346 = arith.divf %344, %345 : vector<16x1xf32>
    %347 = vector.broadcast %346 : vector<16x1xf32> to vector<16x32xf32>
    %348 = arith.subf %338, %347 : vector<16x32xf32>
    %349 = arith.mulf %348, %348 : vector<16x32xf32>
    %cst_160 = arith.constant dense<0.000000e+00> : vector<16xf32>
    %350 = vector.multi_reduction <add>, %349, %cst_160 [1] : vector<16x32xf32> to vector<16xf32>
    %351 = vector.shape_cast %350 : vector<16xf32> to vector<16x1xf32>
    %cst_161 = arith.constant 3.200000e+01 : f32
    %352 = vector.broadcast %cst_161 : f32 to vector<16x1xf32>
    %353 = arith.divf %351, %352 : vector<16x1xf32>
    %354 = vector.broadcast %346 : vector<16x1xf32> to vector<16x32xf32>
    %355 = arith.subf %338, %354 : vector<16x32xf32>
    %cst_162 = arith.constant 9.99999996E-13 : f32
    %356 = vector.broadcast %cst_162 : f32 to vector<16x1xf32>
    %357 = arith.addf %353, %356 : vector<16x1xf32>
    %358 = math.rsqrt %357 : vector<16x1xf32>
    %359 = vector.broadcast %358 : vector<16x1xf32> to vector<16x32xf32>
    %360 = arith.mulf %355, %359 : vector<16x32xf32>
    %361 = vector.broadcast %340 : vector<1x32xf32> to vector<16x32xf32>
    %362 = arith.mulf %360, %361 : vector<16x32xf32>
    %363 = vector.broadcast %342 : vector<1x32xf32> to vector<16x32xf32>
    %364 = arith.addf %362, %363 : vector<16x32xf32>
    %365 = arith.truncf %364 : vector<16x32xf32> to vector<16x32xbf16>
    %c1_163 = arith.constant 1 : index
    %c0_164 = arith.constant 0 : index
    %c0_165 = arith.constant 0 : index
    %366 = vector.load %arg13[%c1_163, %c0_164, %c0_165] : memref<2x32x64xbf16, #tpu.memory_space<vmem>>, vector<1x32x64xbf16>
    %367 = vector.shape_cast %366 : vector<1x32x64xbf16> to vector<32x64xbf16>
    %cst_166 = arith.constant dense<0.000000e+00> : vector<16x64xf32>
    %368 = tpu.matmul %365, %367, %cst_166 {dimension_numbers = #tpu.dot_dimension_numbers<[1], [0], [0], [1], [0, 0, 1, 1], [], []>} : vector<16x32xbf16>, vector<32x64xbf16>, vector<16x64xf32> -> vector<16x64xf32>
    %c1_167 = arith.constant 1 : index
    %c0_168 = arith.constant 0 : index
    %c0_169 = arith.constant 0 : index
    %369 = vector.load %arg14[%c1_167, %c0_168, %c0_169] : memref<2x1x64xf32, #tpu.memory_space<vmem>>, vector<1x1x64xf32>
    %370 = vector.shape_cast %369 : vector<1x1x64xf32> to vector<1x64xf32>
    %371 = vector.broadcast %370 : vector<1x64xf32> to vector<16x64xf32>
    %372 = arith.addf %368, %371 : vector<16x64xf32>
    %373 = arith.mulf %372, %372 : vector<16x64xf32>
    %374 = arith.mulf %372, %373 : vector<16x64xf32>
    %cst_170 = arith.constant 4.471500e-02 : f32
    %375 = vector.broadcast %cst_170 : f32 to vector<16x64xf32>
    %376 = arith.mulf %375, %374 : vector<16x64xf32>
    %377 = arith.addf %372, %376 : vector<16x64xf32>
    %cst_171 = arith.constant 0.797884583 : f32
    %378 = vector.broadcast %cst_171 : f32 to vector<16x64xf32>
    %379 = arith.mulf %378, %377 : vector<16x64xf32>
    %380 = math.tanh %379 : vector<16x64xf32>
    %cst_172 = arith.constant 1.000000e+00 : f32
    %381 = vector.broadcast %cst_172 : f32 to vector<16x64xf32>
    %382 = arith.addf %381, %380 : vector<16x64xf32>
    %cst_173 = arith.constant 5.000000e-01 : f32
    %383 = vector.broadcast %cst_173 : f32 to vector<16x64xf32>
    %384 = arith.mulf %383, %382 : vector<16x64xf32>
    %385 = arith.mulf %372, %384 : vector<16x64xf32>
    %386 = arith.truncf %385 : vector<16x64xf32> to vector<16x64xbf16>
    %c1_174 = arith.constant 1 : index
    %c0_175 = arith.constant 0 : index
    %c0_176 = arith.constant 0 : index
    %387 = vector.load %arg15[%c1_174, %c0_175, %c0_176] : memref<2x64x32xbf16, #tpu.memory_space<vmem>>, vector<1x64x32xbf16>
    %388 = vector.shape_cast %387 : vector<1x64x32xbf16> to vector<64x32xbf16>
    %cst_177 = arith.constant dense<0.000000e+00> : vector<16x32xf32>
    %389 = tpu.matmul %386, %388, %cst_177 {dimension_numbers = #tpu.dot_dimension_numbers<[1], [0], [0], [1], [0, 0, 1, 1], [], []>} : vector<16x64xbf16>, vector<64x32xbf16>, vector<16x32xf32> -> vector<16x32xf32>
    %c1_178 = arith.constant 1 : index
    %c0_179 = arith.constant 0 : index
    %c0_180 = arith.constant 0 : index
    %390 = vector.load %arg16[%c1_178, %c0_179, %c0_180] : memref<2x1x32xf32, #tpu.memory_space<vmem>>, vector<1x1x32xf32>
    %391 = vector.shape_cast %390 : vector<1x1x32xf32> to vector<1x32xf32>
    %392 = vector.broadcast %391 : vector<1x32xf32> to vector<16x32xf32>
    %393 = arith.addf %389, %392 : vector<16x32xf32>
    %394 = arith.addf %393, %364 : vector<16x32xf32>
    %c1_181 = arith.constant 1 : index
    %c0_182 = arith.constant 0 : index
    %c0_183 = arith.constant 0 : index
    %395 = vector.load %arg17[%c1_181, %c0_182, %c0_183] : memref<2x1x32xf32, #tpu.memory_space<vmem>>, vector<1x1x32xf32>
    %396 = vector.shape_cast %395 : vector<1x1x32xf32> to vector<1x32xf32>
    %c1_184 = arith.constant 1 : index
    %c0_185 = arith.constant 0 : index
    %c0_186 = arith.constant 0 : index
    %397 = vector.load %arg18[%c1_184, %c0_185, %c0_186] : memref<2x1x32xf32, #tpu.memory_space<vmem>>, vector<1x1x32xf32>
    %398 = vector.shape_cast %397 : vector<1x1x32xf32> to vector<1x32xf32>
    %cst_187 = arith.constant dense<0.000000e+00> : vector<16xf32>
    %399 = vector.multi_reduction <add>, %394, %cst_187 [1] : vector<16x32xf32> to vector<16xf32>
    %400 = vector.shape_cast %399 : vector<16xf32> to vector<16x1xf32>
    %cst_188 = arith.constant 3.200000e+01 : f32
    %401 = vector.broadcast %cst_188 : f32 to vector<16x1xf32>
    %402 = arith.divf %400, %401 : vector<16x1xf32>
    %403 = vector.broadcast %402 : vector<16x1xf32> to vector<16x32xf32>
    %404 = arith.subf %394, %403 : vector<16x32xf32>
    %405 = arith.mulf %404, %404 : vector<16x32xf32>
    %cst_189 = arith.constant dense<0.000000e+00> : vector<16xf32>
    %406 = vector.multi_reduction <add>, %405, %cst_189 [1] : vector<16x32xf32> to vector<16xf32>
    %407 = vector.shape_cast %406 : vector<16xf32> to vector<16x1xf32>
    %cst_190 = arith.constant 3.200000e+01 : f32
    %408 = vector.broadcast %cst_190 : f32 to vector<16x1xf32>
    %409 = arith.divf %407, %408 : vector<16x1xf32>
    %410 = vector.broadcast %402 : vector<16x1xf32> to vector<16x32xf32>
    %411 = arith.subf %394, %410 : vector<16x32xf32>
    %cst_191 = arith.constant 9.99999996E-13 : f32
    %412 = vector.broadcast %cst_191 : f32 to vector<16x1xf32>
    %413 = arith.addf %409, %412 : vector<16x1xf32>
    %414 = math.rsqrt %413 : vector<16x1xf32>
    %415 = vector.broadcast %414 : vector<16x1xf32> to vector<16x32xf32>
    %416 = arith.mulf %411, %415 : vector<16x32xf32>
    %417 = vector.broadcast %396 : vector<1x32xf32> to vector<16x32xf32>
    %418 = arith.mulf %416, %417 : vector<16x32xf32>
    %419 = vector.broadcast %398 : vector<1x32xf32> to vector<16x32xf32>
    %420 = arith.addf %418, %419 : vector<16x32xf32>
    %421 = vector.shape_cast %420 : vector<16x32xf32> to vector<2x8x32xf32>
    %422 = vector.shape_cast %146 : vector<2x8xf32> to vector<2x8x1xf32>
    %423 = vector.broadcast %422 : vector<2x8x1xf32> to vector<2x8x32xf32>
    %424 = arith.mulf %421, %423 : vector<2x8x32xf32>
    %cst_192 = arith.constant dense<0.000000e+00> : vector<2x32xf32>
    %425 = vector.multi_reduction <add>, %424, %cst_192 [1] : vector<2x8x32xf32> to vector<2x32xf32>
    %cst_193 = arith.constant dense<0.000000e+00> : vector<2xf32>
    %426 = vector.multi_reduction <add>, %146, %cst_193 [1] : vector<2x8xf32> to vector<2xf32>
    %427 = vector.shape_cast %426 : vector<2xf32> to vector<2x1xf32>
    %cst_194 = arith.constant 9.99999971E-10 : f32
    %428 = vector.broadcast %cst_194 : f32 to vector<2x1xf32>
    %429 = arith.maximumf %427, %428 : vector<2x1xf32>
    %430 = vector.broadcast %429 : vector<2x1xf32> to vector<2x32xf32>
    %431 = arith.divf %425, %430 : vector<2x32xf32>
    %432 = arith.truncf %431 : vector<2x32xf32> to vector<2x32xbf16>
    %c0_195 = arith.constant 0 : index
    %c0_196 = arith.constant 0 : index
    %433 = vector.load %arg19[%c0_195, %c0_196] : memref<32x256xbf16, #tpu.memory_space<vmem>>, vector<32x256xbf16>
    %cst_197 = arith.constant dense<0.000000e+00> : vector<2x256xf32>
    %434 = tpu.matmul %432, %433, %cst_197 {dimension_numbers = #tpu.dot_dimension_numbers<[1], [0], [0], [1], [0, 0, 1, 1], [], []>} : vector<2x32xbf16>, vector<32x256xbf16>, vector<2x256xf32> -> vector<2x256xf32>
    %c0_198 = arith.constant 0 : index
    %c0_199 = arith.constant 0 : index
    %435 = vector.load %arg20[%c0_198, %c0_199] : memref<1x256xf32, #tpu.memory_space<vmem>>, vector<1x256xf32>
    %436 = vector.broadcast %435 : vector<1x256xf32> to vector<2x256xf32>
    %437 = arith.addf %434, %436 : vector<2x256xf32>
    %438 = math.tanh %437 : vector<2x256xf32>
    %439 = vector.extract_strided_slice %438 {offsets = [0, 0], sizes = [1, 256], strides = [1, 1]} : vector<2x256xf32> to vector<1x256xf32>
    %440 = vector.extract_strided_slice %438 {offsets = [1, 0], sizes = [1, 256], strides = [1, 1]} : vector<2x256xf32> to vector<1x256xf32>
    %441 = arith.mulf %439, %440 : vector<1x256xf32>
    %cst_200 = arith.constant dense<0.000000e+00> : vector<1xf32>
    %442 = vector.multi_reduction <add>, %441, %cst_200 [1] : vector<1x256xf32> to vector<1xf32>
    %443 = vector.shape_cast %442 : vector<1xf32> to vector<1x1xf32>
    %444 = arith.mulf %439, %439 : vector<1x256xf32>
    %cst_201 = arith.constant dense<0.000000e+00> : vector<1xf32>
    %445 = vector.multi_reduction <add>, %444, %cst_201 [1] : vector<1x256xf32> to vector<1xf32>
    %446 = vector.shape_cast %445 : vector<1xf32> to vector<1x1xf32>
    %447 = math.sqrt %446 : vector<1x1xf32>
    %448 = arith.mulf %440, %440 : vector<1x256xf32>
    %cst_202 = arith.constant dense<0.000000e+00> : vector<1xf32>
    %449 = vector.multi_reduction <add>, %448, %cst_202 [1] : vector<1x256xf32> to vector<1xf32>
    %450 = vector.shape_cast %449 : vector<1xf32> to vector<1x1xf32>
    %451 = math.sqrt %450 : vector<1x1xf32>
    %452 = arith.mulf %447, %451 : vector<1x1xf32>
    %cst_203 = arith.constant 9.99999997E-7 : f32
    %453 = vector.broadcast %cst_203 : f32 to vector<1x1xf32>
    %454 = arith.maximumf %452, %453 : vector<1x1xf32>
    %455 = arith.divf %443, %454 : vector<1x1xf32>
    %456 = vector.shape_cast %455 : vector<1x1xf32> to vector<1x1x1xf32>
    %457 = vector.shape_cast %456 : vector<1x1x1xf32> to vector<1x1x1xf32>
    %458 = vector.broadcast %457 : vector<1x1x1xf32> to vector<1x1x128xf32>
    %c0_204 = arith.constant 0 : index
    %c0_205 = arith.constant 0 : index
    %c0_206 = arith.constant 0 : index
    %459 = vector.load %arg21[%c0_204, %c0_205, %c0_206] : memref<1x1x128xf32, #tpu.memory_space<vmem>>, vector<1x1x128xf32>
    tpu.vector_store %arg21[%c0_204, %c0_205, %c0_206], %458 {strides = array<i32>} : memref<1x1x128xf32, #tpu.memory_space<vmem>>, vector<1x1x128xf32>,
    return
  }
  func.func @transform_0(%arg0: i32) -> i32 {
    %c0_i32 = arith.constant 0 : i32
    %c0_i32_0 = arith.constant 0 : i32
    return %c0_i32 : i32
  }
  func.func @transform_1(%arg0: i32) -> (i32, i32, i32) {
    %c0_i32 = arith.constant 0 : i32
    %c0_i32_0 = arith.constant 0 : i32
    %c0_i32_1 = arith.constant 0 : i32
    return %arg0, %c0_i32, %c0_i32_0 : i32, i32, i32
  }
  func.func @transform_2(%arg0: i32) -> (i32, i32) {
    %c0_i32 = arith.constant 0 : i32
    %c0_i32_0 = arith.constant 0 : i32
    %c0_i32_1 = arith.constant 0 : i32
    return %c0_i32, %c0_i32_0 : i32, i32
  }
  func.func @transform_3(%arg0: i32) -> (i32, i32) {
    %c0_i32 = arith.constant 0 : i32
    %c0_i32_0 = arith.constant 0 : i32
    %c0_i32_1 = arith.constant 0 : i32
    return %c0_i32, %c0_i32_0 : i32, i32
  }
  func.func @transform_4(%arg0: i32) -> (i32, i32) {
    %c0_i32 = arith.constant 0 : i32
    %c0_i32_0 = arith.constant 0 : i32
    %c0_i32_1 = arith.constant 0 : i32
    return %c0_i32, %c0_i32_0 : i32, i32
  }
  func.func @transform_5(%arg0: i32) -> (i32, i32) {
    %c0_i32 = arith.constant 0 : i32
    %c0_i32_0 = arith.constant 0 : i32
    %c0_i32_1 = arith.constant 0 : i32
    return %c0_i32, %c0_i32_0 : i32, i32
  }
  func.func @transform_6(%arg0: i32) -> (i32, i32, i32) {
    %c0_i32 = arith.constant 0 : i32
    %c0_i32_0 = arith.constant 0 : i32
    %c0_i32_1 = arith.constant 0 : i32
    %c0_i32_2 = arith.constant 0 : i32
    return %c0_i32, %c0_i32_0, %c0_i32_1 : i32, i32, i32
  }
  func.func @transform_7(%arg0: i32) -> (i32, i32, i32) {
    %c0_i32 = arith.constant 0 : i32
    %c0_i32_0 = arith.constant 0 : i32
    %c0_i32_1 = arith.constant 0 : i32
    %c0_i32_2 = arith.constant 0 : i32
    return %c0_i32, %c0_i32_0, %c0_i32_1 : i32, i32, i32
  }
  func.func @transform_8(%arg0: i32) -> (i32, i32, i32) {
    %c0_i32 = arith.constant 0 : i32
    %c0_i32_0 = arith.constant 0 : i32
    %c0_i32_1 = arith.constant 0 : i32
    %c0_i32_2 = arith.constant 0 : i32
    return %c0_i32, %c0_i32_0, %c0_i32_1 : i32, i32, i32
  }
  func.func @transform_9(%arg0: i32) -> (i32, i32, i32) {
    %c0_i32 = arith.constant 0 : i32
    %c0_i32_0 = arith.constant 0 : i32
    %c0_i32_1 = arith.constant 0 : i32
    %c0_i32_2 = arith.constant 0 : i32
    return %c0_i32, %c0_i32_0, %c0_i32_1 : i32, i32, i32
  }
  func.func @transform_10(%arg0: i32) -> (i32, i32, i32) {
    %c0_i32 = arith.constant 0 : i32
    %c0_i32_0 = arith.constant 0 : i32
    %c0_i32_1 = arith.constant 0 : i32
    %c0_i32_2 = arith.constant 0 : i32
    return %c0_i32, %c0_i32_0, %c0_i32_1 : i32, i32, i32
  }
  func.func @transform_11(%arg0: i32) -> (i32, i32, i32) {
    %c0_i32 = arith.constant 0 : i32
    %c0_i32_0 = arith.constant 0 : i32
    %c0_i32_1 = arith.constant 0 : i32
    %c0_i32_2 = arith.constant 0 : i32
    return %c0_i32, %c0_i32_0, %c0_i32_1 : i32, i32, i32
  }
  func.func @transform_12(%arg0: i32) -> (i32, i32, i32) {
    %c0_i32 = arith.constant 0 : i32
    %c0_i32_0 = arith.constant 0 : i32
    %c0_i32_1 = arith.constant 0 : i32
    %c0_i32_2 = arith.constant 0 : i32
    return %c0_i32, %c0_i32_0, %c0_i32_1 : i32, i32, i32
  }
  func.func @transform_13(%arg0: i32) -> (i32, i32, i32) {
    %c0_i32 = arith.constant 0 : i32
    %c0_i32_0 = arith.constant 0 : i32
    %c0_i32_1 = arith.constant 0 : i32
    %c0_i32_2 = arith.constant 0 : i32
    return %c0_i32, %c0_i32_0, %c0_i32_1 : i32, i32, i32
  }
  func.func @transform_14(%arg0: i32) -> (i32, i32, i32) {
    %c0_i32 = arith.constant 0 : i32
    %c0_i32_0 = arith.constant 0 : i32
    %c0_i32_1 = arith.constant 0 : i32
    %c0_i32_2 = arith.constant 0 : i32
    return %c0_i32, %c0_i32_0, %c0_i32_1 : i32, i32, i32
  }
  func.func @transform_15(%arg0: i32) -> (i32, i32, i32) {
    %c0_i32 = arith.constant 0 : i32
    %c0_i32_0 = arith.constant 0 : i32
    %c0_i32_1 = arith.constant 0 : i32
    %c0_i32_2 = arith.constant 0 : i32
    return %c0_i32, %c0_i32_0, %c0_i32_1 : i32, i32, i32
  }
  func.func @transform_16(%arg0: i32) -> (i32, i32, i32) {
    %c0_i32 = arith.constant 0 : i32
    %c0_i32_0 = arith.constant 0 : i32
    %c0_i32_1 = arith.constant 0 : i32
    %c0_i32_2 = arith.constant 0 : i32
    return %c0_i32, %c0_i32_0, %c0_i32_1 : i32, i32, i32
  }
  func.func @transform_17(%arg0: i32) -> (i32, i32, i32) {
    %c0_i32 = arith.constant 0 : i32
    %c0_i32_0 = arith.constant 0 : i32
    %c0_i32_1 = arith.constant 0 : i32
    %c0_i32_2 = arith.constant 0 : i32
    return %c0_i32, %c0_i32_0, %c0_i32_1 : i32, i32, i32
  }
  func.func @transform_18(%arg0: i32) -> (i32, i32) {
    %c0_i32 = arith.constant 0 : i32
    %c0_i32_0 = arith.constant 0 : i32
    %c0_i32_1 = arith.constant 0 : i32
    return %c0_i32, %c0_i32_0 : i32, i32
  }
  func.func @transform_19(%arg0: i32) -> (i32, i32) {
    %c0_i32 = arith.constant 0 : i32
    %c0_i32_0 = arith.constant 0 : i32
    %c0_i32_1 = arith.constant 0 : i32
    return %c0_i32, %c0_i32_0 : i32, i32
  }
  func.func @transform_20(%arg0: i32) -> (i32, i32, i32) {
    %c0_i32 = arith.constant 0 : i32
    %c0_i32_0 = arith.constant 0 : i32
    %c0_i32_1 = arith.constant 0 : i32
    return %arg0, %c0_i32, %c0_i32_0 : i32, i32, i32
  }
}

</mosaic_0001>

<llo_original>
// kernel: shroom_forward.1
$region0: #{shroom_forward.1}
  #allocation0 [shape = 'u32[]', space=smem, size = 0x4, offset = 0x4, fixed_abs, tag = 'smem constant byte address 0x4 - core index']
  #allocation1 [shape = 'u32[72,128]{1,0:T(1,128)}', space=vmem, size = 0x9000, scoped, tag = 'internal scratch']
  #allocation2 [shape = 'f32[16,32]{1,0:T(8,128)}', space=vmem, size = 0x2000, scoped, tag = 'scratch operand']
  %s0 = inlined_call_operand.vmem [shape: s32[32], index: 0, kind: input, shape index: {}]
  %s1 = inlined_call_operand.vmem [shape: f32[2,2,8], index: 1, kind: input, shape index: {}]
  %s2 = inlined_call_operand.vmem [shape: f32[128,32], index: 2, kind: input, shape index: {}]
  %s3 = inlined_call_operand.vmem [shape: f32[8,32], index: 3, kind: input, shape index: {}]
  %s4 = inlined_call_operand.vmem [shape: f32[1,32], index: 4, kind: input, shape index: {}]
  %s5 = inlined_call_operand.vmem [shape: f32[1,32], index: 5, kind: input, shape index: {}]
  %s6 = inlined_call_operand.vmem [shape: bf16[2,32,96], index: 6, kind: input, shape index: {}]
  %s7 = inlined_call_operand.vmem [shape: f32[2,1,96], index: 7, kind: input, shape index: {}]
  %s8 = inlined_call_operand.vmem [shape: bf16[2,32,32], index: 8, kind: input, shape index: {}]
  %s9 = inlined_call_operand.vmem [shape: f32[2,1,32], index: 9, kind: input, shape index: {}]
  %s10 = inlined_call_operand.vmem [shape: f32[2,1,32], index: 10, kind: input, shape index: {}]
  %s11 = inlined_call_operand.vmem [shape: f32[2,1,32], index: 11, kind: input, shape index: {}]
  %s12 = inlined_call_operand.vmem [shape: bf16[2,32,64], index: 12, kind: input, shape index: {}]
  %s13 = inlined_call_operand.vmem [shape: f32[2,1,64], index: 13, kind: input, shape index: {}]
  %s14 = inlined_call_operand.vmem [shape: bf16[2,64,32], index: 14, kind: input, shape index: {}]
  %s15 = inlined_call_operand.vmem [shape: f32[2,1,32], index: 15, kind: input, shape index: {}]
  %s16 = inlined_call_operand.vmem [shape: f32[2,1,32], index: 16, kind: input, shape index: {}]
  %s17 = inlined_call_operand.vmem [shape: f32[2,1,32], index: 17, kind: input, shape index: {}]
  %s18 = inlined_call_operand.vmem [shape: bf16[32,256], index: 18, kind: input, shape index: {}]
  %s19 = inlined_call_operand.vmem [shape: f32[1,256], index: 19, kind: input, shape index: {}]
  %s20 = inlined_call_operand.vmem [shape: f32[2,1,128], index: 20, kind: output, shape index: {}]
  %s21 = sld [smem:[#allocation0]]
  $region117: #{shroom_forward.1} parent=0
    _
  %s23 = ssub.s32 1, %s21
  %s24 = scalar_select 0, %s23, %s21
  $region1: #{shroom_forward.1} parent=0
    #allocation3 [shape = 'u8[512]{0}', space=smem, size = 0x200, scoped, tag = 'input window, operand 0, single buffered']
    #allocation4 [shape = 's32[2]{0}', space=sflag, size = 0x8, scoped, tag = 'scoped memory for shroom_forward.1']
    %25 = vsyncpa [#allocation4], 0
    loop: start=0, step=1, limit=4
    $region2: #{shroom_forward.1} parent=1 // loop_pre_header
      _
    $region3: #{shroom_forward.1} parent=1 // loop_header
      %s27 = sphi 0, %s31
      %p28 = scmp.ge.s32.totalorder %s27, 4
      %s35 = sphi 0, %s35
      %s37 = sphi 0, %s35
      %s38 = sphi 0, %s37
      %s52 = sphi 0, %s38
      %s58 = sphi 0, %s60
      %s61 = sphi 0, %s58
      %s62 = sphi 0, %s61
      %s78 = sphi 0, %s62
      %s82 = sphi 0, %s82
      %s84 = sphi 0, %s82
      %s85 = sphi 0, %s84
      %s99 = sphi 0, %s85
      %s103 = sphi 0, %s103
      %s105 = sphi 0, %s103
      %s106 = sphi 0, %s105
      %s120 = sphi 0, %s106
      %s124 = sphi 0, %s124
      %s126 = sphi 0, %s124
      %s127 = sphi 0, %s126
      %s141 = sphi 0, %s127
      %s145 = sphi 0, %s145
      %s147 = sphi 0, %s145
      %s148 = sphi 0, %s147
      %s162 = sphi 0, %s148
      %s166 = sphi 0, %s166
      %s168 = sphi 0, %s166
      %s169 = sphi 0, %s168
      %s183 = sphi 0, %s169
      %s187 = sphi 0, %s187
      %s189 = sphi 0, %s187
      %s190 = sphi 0, %s189
      %s204 = sphi 0, %s190
      %s208 = sphi 0, %s208
      %s210 = sphi 0, %s208
      %s211 = sphi 0, %s210
      %s225 = sphi 0, %s211
      %s229 = sphi 0, %s229
      %s231 = sphi 0, %s229
      %s232 = sphi 0, %s231
      %s246 = sphi 0, %s232
      %s250 = sphi 0, %s250
      %s252 = sphi 0, %s250
      %s253 = sphi 0, %s252
      %s267 = sphi 0, %s253
      %s271 = sphi 0, %s271
      %s273 = sphi 0, %s271
      %s274 = sphi 0, %s273
      %s288 = sphi 0, %s274
      %s292 = sphi 0, %s292
      %s294 = sphi 0, %s292
      %s295 = sphi 0, %s294
      %s309 = sphi 0, %s295
      %s313 = sphi 0, %s313
      %s315 = sphi 0, %s313
      %s316 = sphi 0, %s315
      %s330 = sphi 0, %s316
      %s334 = sphi 0, %s334
      %s336 = sphi 0, %s334
      %s337 = sphi 0, %s336
      %s351 = sphi 0, %s337
      %s355 = sphi 0, %s355
      %s357 = sphi 0, %s355
      %s358 = sphi 0, %s357
      %s372 = sphi 0, %s358
      %s376 = sphi 0, %s376
      %s378 = sphi 0, %s376
      %s379 = sphi 0, %s378
      %s393 = sphi 0, %s379
      %s397 = sphi 0, %s397
      %s399 = sphi 0, %s397
      %s400 = sphi 0, %s399
      %s414 = sphi 0, %s400
      %s418 = sphi 0, %s418
      %s420 = sphi 0, %s418
      %s421 = sphi 0, %s420
      %s435 = sphi 0, %s421
      %s439 = sphi 0, %s439
      %s441 = sphi 0, %s439
      %s442 = sphi 0, %s441
      %s456 = sphi 0, %s442
      %s462 = sphi 0, %s464
      %s465 = sphi 0, %s462
      %s466 = sphi 0, %s465
      %s482 = sphi 0, %s466
    $region4: #{shroom_forward.1} parent=1 // loop_header_branch
      %30 = sbr.rel (%p28) target = $region8
    $region5: #{shroom_forward.1} parent=1 // loop_body
      %s32 = ssub.s32 %s27, 1
      %s33 = ssub.s32 %s27, 2
      %s34 = sadd.s32 %s27, 1
      %s36 = sadd.s32 %s35, 1
      %p39 = scmp.eq.s32.totalorder %s27, 1
      %p40 = scmp.ne.s32.totalorder %s35, %s37
      %p41 = scmp.eq.s32.totalorder %s27, 0
      %p42 = por %p40, %p41
      %p43 = scmp.ne.s32.totalorder %s35, %s37
      %p44 = scmp.eq.s32.totalorder %s32, 1
      %p45 = por %p43, %p44
      %p46 = scmp.ne.s32.totalorder %s37, %s38
      %p47 = scmp.eq.s32.totalorder %s32, 0
      %p48 = por %p46, %p47
      %p49 = scmp.ne.s32.totalorder %s37, %s38
      %p50 = scmp.eq.s32.totalorder %s33, 1
      %p51 = por %p49, %p50
      %p53 = scmp.ne.s32.totalorder %s38, %s52
      %p54 = scmp.eq.s32.totalorder %s33, 0
      %p55 = por %p53, %p54
      %s56 = ssub.s32 %s27, %s34
      %p57 = scmp.eq.s32.totalorder %s56, 0
      %s59 = sadd.s32 %s58, 1
      %s60 = scalar_select %p57, %s58, %s59
      %p63 = pneg %p57
      %p64 = scmp.eq.s32.totalorder %s27, 1
      %p65 = por %p63, %p64
      %p66 = scmp.ne.s32.totalorder %s58, %s61
      %p67 = scmp.eq.s32.totalorder %s27, 0
      %p68 = por %p66, %p67
      %p69 = scmp.ne.s32.totalorder %s58, %s61
      %p70 = scmp.eq.s32.totalorder %s32, 1
      %p71 = por %p69, %p70
      %p72 = scmp.ne.s32.totalorder %s61, %s62
      %p73 = scmp.eq.s32.totalorder %s32, 0
      %p74 = por %p72, %p73
      %p75 = scmp.ne.s32.totalorder %s61, %s62
      %p76 = scmp.eq.s32.totalorder %s33, 1
      %p77 = por %p75, %p76
      %p79 = scmp.ne.s32.totalorder %s62, %s78
      %p80 = scmp.eq.s32.totalorder %s33, 0
      %p81 = por %p79, %p80
      %s83 = sadd.s32 %s82, 1
      %p86 = scmp.eq.s32.totalorder %s27, 1
      %p87 = scmp.ne.s32.totalorder %s82, %s84
      %p88 = scmp.eq.s32.totalorder %s27, 0
      %p89 = por %p87, %p88
      %p90 = scmp.ne.s32.totalorder %s82, %s84
      %p91 = scmp.eq.s32.totalorder %s32, 1
      %p92 = por %p90, %p91
      %p93 = scmp.ne.s32.totalorder %s84, %s85
      %p94 = scmp.eq.s32.totalorder %s32, 0
      %p95 = por %p93, %p94
      %p96 = scmp.ne.s32.totalorder %s84, %s85
      %p97 = scmp.eq.s32.totalorder %s33, 1
      %p98 = por %p96, %p97
      %p100 = scmp.ne.s32.totalorder %s85, %s99
      %p101 = scmp.eq.s32.totalorder %s33, 0
      %p102 = por %p100, %p101
      %s104 = sadd.s32 %s103, 1
      %p107 = scmp.eq.s32.totalorder %s27, 1
      %p108 = scmp.ne.s32.totalorder %s103, %s105
      %p109 = scmp.eq.s32.totalorder %s27, 0
      %p110 = por %p108, %p109
      %p111 = scmp.ne.s32.totalorder %s103, %s105
      %p112 = scmp.eq.s32.totalorder %s32, 1
      %p113 = por %p111, %p112
      %p114 = scmp.ne.s32.totalorder %s105, %s106
      %p115 = scmp.eq.s32.totalorder %s32, 0
      %p116 = por %p114, %p115
      %p117 = scmp.ne.s32.totalorder %s105, %s106
      %p118 = scmp.eq.s32.totalorder %s33, 1
      %p119 = por %p117, %p118
      %p121 = scmp.ne.s32.totalorder %s106, %s120
      %p122 = scmp.eq.s32.totalorder %s33, 0
      %p123 = por %p121, %p122
      %s125 = sadd.s32 %s124, 1
      %p128 = scmp.eq.s32.totalorder %s27, 1
      %p129 = scmp.ne.s32.totalorder %s124, %s126
      %p130 = scmp.eq.s32.totalorder %s27, 0
      %p131 = por %p129, %p130
      %p132 = scmp.ne.s32.totalorder %s124, %s126
      %p133 = scmp.eq.s32.totalorder %s32, 1
      %p134 = por %p132, %p133
      %p135 = scmp.ne.s32.totalorder %s126, %s127
      %p136 = scmp.eq.s32.totalorder %s32, 0
      %p137 = por %p135, %p136
      %p138 = scmp.ne.s32.totalorder %s126, %s127
      %p139 = scmp.eq.s32.totalorder %s33, 1
      %p140 = por %p138, %p139
      %p142 = scmp.ne.s32.totalorder %s127, %s141
      %p143 = scmp.eq.s32.totalorder %s33, 0
      %p144 = por %p142, %p143
      %s146 = sadd.s32 %s145, 1
      %p149 = scmp.eq.s32.totalorder %s27, 1
      %p150 = scmp.ne.s32.totalorder %s145, %s147
      %p151 = scmp.eq.s32.totalorder %s27, 0
      %p152 = por %p150, %p151
      %p153 = scmp.ne.s32.totalorder %s145, %s147
      %p154 = scmp.eq.s32.totalorder %s32, 1
      %p155 = por %p153, %p154
      %p156 = scmp.ne.s32.totalorder %s147, %s148
      %p157 = scmp.eq.s32.totalorder %s32, 0
      %p158 = por %p156, %p157
      %p159 = scmp.ne.s32.totalorder %s147, %s148
      %p160 = scmp.eq.s32.totalorder %s33, 1
      %p161 = por %p159, %p160
      %p163 = scmp.ne.s32.totalorder %s148, %s162
      %p164 = scmp.eq.s32.totalorder %s33, 0
      %p165 = por %p163, %p164
      %s167 = sadd.s32 %s166, 1
      %p170 = scmp.eq.s32.totalorder %s27, 1
      %p171 = scmp.ne.s32.totalorder %s166, %s168
      %p172 = scmp.eq.s32.totalorder %s27, 0
      %p173 = por %p171, %p172
      %p174 = scmp.ne.s32.totalorder %s166, %s168
      %p175 = scmp.eq.s32.totalorder %s32, 1
      %p176 = por %p174, %p175
      %p177 = scmp.ne.s32.totalorder %s168, %s169
      %p178 = scmp.eq.s32.totalorder %s32, 0
      %p179 = por %p177, %p178
      %p180 = scmp.ne.s32.totalorder %s168, %s169
      %p181 = scmp.eq.s32.totalorder %s33, 1
      %p182 = por %p180, %p181
      %p184 = scmp.ne.s32.totalorder %s169, %s183
      %p185 = scmp.eq.s32.totalorder %s33, 0
      %p186 = por %p184, %p185
      %s188 = sadd.s32 %s187, 1
      %p191 = scmp.eq.s32.totalorder %s27, 1
      %p192 = scmp.ne.s32.totalorder %s187, %s189
      %p193 = scmp.eq.s32.totalorder %s27, 0
      %p194 = por %p192, %p193
      %p195 = scmp.ne.s32.totalorder %s187, %s189
      %p196 = scmp.eq.s32.totalorder %s32, 1
      %p197 = por %p195, %p196
      %p198 = scmp.ne.s32.totalorder %s189, %s190
      %p199 = scmp.eq.s32.totalorder %s32, 0
      %p200 = por %p198, %p199
      %p201 = scmp.ne.s32.totalorder %s189, %s190
      %p202 = scmp.eq.s32.totalorder %s33, 1
      %p203 = por %p201, %p202
      %p205 = scmp.ne.s32.totalorder %s190, %s204
      %p206 = scmp.eq.s32.totalorder %s33, 0
      %p207 = por %p205, %p206
      %s209 = sadd.s32 %s208, 1
      %p212 = scmp.eq.s32.totalorder %s27, 1
      %p213 = scmp.ne.s32.totalorder %s208, %s210
      %p214 = scmp.eq.s32.totalorder %s27, 0
      %p215 = por %p213, %p214
      %p216 = scmp.ne.s32.totalorder %s208, %s210
      %p217 = scmp.eq.s32.totalorder %s32, 1
      %p218 = por %p216, %p217
      %p219 = scmp.ne.s32.totalorder %s210, %s211
      %p220 = scmp.eq.s32.totalorder %s32, 0
      %p221 = por %p219, %p220
      %p222 = scmp.ne.s32.totalorder %s210, %s211
      %p223 = scmp.eq.s32.totalorder %s33, 1
      %p224 = por %p222, %p223
      %p226 = scmp.ne.s32.totalorder %s211, %s225
      %p227 = scmp.eq.s32.totalorder %s33, 0
      %p228 = por %p226, %p227
      %s230 = sadd.s32 %s229, 1
      %p233 = scmp.eq.s32.totalorder %s27, 1
      %p234 = scmp.ne.s32.totalorder %s229, %s231
      %p235 = scmp.eq.s32.totalorder %s27, 0
      %p236 = por %p234, %p235
      %p237 = scmp.ne.s32.totalorder %s229, %s231
      %p238 = scmp.eq.s32.totalorder %s32, 1
      %p239 = por %p237, %p238
      %p240 = scmp.ne.s32.totalorder %s231, %s232
      %p241 = scmp.eq.s32.totalorder %s32, 0
      %p242 = por %p240, %p241
      %p243 = scmp.ne.s32.totalorder %s231, %s232
      %p244 = scmp.eq.s32.totalorder %s33, 1
      %p245 = por %p243, %p244
      %p247 = scmp.ne.s32.totalorder %s232, %s246
      %p248 = scmp.eq.s32.totalorder %s33, 0
      %p249 = por %p247, %p248
      %s251 = sadd.s32 %s250, 1
      %p254 = scmp.eq.s32.totalorder %s27, 1
      %p255 = scmp.ne.s32.totalorder %s250, %s252
      %p256 = scmp.eq.s32.totalorder %s27, 0
      %p257 = por %p255, %p256
      %p258 = scmp.ne.s32.totalorder %s250, %s252
      %p259 = scmp.eq.s32.totalorder %s32, 1
      %p260 = por %p258, %p259
      %p261 = scmp.ne.s32.totalorder %s252, %s253
      %p262 = scmp.eq.s32.totalorder %s32, 0
      %p263 = por %p261, %p262
      %p264 = scmp.ne.s32.totalorder %s252, %s253
      %p265 = scmp.eq.s32.totalorder %s33, 1
      %p266 = por %p264, %p265
      %p268 = scmp.ne.s32.totalorder %s253, %s267
      %p269 = scmp.eq.s32.totalorder %s33, 0
      %p270 = por %p268, %p269
      %s272 = sadd.s32 %s271, 1
      %p275 = scmp.eq.s32.totalorder %s27, 1
      %p276 = scmp.ne.s32.totalorder %s271, %s273
      %p277 = scmp.eq.s32.totalorder %s27, 0
      %p278 = por %p276, %p277
      %p279 = scmp.ne.s32.totalorder %s271, %s273
      %p280 = scmp.eq.s32.totalorder %s32, 1
      %p281 = por %p279, %p280
      %p282 = scmp.ne.s32.totalorder %s273, %s274
      %p283 = scmp.eq.s32.totalorder %s32, 0
      %p284 = por %p282, %p283
      %p285 = scmp.ne.s32.totalorder %s273, %s274
      %p286 = scmp.eq.s32.totalorder %s33, 1
      %p287 = por %p285, %p286
      %p289 = scmp.ne.s32.totalorder %s274, %s288
      %p290 = scmp.eq.s32.totalorder %s33, 0
      %p291 = por %p289, %p290
      %s293 = sadd.s32 %s292, 1
      %p296 = scmp.eq.s32.totalorder %s27, 1
      %p297 = scmp.ne.s32.totalorder %s292, %s294
      %p298 = scmp.eq.s32.totalorder %s27, 0
      %p299 = por %p297, %p298
      %p300 = scmp.ne.s32.totalorder %s292, %s294
      %p301 = scmp.eq.s32.totalorder %s32, 1
      %p302 = por %p300, %p301
      %p303 = scmp.ne.s32.totalorder %s294, %s295
      %p304 = scmp.eq.s32.totalorder %s32, 0
      %p305 = por %p303, %p304
      %p306 = scmp.ne.s32.totalorder %s294, %s295
      %p307 = scmp.eq.s32.totalorder %s33, 1
      %p308 = por %p306, %p307
      %p310 = scmp.ne.s32.totalorder %s295, %s309
      %p311 = scmp.eq.s32.totalorder %s33, 0
      %p312 = por %p310, %p311
      %s314 = sadd.s32 %s313, 1
      %p317 = scmp.eq.s32.totalorder %s27, 1
      %p318 = scmp.ne.s32.totalorder %s313, %s315
      %p319 = scmp.eq.s32.totalorder %s27, 0
      %p320 = por %p318, %p319
      %p321 = scmp.ne.s32.totalorder %s313, %s315
      %p322 = scmp.eq.s32.totalorder %s32, 1
      %p323 = por %p321, %p322
      %p324 = scmp.ne.s32.totalorder %s315, %s316
      %p325 = scmp.eq.s32.totalorder %s32, 0
      %p326 = por %p324, %p325
      %p327 = scmp.ne.s32.totalorder %s315, %s316
      %p328 = scmp.eq.s32.totalorder %s33, 1
      %p329 = por %p327, %p328
      %p331 = scmp.ne.s32.totalorder %s316, %s330
      %p332 = scmp.eq.s32.totalorder %s33, 0
      %p333 = por %p331, %p332
      %s335 = sadd.s32 %s334, 1
      %p338 = scmp.eq.s32.totalorder %s27, 1
      %p339 = scmp.ne.s32.totalorder %s334, %s336
      %p340 = scmp.eq.s32.totalorder %s27, 0
      %p341 = por %p339, %p340
      %p342 = scmp.ne.s32.totalorder %s334, %s336
      %p343 = scmp.eq.s32.totalorder %s32, 1
      %p344 = por %p342, %p343
      %p345 = scmp.ne.s32.totalorder %s336, %s337
      %p346 = scmp.eq.s32.totalorder %s32, 0
      %p347 = por %p345, %p346
      %p348 = scmp.ne.s32.totalorder %s336, %s337
      %p349 = scmp.eq.s32.totalorder %s33, 1
      %p350 = por %p348, %p349
      %p352 = scmp.ne.s32.totalorder %s337, %s351
      %p353 = scmp.eq.s32.totalorder %s33, 0
      %p354 = por %p352, %p353
      %s356 = sadd.s32 %s355, 1
      %p359 = scmp.eq.s32.totalorder %s27, 1
      %p360 = scmp.ne.s32.totalorder %s355, %s357
      %p361 = scmp.eq.s32.totalorder %s27, 0
      %p362 = por %p360, %p361
      %p363 = scmp.ne.s32.totalorder %s355, %s357
      %p364 = scmp.eq.s32.totalorder %s32, 1
      %p365 = por %p363, %p364
      %p366 = scmp.ne.s32.totalorder %s357, %s358
      %p367 = scmp.eq.s32.totalorder %s32, 0
      %p368 = por %p366, %p367
      %p369 = scmp.ne.s32.totalorder %s357, %s358
      %p370 = scmp.eq.s32.totalorder %s33, 1
      %p371 = por %p369, %p370
      %p373 = scmp.ne.s32.totalorder %s358, %s372
      %p374 = scmp.eq.s32.totalorder %s33, 0
      %p375 = por %p373, %p374
      %s377 = sadd.s32 %s376, 1
      %p380 = scmp.eq.s32.totalorder %s27, 1
      %p381 = scmp.ne.s32.totalorder %s376, %s378
      %p382 = scmp.eq.s32.totalorder %s27, 0
      %p383 = por %p381, %p382
      %p384 = scmp.ne.s32.totalorder %s376, %s378
      %p385 = scmp.eq.s32.totalorder %s32, 1
      %p386 = por %p384, %p385
      %p387 = scmp.ne.s32.totalorder %s378, %s379
      %p388 = scmp.eq.s32.totalorder %s32, 0
      %p389 = por %p387, %p388
      %p390 = scmp.ne.s32.totalorder %s378, %s379
      %p391 = scmp.eq.s32.totalorder %s33, 1
      %p392 = por %p390, %p391
      %p394 = scmp.ne.s32.totalorder %s379, %s393
      %p395 = scmp.eq.s32.totalorder %s33, 0
      %p396 = por %p394, %p395
      %s398 = sadd.s32 %s397, 1
      %p401 = scmp.eq.s32.totalorder %s27, 1
      %p402 = scmp.ne.s32.totalorder %s397, %s399
      %p403 = scmp.eq.s32.totalorder %s27, 0
      %p404 = por %p402, %p403
      %p405 = scmp.ne.s32.totalorder %s397, %s399
      %p406 = scmp.eq.s32.totalorder %s32, 1
      %p407 = por %p405, %p406
      %p408 = scmp.ne.s32.totalorder %s399, %s400
      %p409 = scmp.eq.s32.totalorder %s32, 0
      %p410 = por %p408, %p409
      %p411 = scmp.ne.s32.totalorder %s399, %s400
      %p412 = scmp.eq.s32.totalorder %s33, 1
      %p413 = por %p411, %p412
      %p415 = scmp.ne.s32.totalorder %s400, %s414
      %p416 = scmp.eq.s32.totalorder %s33, 0
      %p417 = por %p415, %p416
      %s419 = sadd.s32 %s418, 1
      %p422 = scmp.eq.s32.totalorder %s27, 1
      %p423 = scmp.ne.s32.totalorder %s418, %s420
      %p424 = scmp.eq.s32.totalorder %s27, 0
      %p425 = por %p423, %p424
      %p426 = scmp.ne.s32.totalorder %s418, %s420
      %p427 = scmp.eq.s32.totalorder %s32, 1
      %p428 = por %p426, %p427
      %p429 = scmp.ne.s32.totalorder %s420, %s421
      %p430 = scmp.eq.s32.totalorder %s32, 0
      %p431 = por %p429, %p430
      %p432 = scmp.ne.s32.totalorder %s420, %s421
      %p433 = scmp.eq.s32.totalorder %s33, 1
      %p434 = por %p432, %p433
      %p436 = scmp.ne.s32.totalorder %s421, %s435
      %p437 = scmp.eq.s32.totalorder %s33, 0
      %p438 = por %p436, %p437
      %s440 = sadd.s32 %s439, 1
      %p443 = scmp.eq.s32.totalorder %s27, 1
      %p444 = scmp.ne.s32.totalorder %s439, %s441
      %p445 = scmp.eq.s32.totalorder %s27, 0
      %p446 = por %p444, %p445
      %p447 = scmp.ne.s32.totalorder %s439, %s441
      %p448 = scmp.eq.s32.totalorder %s32, 1
      %p449 = por %p447, %p448
      %p450 = scmp.ne.s32.totalorder %s441, %s442
      %p451 = scmp.eq.s32.totalorder %s32, 0
      %p452 = por %p450, %p451
      %p453 = scmp.ne.s32.totalorder %s441, %s442
      %p454 = scmp.eq.s32.totalorder %s33, 1
      %p455 = por %p453, %p454
      %p457 = scmp.ne.s32.totalorder %s442, %s456
      %p458 = scmp.eq.s32.totalorder %s33, 0
      %p459 = por %p457, %p458
      %s460 = ssub.s32 %s27, %s34
      %p461 = scmp.eq.s32.totalorder %s460, 0
      %s463 = sadd.s32 %s462, 1
      %s464 = scalar_select %p461, %s462, %s463
      %p467 = pneg %p461
      %p468 = scmp.eq.s32.totalorder %s27, 1
      %p469 = por %p467, %p468
      %p470 = scmp.ne.s32.totalorder %s462, %s465
      %p471 = scmp.eq.s32.totalorder %s27, 0
      %p472 = por %p470, %p471
      %p473 = scmp.ne.s32.totalorder %s462, %s465
      %p474 = scmp.eq.s32.totalorder %s32, 1
      %p475 = por %p473, %p474
      %p476 = scmp.ne.s32.totalorder %s465, %s466
      %p477 = scmp.eq.s32.totalorder %s32, 0
      %p478 = por %p476, %p477
      %p479 = scmp.ne.s32.totalorder %s465, %s466
      %p480 = scmp.eq.s32.totalorder %s33, 1
      %p481 = por %p479, %p480
      %p483 = scmp.ne.s32.totalorder %s466, %s482
      %p484 = scmp.eq.s32.totalorder %s33, 0
      %p485 = por %p483, %p484
      %p486 = scmp.le.s32.totalorder 1, %s27
      %p487 = scmp.lt.s32.totalorder %s27, 3
      %p488 = pnand %p486, %p487
      %p489 = pneg %p488
      // Predicated region
      $region9: #{shroom_forward.1} parent=5 // pred_check
        _
      $region10: #{shroom_forward.1} parent=5 // pred_check_branch
        %491 = sbr.rel (%p488) target = $region12
      $region11: #{shroom_forward.1} parent=5 // pred_region
        %s492 = ssub.s32 %s27, 1
        // Predicated region
        $region13: #{shroom_forward.1} parent=11 // pred_check
          %p493 = pneg %p48
        $region14: #{shroom_forward.1} parent=11 // pred_check_branch
          %495 = sbr.rel (%p493) target = $region16
        $region15: #{shroom_forward.1} parent=11 // pred_region
          %497 = vsyncadd [#allocation4], 0
          %s499 = sshll.u32 %s0, 4
          %s500 = int_to_ptr.vmem [resolvable:$true] %s499
          %502 = dma.vmem_to_smem %s500, 16, [#allocation3], [#allocation4]
        $region16: #{shroom_forward.1} parent=11 // pred_fallthru
          _
        // Predicated region
        $region17: #{shroom_forward.1} parent=11 // pred_check
          %p503 = pneg %p95
        $region18: #{shroom_forward.1} parent=11 // pred_check_branch
          %505 = sbr.rel (%p503) target = $region20
        $region19: #{shroom_forward.1} parent=11 // pred_region
          _
        $region20: #{shroom_forward.1} parent=11 // pred_fallthru
          _
        // Predicated region
        $region21: #{shroom_forward.1} parent=11 // pred_check
          %p506 = pneg %p116
        $region22: #{shroom_forward.1} parent=11 // pred_check_branch
          %508 = sbr.rel (%p506) target = $region24
        $region23: #{shroom_forward.1} parent=11 // pred_region
          _
        $region24: #{shroom_forward.1} parent=11 // pred_fallthru
          _
        // Predicated region
        $region25: #{shroom_forward.1} parent=11 // pred_check
          %p509 = pneg %p137
        $region26: #{shroom_forward.1} parent=11 // pred_check_branch
          %511 = sbr.rel (%p509) target = $region28
        $region27: #{shroom_forward.1} parent=11 // pred_region
          _
        $region28: #{shroom_forward.1} parent=11 // pred_fallthru
          _
        // Predicated region
        $region29: #{shroom_forward.1} parent=11 // pred_check
          %p512 = pneg %p158
        $region30: #{shroom_forward.1} parent=11 // pred_check_branch
          %514 = sbr.rel (%p512) target = $region32
        $region31: #{shroom_forward.1} parent=11 // pred_region
          _
        $region32: #{shroom_forward.1} parent=11 // pred_fallthru
          _
        // Predicated region
        $region33: #{shroom_forward.1} parent=11 // pred_check
          %p515 = pneg %p179
        $region34: #{shroom_forward.1} parent=11 // pred_check_branch
          %517 = sbr.rel (%p515) target = $region36
        $region35: #{shroom_forward.1} parent=11 // pred_region
          _
        $region36: #{shroom_forward.1} parent=11 // pred_fallthru
          _
        // Predicated region
        $region37: #{shroom_forward.1} parent=11 // pred_check
          %p518 = pneg %p200
        $region38: #{shroom_forward.1} parent=11 // pred_check_branch
          %520 = sbr.rel (%p518) target = $region40
        $region39: #{shroom_forward.1} parent=11 // pred_region
          _
        $region40: #{shroom_forward.1} parent=11 // pred_fallthru
          _
        // Predicated region
        $region41: #{shroom_forward.1} parent=11 // pred_check
          %p521 = pneg %p221
        $region42: #{shroom_forward.1} parent=11 // pred_check_branch
          %523 = sbr.rel (%p521) target = $region44
        $region43: #{shroom_forward.1} parent=11 // pred_region
          _
        $region44: #{shroom_forward.1} parent=11 // pred_fallthru
          _
        // Predicated region
        $region45: #{shroom_forward.1} parent=11 // pred_check
          %p524 = pneg %p242
        $region46: #{shroom_forward.1} parent=11 // pred_check_branch
          %526 = sbr.rel (%p524) target = $region48
        $region47: #{shroom_forward.1} parent=11 // pred_region
          _
        $region48: #{shroom_forward.1} parent=11 // pred_fallthru
          _
        // Predicated region
        $region49: #{shroom_forward.1} parent=11 // pred_check
          %p527 = pneg %p263
        $region50: #{shroom_forward.1} parent=11 // pred_check_branch
          %529 = sbr.rel (%p527) target = $region52
        $region51: #{shroom_forward.1} parent=11 // pred_region
          _
        $region52: #{shroom_forward.1} parent=11 // pred_fallthru
          _
        // Predicated region
        $region53: #{shroom_forward.1} parent=11 // pred_check
          %p530 = pneg %p284
        $region54: #{shroom_forward.1} parent=11 // pred_check_branch
          %532 = sbr.rel (%p530) target = $region56
        $region55: #{shroom_forward.1} parent=11 // pred_region
          _
        $region56: #{shroom_forward.1} parent=11 // pred_fallthru
          _
        // Predicated region
        $region57: #{shroom_forward.1} parent=11 // pred_check
          %p533 = pneg %p305
        $region58: #{shroom_forward.1} parent=11 // pred_check_branch
          %535 = sbr.rel (%p533) target = $region60
        $region59: #{shroom_forward.1} parent=11 // pred_region
          _
        $region60: #{shroom_forward.1} parent=11 // pred_fallthru
          _
        // Predicated region
        $region61: #{shroom_forward.1} parent=11 // pred_check
          %p536 = pneg %p326
        $region62: #{shroom_forward.1} parent=11 // pred_check_branch
          %538 = sbr.rel (%p536) target = $region64
        $region63: #{shroom_forward.1} parent=11 // pred_region
          _
        $region64: #{shroom_forward.1} parent=11 // pred_fallthru
          _
        // Predicated region
        $region65: #{shroom_forward.1} parent=11 // pred_check
          %p539 = pneg %p347
        $region66: #{shroom_forward.1} parent=11 // pred_check_branch
          %541 = sbr.rel (%p539) target = $region68
        $region67: #{shroom_forward.1} parent=11 // pred_region
          _
        $region68: #{shroom_forward.1} parent=11 // pred_fallthru
          _
        // Predicated region
        $region69: #{shroom_forward.1} parent=11 // pred_check
          %p542 = pneg %p368
        $region70: #{shroom_forward.1} parent=11 // pred_check_branch
          %544 = sbr.rel (%p542) target = $region72
        $region71: #{shroom_forward.1} parent=11 // pred_region
          _
        $region72: #{shroom_forward.1} parent=11 // pred_fallthru
          _
        // Predicated region
        $region73: #{shroom_forward.1} parent=11 // pred_check
          %p545 = pneg %p389
        $region74: #{shroom_forward.1} parent=11 // pred_check_branch
          %547 = sbr.rel (%p545) target = $region76
        $region75: #{shroom_forward.1} parent=11 // pred_region
          _
        $region76: #{shroom_forward.1} parent=11 // pred_fallthru
          _
        // Predicated region
        $region77: #{shroom_forward.1} parent=11 // pred_check
          %p548 = pneg %p410
        $region78: #{shroom_forward.1} parent=11 // pred_check_branch
          %550 = sbr.rel (%p548) target = $region80
        $region79: #{shroom_forward.1} parent=11 // pred_region
          _
        $region80: #{shroom_forward.1} parent=11 // pred_fallthru
          _
        // Predicated region
        $region81: #{shroom_forward.1} parent=11 // pred_check
          %p551 = pneg %p431
        $region82: #{shroom_forward.1} parent=11 // pred_check_branch
          %553 = sbr.rel (%p551) target = $region84
        $region83: #{shroom_forward.1} parent=11 // pred_region
          _
        $region84: #{shroom_forward.1} parent=11 // pred_fallthru
          _
        // Predicated region
        $region85: #{shroom_forward.1} parent=11 // pred_check
          %p554 = pneg %p452
        $region86: #{shroom_forward.1} parent=11 // pred_check_branch
          %556 = sbr.rel (%p554) target = $region88
        $region87: #{shroom_forward.1} parent=11 // pred_region
          _
        $region88: #{shroom_forward.1} parent=11 // pred_fallthru
          _
      $region12: #{shroom_forward.1} parent=5 // pred_fallthru
        _
      %p557 = scmp.lt.s32.totalorder %s27, 2
      // Predicated region
      $region89: #{shroom_forward.1} parent=5 // pred_check
        %p558 = pneg %p557
      $region90: #{shroom_forward.1} parent=5 // pred_check_branch
        %560 = sbr.rel (%p558) target = $region92
      $region91: #{shroom_forward.1} parent=5 // pred_region
        // Predicated region
        $region93: #{shroom_forward.1} parent=91 // pred_check
          %p561 = pneg %p68
        $region94: #{shroom_forward.1} parent=91 // pred_check_branch
          %563 = sbr.rel (%p561) target = $region96
        $region95: #{shroom_forward.1} parent=91 // pred_region
          %p564 = scmp.lt.s32.totalorder %s27, 1
          %s565 = scalar_select %p564, %s27, 1
          %s566 = smul.addr %s565, 2
          %s567 = scalar_lea.vmem %s1, %s566
        $region96: #{shroom_forward.1} parent=91 // pred_fallthru
          _
      $region92: #{shroom_forward.1} parent=5 // pred_fallthru
        _
      %p568 = scmp.le.s32.totalorder 1, %s27
      %p569 = scmp.lt.s32.totalorder %s27, 3
      %p570 = pnand %p568, %p569
      %p571 = pneg %p570
      // Predicated region
      $region97: #{shroom_forward.1} parent=5 // pred_check
        _
      $region98: #{shroom_forward.1} parent=5 // pred_check_branch
        %573 = sbr.rel (%p570) target = $region100
      $region99: #{shroom_forward.1} parent=5 // pred_region
        %s574 = ssub.s32 %s27, 1
        // Predicated region
        $region101: #{shroom_forward.1} parent=99 // pred_check
          %p575 = pneg %p48
        $region102: #{shroom_forward.1} parent=99 // pred_check_branch
          %577 = sbr.rel (%p575) target = $region104
        $region103: #{shroom_forward.1} parent=99 // pred_region
          %579 = dma.done [#allocation4], 16
        $region104: #{shroom_forward.1} parent=99 // pred_fallthru
          _
        %580 = sfence
        %p581 = pneg %p48
        %p582 = pneg %p45
        %p583 = scmp.lt.s32.totalorder %s32, 1
        %s584 = scalar_select %p583, %s32, 1
        %s585 = smul.addr %s584, 2
        %s586 = scalar_lea.vmem %s1, %s585
        %p587 = pneg %p74
        %p588 = pneg %p71
        %p589 = pneg %p95
        %p590 = pneg %p92
        %p591 = pneg %p116
        %p592 = pneg %p113
        %p593 = pneg %p137
        %p594 = pneg %p134
        %p595 = pneg %p158
        %p596 = pneg %p155
        %p597 = pneg %p179
        %p598 = pneg %p176
        %p599 = pneg %p200
        %p600 = pneg %p197
        %p601 = pneg %p221
        %p602 = pneg %p218
        %p603 = pneg %p242
        %p604 = pneg %p239
        %p605 = pneg %p263
        %p606 = pneg %p260
        %p607 = pneg %p284
        %p608 = pneg %p281
        %p609 = pneg %p305
        %p610 = pneg %p302
        %p611 = pneg %p326
        %p612 = pneg %p323
        %p613 = pneg %p347
        %p614 = pneg %p344
        %p615 = pneg %p368
        %p616 = pneg %p365
        %p617 = pneg %p389
        %p618 = pneg %p386
        %p619 = pneg %p410
        %p620 = pneg %p407
        %p621 = pneg %p431
        %p622 = pneg %p428
        %p623 = pneg %p452
        %p624 = pneg %p449
        %p625 = pneg %p478
        %p626 = pneg %p475
        %p627 = scmp.lt.s32.totalorder %s32, 1
        %s628 = scalar_select %p627, %s32, 1
        %s629 = scalar_lea.vmem %s20, %s628
        %p630 = scmp.lt.s32.totalorder %s32, 1
        %s631 = scalar_select %p630, %s32, 1
        %s632 = smul.addr %s631, 2
        %s633 = scalar_lea.vmem %s1, %s632
        %p634 = scmp.lt.s32.totalorder %s32, 1
        %s635 = scalar_select %p634, %s32, 1
        %s636 = scalar_lea.vmem %s20, %s635
        %s638 = smul.u32 %s32, 8
        %s639 = sld [smem:[#allocation3 + %s638]]
        %s640 = scalar_lea.vmem %s2, %s639
        %v641 = vld [vmem:[%s640] sm:$0x1]
        %vm642 = vcmask 253952
        %643 = vst.msk [vmem:[#allocation2] sm:$0x1] %vm642, %v641
        %s644 = sadd.s32 %s638, 1
        %s645 = sld [smem:[#allocation3 + %s644]]
        %s646 = scalar_lea.vmem %s2, %s645
        %v647 = vld [vmem:[%s646] sm:$0x1]
        %648 = vst.msk [vmem:[#allocation2 + $0x1] sm:$0x1] %vm642, %v647
        %s649 = sadd.s32 %s638, 2
        %s650 = sld [smem:[#allocation3 + %s649]]
        %s651 = scalar_lea.vmem %s2, %s650
        %v652 = vld [vmem:[%s651] sm:$0x1]
        %653 = vst.msk [vmem:[#allocation2 + $0x2] sm:$0x1] %vm642, %v652
        %s654 = sadd.s32 %s638, 3
        %s655 = sld [smem:[#allocation3 + %s654]]
        %s656 = scalar_lea.vmem %s2, %s655
        %v657 = vld [vmem:[%s656] sm:$0x1]
        %658 = vst.msk [vmem:[#allocation2 + $0x3] sm:$0x1] %vm642, %v657
        %s659 = sadd.s32 %s638, 4
        %s660 = sld [smem:[#allocation3 + %s659]]
        %s661 = scalar_lea.vmem %s2, %s660
        %v662 = vld [vmem:[%s661] sm:$0x1]
        %663 = vst.msk [vmem:[#allocation2 + $0x4] sm:$0x1] %vm642, %v662
        %s664 = sadd.s32 %s638, 5
        %s665 = sld [smem:[#allocation3 + %s664]]
        %s666 = scalar_lea.vmem %s2, %s665
        %v667 = vld [vmem:[%s666] sm:$0x1]
        %668 = vst.msk [vmem:[#allocation2 + $0x5] sm:$0x1] %vm642, %v667
        %s669 = sadd.s32 %s638, 6
        %s670 = sld [smem:[#allocation3 + %s669]]
        %s671 = scalar_lea.vmem %s2, %s670
        %v672 = vld [vmem:[%s671] sm:$0x1]
        %673 = vst.msk [vmem:[#allocation2 + $0x6] sm:$0x1] %vm642, %v672
        %s674 = sadd.s32 %s638, 7
        %s675 = sld [smem:[#allocation3 + %s674]]
        %s676 = scalar_lea.vmem %s2, %s675
        %v677 = vld [vmem:[%s676] sm:$0x1]
        %678 = vst.msk [vmem:[#allocation2 + $0x7] sm:$0x1] %vm642, %v677
        %s679 = sadd.s32 %s32, 2
        %s680 = smul.u32 %s679, 8
        %s681 = sld [smem:[#allocation3 + %s680]]
        %s682 = scalar_lea.vmem %s2, %s681
        %v683 = vld [vmem:[%s682] sm:$0x1]
        %684 = vst.msk [vmem:[#allocation2 + $0x8] sm:$0x1] %vm642, %v683
        %s685 = sadd.s32 %s680, 1
        %s686 = sld [smem:[#allocation3 + %s685]]
        %s687 = scalar_lea.vmem %s2, %s686
        %v688 = vld [vmem:[%s687] sm:$0x1]
        %689 = vst.msk [vmem:[#allocation2 + $0x9] sm:$0x1] %vm642, %v688
        %s690 = sadd.s32 %s680, 2
        %s691 = sld [smem:[#allocation3 + %s690]]
        %s692 = scalar_lea.vmem %s2, %s691
        %v693 = vld [vmem:[%s692] sm:$0x1]
        %694 = vst.msk [vmem:[#allocation2 + $0xa] sm:$0x1] %vm642, %v693
        %s695 = sadd.s32 %s680, 3
        %s696 = sld [smem:[#allocation3 + %s695]]
        %s697 = scalar_lea.vmem %s2, %s696
        %v698 = vld [vmem:[%s697] sm:$0x1]
        %699 = vst.msk [vmem:[#allocation2 + $0xb] sm:$0x1] %vm642, %v698
        %s700 = sadd.s32 %s680, 4
        %s701 = sld [smem:[#allocation3 + %s700]]
        %s702 = scalar_lea.vmem %s2, %s701
        %v703 = vld [vmem:[%s702] sm:$0x1]
        %704 = vst.msk [vmem:[#allocation2 + $0xc] sm:$0x1] %vm642, %v703
        %s705 = sadd.s32 %s680, 5
        %s706 = sld [smem:[#allocation3 + %s705]]
        %s707 = scalar_lea.vmem %s2, %s706
        %v708 = vld [vmem:[%s707] sm:$0x1]
        %709 = vst.msk [vmem:[#allocation2 + $0xd] sm:$0x1] %vm642, %v708
        %s710 = sadd.s32 %s680, 6
        %s711 = sld [smem:[#allocation3 + %s710]]
        %s712 = scalar_lea.vmem %s2, %s711
        %v713 = vld [vmem:[%s712] sm:$0x1]
        %714 = vst.msk [vmem:[#allocation2 + $0xe] sm:$0x1] %vm642, %v713
        %s715 = sadd.s32 %s680, 7
        %s716 = sld [smem:[#allocation3 + %s715]]
        %s717 = scalar_lea.vmem %s2, %s716
        %v718 = vld [vmem:[%s717] sm:$0x1]
        %719 = vst.msk [vmem:[#allocation2 + $0xf] sm:$0x1] %vm642, %v718
        %v720 = vld [vmem:[#allocation2] sm:$0xff]
        %v721 = vld [vmem:[#allocation2 + $0x8] sm:$0xff]
        %v722 = vld [vmem:[%s3] sm:$0xff]
        %v723 = vadd.f32 %v720, %v722
        %v724 = vadd.f32 %v721, %v722
        %v725 = vld [vmem:[%s4] sm:$0x1]
        %v726 = vld [vmem:[%s5] sm:$0x1]
        %vm727 = vcmask 261120
        %v728 = vsel %vm727, %v723, 0.0
        %729 = vadd.xlane.f32.xlu0 %v728
        %v730 = vpop.xlane.xlu0 %729
        %v731 = vsel %vm727, %v724, 0.0
        %732 = vadd.xlane.f32.xlu0 %v731
        %v733 = vpop.xlane.xlu0 %732
        %v734 = vrcp.pop 32.0
        %v735 = vmul.f32 32.0, %v734
        %v736 = vsub.f32 1.0, %v735
        %v737 = vmul.f32 %v734, %v736
        %v738 = vadd.f32 %v734, %v737
        %vm739 = vweird.f32 %v734
        %v740 = vsel %vm739, %v734, %v738
        %v741 = vmul.f32 %v730, %v740
        %v742 = vmul.f32 %v733, %v740
        %v743 = vsub.f32 %v723, %v741
        %v744 = vsub.f32 %v724, %v742
        %v745 = vmul.f32 %v743, %v743
        %v746 = vmul.f32 %v744, %v744
        %v747 = vsel %vm727, %v745, 0.0
        %748 = vadd.xlane.f32.xlu0 %v747
        %v749 = vpop.xlane.xlu0 %748
        %v750 = vsel %vm727, %v746, 0.0
        %751 = vadd.xlane.f32.xlu0 %v750
        %v752 = vpop.xlane.xlu0 %751
        %v753 = vmul.f32 %v749, %v740
        %v754 = vmul.f32 %v752, %v740
        %v755 = vadd.f32 %v753, 1e-12
        %v756 = vadd.f32 %v754, 1e-12
        %v757 = vrsqrt.pop %v755
        %v758 = vmul.f32 %v757, %v755
        %v759 = vmul.f32 %v758, %v757
        %v760 = vmul.f32 0.5, %v759
        %v761 = vsub.f32 1.5, %v760
        %v762 = vmul.f32 %v757, %v761
        %vm763 = vweird.f32 %v755
        %vm764 = vweird.f32 %v757
        %vm765 = vmor %vm763, %vm764
        %v766 = vsel %vm765, %v757, %v762
        %v767 = vrsqrt.pop %v756
        %v768 = vmul.f32 %v767, %v756
        %v769 = vmul.f32 %v768, %v767
        %v770 = vmul.f32 0.5, %v769
        %v771 = vsub.f32 1.5, %v770
        %v772 = vmul.f32 %v767, %v771
        %vm773 = vweird.f32 %v756
        %vm774 = vweird.f32 %v767
        %vm775 = vmor %vm773, %vm774
        %v776 = vsel %vm775, %v767, %v772
        %v777 = vmul.f32 %v743, %v766
        %v778 = vmul.f32 %v744, %v776
        %v780 = vperm.slane %v725, 0
        %v782 = vmul.f32 %v777, %v780
        %v783 = vmul.f32 %v778, %v780
        %v785 = vperm.slane %v726, 0
        %v787 = vadd.f32 %v782, %v785
        %v788 = vadd.f32 %v783, %v785
        %v789 = vld [vmem:[%s633] sm:$0x3]
        %v790 = vsub.f32 1.0, %v789
        %v791 = vmul.f32 %v790, -1e+09
        %v793 = vrot.slane %v791, 1
        %v794 = vperm.slane %v791, 0
        %v795 = vperm.slane %v793, 0
        %v798 = vpack.c.bf16 %v788, %v787
        %v799 = vld [vmem:[%s6] sm:$0xf]
        %v800 = vld [vmem:[%s6 + $0x4] sm:$0xf]
        %v801 = vld [vmem:[%s6 + $0x8] sm:$0xf]
        %v802 = vld [vmem:[%s6 + $0xc] sm:$0xf]
        %v803 = vld [vmem:[%s7] sm:$0x1]
        %v805 = vperm.slane %v803, 0
        %v811 = vunpack.c.l.b16 %v799
        %v812 = vunpack.c.l.b16 %v800
        %v813 = vunpack.c.l.b16 %v801
        %v814 = vunpack.c.l.b16 %v802
        %v815 = vpack.c.b16 %v812, %v811
        %v816 = vpack.c.b16 %v814, %v813
        %v820 = vsel %vm727, %v798, 0
        %822 = vmatpush.bf16.msra.mxu0 0
        %823 = vmatpush.bf16.msra.mxu0 0
        %824 = vmatpush.bf16.msra.mxu0 0
        %825 = vmatpush.bf16.msra.mxu0 0
        %826 = vmatpush.bf16.msra.mxu0 0
        %827 = vmatpush.bf16.msra.mxu0 0
        %828 = vmatpush.bf16.msra.mxu0 %v816
        %829 = vmatpush.bf16.msra.mxu0 %v815
        %830 = vmatmul.bf16.gmra.mxu0 %v820
        %v831 = vpop.f32.mrf.mxu0
        %v832 = vadd.f32 %v805, %v831
        %v833 = vpop.f32.mrf.mxu0
        %v834 = vadd.f32 %v805, %v833
        %835 = vdwg.mxu0
        %838 = vrot.lane.b32.xlu0 %v832, 120
        %v839 = vpop.permute.xlu0 %838
        %840 = vrot.lane.b32.xlu0 %v834, 120
        %v841 = vpop.permute.xlu0 %840
        %844 = vrot.lane.b32.xlu0 %v832, 112
        %v845 = vpop.permute.xlu0 %844
        %846 = vrot.lane.b32.xlu0 %v834, 112
        %v847 = vpop.permute.xlu0 %846
        %850 = vrot.lane.b32.xlu0 %v832, 104
        %v851 = vpop.permute.xlu0 %850
        %852 = vrot.lane.b32.xlu0 %v834, 104
        %v853 = vpop.permute.xlu0 %852
        %v856 = vrot.slane %v845, 4
        %vm857 = vcmask 1047556
        %v858 = vsel %vm857, %v856, %v832
        %v859 = vrot.slane %v832, 4
        %v860 = vsel %vm857, %v845, %v859
        %v862 = vunpack.c.l.s4 1983009808
        %v863 = vunpack.c.0.s8 %v862
        %v864 = vperm.slane %v858, %v863
        %v866 = vunpack.c.l.s4 1983009808
        %v867 = vunpack.c.0.s8 %v866
        %v868 = vperm.slane %v860, %v867
        %v869 = vrot.slane %v851, 4
        %v870 = vsel %vm857, %v869, %v839
        %v871 = vrot.slane %v839, 4
        %v872 = vsel %vm857, %v851, %v871
        %v874 = vunpack.c.l.s4 1983009808
        %v875 = vunpack.c.0.s8 %v874
        %v876 = vperm.slane %v870, %v875
        %v878 = vunpack.c.l.s4 1983009808
        %v879 = vunpack.c.0.s8 %v878
        %v880 = vperm.slane %v872, %v879
        %v881 = vrot.slane %v876, 4
        %v882 = vsel %vm857, %v881, %v864
        %v883 = vrot.slane %v864, 4
        %v884 = vsel %vm857, %v876, %v883
        %v886 = vunpack.c.l.s4 1934713408
        %v887 = vunpack.c.0.s8 %v886
        %v888 = vperm.slane %v882, %v887
        %v890 = vunpack.c.l.s4 1934713408
        %v891 = vunpack.c.0.s8 %v890
        %v892 = vperm.slane %v884, %v891
        %v893 = vrot.slane %v880, 4
        %v894 = vsel %vm857, %v893, %v868
        %v895 = vrot.slane %v868, 4
        %v896 = vsel %vm857, %v880, %v895
        %v898 = vunpack.c.l.s4 1934713408
        %v899 = vunpack.c.0.s8 %v898
        %v900 = vperm.slane %v894, %v899
        %v902 = vunpack.c.l.s4 1934713408
        %v903 = vunpack.c.0.s8 %v902
        %v904 = vperm.slane %v896, %v903
        %v905 = vrot.slane %v888, 4
        %v906 = vsel %vm857, 0.0, %v905
        %v907 = vrot.slane %v892, 4
        %v908 = vsel %vm857, 0.0, %v907
        %v909 = vrot.slane %v900, 4
        %v910 = vsel %vm857, 0.0, %v909
        %v911 = vrot.slane %v904, 4
        %v912 = vsel %vm857, 0.0, %v911
        %v913 = vrot.slane %v847, 4
        %v914 = vsel %vm857, %v913, %v834
        %v915 = vrot.slane %v834, 4
        %v916 = vsel %vm857, %v847, %v915
        %v918 = vunpack.c.l.s4 1983009808
        %v919 = vunpack.c.0.s8 %v918
        %v920 = vperm.slane %v914, %v919
        %v922 = vunpack.c.l.s4 1983009808
        %v923 = vunpack.c.0.s8 %v922
        %v924 = vperm.slane %v916, %v923
        %v925 = vrot.slane %v853, 4
        %v926 = vsel %vm857, %v925, %v841
        %v927 = vrot.slane %v841, 4
        %v928 = vsel %vm857, %v853, %v927
        %v930 = vunpack.c.l.s4 1983009808
        %v931 = vunpack.c.0.s8 %v930
        %v932 = vperm.slane %v926, %v931
        %v934 = vunpack.c.l.s4 1983009808
        %v935 = vunpack.c.0.s8 %v934
        %v936 = vperm.slane %v928, %v935
        %v937 = vrot.slane %v932, 4
        %v938 = vsel %vm857, %v937, %v920
        %v939 = vrot.slane %v920, 4
        %v940 = vsel %vm857, %v932, %v939
        %v942 = vunpack.c.l.s4 1934713408
        %v943 = vunpack.c.0.s8 %v942
        %v944 = vperm.slane %v938, %v943
        %v946 = vunpack.c.l.s4 1934713408
        %v947 = vunpack.c.0.s8 %v946
        %v948 = vperm.slane %v940, %v947
        %v949 = vrot.slane %v936, 4
        %v950 = vsel %vm857, %v949, %v924
        %v951 = vrot.slane %v924, 4
        %v952 = vsel %vm857, %v936, %v951
        %v954 = vunpack.c.l.s4 1934713408
        %v955 = vunpack.c.0.s8 %v954
        %v956 = vperm.slane %v950, %v955
        %v958 = vunpack.c.l.s4 1934713408
        %v959 = vunpack.c.0.s8 %v958
        %v960 = vperm.slane %v952, %v959
        %v961 = vrot.slane %v944, 4
        %v962 = vsel %vm857, 0.0, %v961
        %v963 = vrot.slane %v948, 4
        %v964 = vsel %vm857, 0.0, %v963
        %v965 = vrot.slane %v956, 4
        %v966 = vsel %vm857, 0.0, %v965
        %v967 = vrot.slane %v960, 4
        %v968 = vsel %vm857, 0.0, %v967
        %v969 = vsel %vm857, %v907, %v888
        %v971 = vunpack.c.l.s4 1983009808
        %v972 = vunpack.c.0.s8 %v971
        %v973 = vperm.slane %v969, %v972
        %v974 = vrot.slane %v908, 4
        %v975 = vsel %vm857, %v974, %v906
        %v977 = vunpack.c.l.s4 1983009808
        %v978 = vunpack.c.0.s8 %v977
        %v979 = vperm.slane %v975, %v978
        %v980 = vsel %vm857, %v911, %v900
        %v982 = vunpack.c.l.s4 1983009808
        %v983 = vunpack.c.0.s8 %v982
        %v984 = vperm.slane %v980, %v983
        %v985 = vrot.slane %v912, 4
        %v986 = vsel %vm857, %v985, %v910
        %v988 = vunpack.c.l.s4 1983009808
        %v989 = vunpack.c.0.s8 %v988
        %v990 = vperm.slane %v986, %v989
        %v991 = vrot.slane %v979, 4
        %v992 = vsel %vm857, %v991, %v973
        %v993 = vrot.slane %v973, 4
        %v994 = vsel %vm857, %v979, %v993
        %v996 = vunpack.c.l.s4 1934713408
        %v997 = vunpack.c.0.s8 %v996
        %v998 = vperm.slane %v992, %v997
        %v1000 = vunpack.c.l.s4 1934713408
        %v1001 = vunpack.c.0.s8 %v1000
        %v1002 = vperm.slane %v994, %v1001
        %v1003 = vrot.slane %v990, 4
        %v1004 = vsel %vm857, %v1003, %v984
        %v1005 = vrot.slane %v984, 4
        %v1006 = vsel %vm857, %v990, %v1005
        %v1008 = vunpack.c.l.s4 1934713408
        %v1009 = vunpack.c.0.s8 %v1008
        %v1010 = vperm.slane %v1004, %v1009
        %v1012 = vunpack.c.l.s4 1934713408
        %v1013 = vunpack.c.0.s8 %v1012
        %v1014 = vperm.slane %v1006, %v1013
        %v1015 = vrot.slane %v1010, 4
        %v1016 = vsel %vm857, %v1015, %v998
        %v1017 = vrot.slane %v998, 4
        %v1018 = vsel %vm857, %v1010, %v1017
        %v1019 = vrot.slane %v1014, 4
        %v1020 = vsel %vm857, %v1019, %v1002
        %v1021 = vrot.slane %v1002, 4
        %v1022 = vsel %vm857, %v1014, %v1021
        %v1023 = vsel %vm857, %v963, %v944
        %v1025 = vunpack.c.l.s4 1983009808
        %v1026 = vunpack.c.0.s8 %v1025
        %v1027 = vperm.slane %v1023, %v1026
        %v1028 = vrot.slane %v964, 4
        %v1029 = vsel %vm857, %v1028, %v962
        %v1031 = vunpack.c.l.s4 1983009808
        %v1032 = vunpack.c.0.s8 %v1031
        %v1033 = vperm.slane %v1029, %v1032
        %v1034 = vsel %vm857, %v967, %v956
        %v1036 = vunpack.c.l.s4 1983009808
        %v1037 = vunpack.c.0.s8 %v1036
        %v1038 = vperm.slane %v1034, %v1037
        %v1039 = vrot.slane %v968, 4
        %v1040 = vsel %vm857, %v1039, %v966
        %v1042 = vunpack.c.l.s4 1983009808
        %v1043 = vunpack.c.0.s8 %v1042
        %v1044 = vperm.slane %v1040, %v1043
        %v1045 = vrot.slane %v1033, 4
        %v1046 = vsel %vm857, %v1045, %v1027
        %v1047 = vrot.slane %v1027, 4
        %v1048 = vsel %vm857, %v1033, %v1047
        %v1050 = vunpack.c.l.s4 1934713408
        %v1051 = vunpack.c.0.s8 %v1050
        %v1052 = vperm.slane %v1046, %v1051
        %v1054 = vunpack.c.l.s4 1934713408
        %v1055 = vunpack.c.0.s8 %v1054
        %v1056 = vperm.slane %v1048, %v1055
        %v1057 = vrot.slane %v1044, 4
        %v1058 = vsel %vm857, %v1057, %v1038
        %v1059 = vrot.slane %v1038, 4
        %v1060 = vsel %vm857, %v1044, %v1059
        %v1062 = vunpack.c.l.s4 1934713408
        %v1063 = vunpack.c.0.s8 %v1062
        %v1064 = vperm.slane %v1058, %v1063
        %v1066 = vunpack.c.l.s4 1934713408
        %v1067 = vunpack.c.0.s8 %v1066
        %v1068 = vperm.slane %v1060, %v1067
        %v1069 = vrot.slane %v1064, 4
        %v1070 = vsel %vm857, %v1069, %v1052
        %v1071 = vrot.slane %v1052, 4
        %v1072 = vsel %vm857, %v1064, %v1071
        %v1073 = vrot.slane %v1068, 4
        %v1074 = vsel %vm857, %v1073, %v1056
        %v1075 = vrot.slane %v1056, 4
        %v1076 = vsel %vm857, %v1068, %v1075
        %v1077 = vpack.c.bf16 %v1016, %v1016
        %v1078 = vpack.c.bf16 %v1018, %v1018
        %v1079 = vpack.c.bf16 %v1020, %v1020
        %v1080 = vpack.c.bf16 %v1022, %v1022
        %v1081 = vpack.c.bf16 %v1070, %v1070
        %v1082 = vpack.c.bf16 %v1072, %v1072
        %v1083 = vpack.c.bf16 %v1074, %v1074
        %v1084 = vpack.c.bf16 %v1076, %v1076
        %1085 = vrot.lane.b32.xlu0 %v832, 96
        %v1086 = vpop.permute.xlu0 %1085
        %1087 = vrot.lane.b32.xlu0 %v834, 96
        %v1088 = vpop.permute.xlu0 %1087
        %1089 = vrot.lane.b32.xlu0 %v839, 96
        %v1090 = vpop.permute.xlu0 %1089
        %1091 = vrot.lane.b32.xlu0 %v841, 96
        %v1092 = vpop.permute.xlu0 %1091
        %1093 = vrot.lane.b32.xlu0 %v845, 96
        %v1094 = vpop.permute.xlu0 %1093
        %1095 = vrot.lane.b32.xlu0 %v847, 96
        %v1096 = vpop.permute.xlu0 %1095
        %1097 = vrot.lane.b32.xlu0 %v851, 96
        %v1098 = vpop.permute.xlu0 %1097
        %1099 = vrot.lane.b32.xlu0 %v853, 96
        %v1100 = vpop.permute.xlu0 %1099
        %v1109 = vrot.slane %v1094, 4
        %v1110 = vsel %vm857, %v1109, %v1086
        %v1111 = vrot.slane %v1086, 4
        %v1112 = vsel %vm857, %v1094, %v1111
        %v1114 = vunpack.c.l.s4 1983009808
        %v1115 = vunpack.c.0.s8 %v1114
        %v1116 = vperm.slane %v1110, %v1115
        %v1118 = vunpack.c.l.s4 1983009808
        %v1119 = vunpack.c.0.s8 %v1118
        %v1120 = vperm.slane %v1112, %v1119
        %v1121 = vrot.slane %v1098, 4
        %v1122 = vsel %vm857, %v1121, %v1090
        %v1123 = vrot.slane %v1090, 4
        %v1124 = vsel %vm857, %v1098, %v1123
        %v1126 = vunpack.c.l.s4 1983009808
        %v1127 = vunpack.c.0.s8 %v1126
        %v1128 = vperm.slane %v1122, %v1127
        %v1130 = vunpack.c.l.s4 1983009808
        %v1131 = vunpack.c.0.s8 %v1130
        %v1132 = vperm.slane %v1124, %v1131
        %v1133 = vrot.slane %v1128, 4
        %v1134 = vsel %vm857, %v1133, %v1116
        %v1135 = vrot.slane %v1116, 4
        %v1136 = vsel %vm857, %v1128, %v1135
        %v1138 = vunpack.c.l.s4 1934713408
        %v1139 = vunpack.c.0.s8 %v1138
        %v1140 = vperm.slane %v1134, %v1139
        %v1142 = vunpack.c.l.s4 1934713408
        %v1143 = vunpack.c.0.s8 %v1142
        %v1144 = vperm.slane %v1136, %v1143
        %v1145 = vrot.slane %v1132, 4
        %v1146 = vsel %vm857, %v1145, %v1120
        %v1147 = vrot.slane %v1120, 4
        %v1148 = vsel %vm857, %v1132, %v1147
        %v1150 = vunpack.c.l.s4 1934713408
        %v1151 = vunpack.c.0.s8 %v1150
        %v1152 = vperm.slane %v1146, %v1151
        %v1154 = vunpack.c.l.s4 1934713408
        %v1155 = vunpack.c.0.s8 %v1154
        %v1156 = vperm.slane %v1148, %v1155
        %v1157 = vrot.slane %v1140, 4
        %v1158 = vsel %vm857, 0.0, %v1157
        %v1159 = vrot.slane %v1144, 4
        %v1160 = vsel %vm857, 0.0, %v1159
        %v1161 = vrot.slane %v1152, 4
        %v1162 = vsel %vm857, 0.0, %v1161
        %v1163 = vrot.slane %v1156, 4
        %v1164 = vsel %vm857, 0.0, %v1163
        %v1165 = vrot.slane %v1096, 4
        %v1166 = vsel %vm857, %v1165, %v1088
        %v1167 = vrot.slane %v1088, 4
        %v1168 = vsel %vm857, %v1096, %v1167
        %v1170 = vunpack.c.l.s4 1983009808
        %v1171 = vunpack.c.0.s8 %v1170
        %v1172 = vperm.slane %v1166, %v1171
        %v1174 = vunpack.c.l.s4 1983009808
        %v1175 = vunpack.c.0.s8 %v1174
        %v1176 = vperm.slane %v1168, %v1175
        %v1177 = vrot.slane %v1100, 4
        %v1178 = vsel %vm857, %v1177, %v1092
        %v1179 = vrot.slane %v1092, 4
        %v1180 = vsel %vm857, %v1100, %v1179
        %v1182 = vunpack.c.l.s4 1983009808
        %v1183 = vunpack.c.0.s8 %v1182
        %v1184 = vperm.slane %v1178, %v1183
        %v1186 = vunpack.c.l.s4 1983009808
        %v1187 = vunpack.c.0.s8 %v1186
        %v1188 = vperm.slane %v1180, %v1187
        %v1189 = vrot.slane %v1184, 4
        %v1190 = vsel %vm857, %v1189, %v1172
        %v1191 = vrot.slane %v1172, 4
        %v1192 = vsel %vm857, %v1184, %v1191
        %v1194 = vunpack.c.l.s4 1934713408
        %v1195 = vunpack.c.0.s8 %v1194
        %v1196 = vperm.slane %v1190, %v1195
        %v1198 = vunpack.c.l.s4 1934713408
        %v1199 = vunpack.c.0.s8 %v1198
        %v1200 = vperm.slane %v1192, %v1199
        %v1201 = vrot.slane %v1188, 4
        %v1202 = vsel %vm857, %v1201, %v1176
        %v1203 = vrot.slane %v1176, 4
        %v1204 = vsel %vm857, %v1188, %v1203
        %v1206 = vunpack.c.l.s4 1934713408
        %v1207 = vunpack.c.0.s8 %v1206
        %v1208 = vperm.slane %v1202, %v1207
        %v1210 = vunpack.c.l.s4 1934713408
        %v1211 = vunpack.c.0.s8 %v1210
        %v1212 = vperm.slane %v1204, %v1211
        %v1213 = vrot.slane %v1196, 4
        %v1214 = vsel %vm857, 0.0, %v1213
        %v1215 = vrot.slane %v1200, 4
        %v1216 = vsel %vm857, 0.0, %v1215
        %v1217 = vrot.slane %v1208, 4
        %v1218 = vsel %vm857, 0.0, %v1217
        %v1219 = vrot.slane %v1212, 4
        %v1220 = vsel %vm857, 0.0, %v1219
        %v1221 = vsel %vm857, %v1159, %v1140
        %v1223 = vunpack.c.l.s4 1983009808
        %v1224 = vunpack.c.0.s8 %v1223
        %v1225 = vperm.slane %v1221, %v1224
        %v1226 = vrot.slane %v1160, 4
        %v1227 = vsel %vm857, %v1226, %v1158
        %v1229 = vunpack.c.l.s4 1983009808
        %v1230 = vunpack.c.0.s8 %v1229
        %v1231 = vperm.slane %v1227, %v1230
        %v1232 = vsel %vm857, %v1163, %v1152
        %v1234 = vunpack.c.l.s4 1983009808
        %v1235 = vunpack.c.0.s8 %v1234
        %v1236 = vperm.slane %v1232, %v1235
        %v1237 = vrot.slane %v1164, 4
        %v1238 = vsel %vm857, %v1237, %v1162
        %v1240 = vunpack.c.l.s4 1983009808
        %v1241 = vunpack.c.0.s8 %v1240
        %v1242 = vperm.slane %v1238, %v1241
        %v1243 = vrot.slane %v1231, 4
        %v1244 = vsel %vm857, %v1243, %v1225
        %v1245 = vrot.slane %v1225, 4
        %v1246 = vsel %vm857, %v1231, %v1245
        %v1248 = vunpack.c.l.s4 1934713408
        %v1249 = vunpack.c.0.s8 %v1248
        %v1250 = vperm.slane %v1244, %v1249
        %v1252 = vunpack.c.l.s4 1934713408
        %v1253 = vunpack.c.0.s8 %v1252
        %v1254 = vperm.slane %v1246, %v1253
        %v1255 = vrot.slane %v1242, 4
        %v1256 = vsel %vm857, %v1255, %v1236
        %v1257 = vrot.slane %v1236, 4
        %v1258 = vsel %vm857, %v1242, %v1257
        %v1260 = vunpack.c.l.s4 1934713408
        %v1261 = vunpack.c.0.s8 %v1260
        %v1262 = vperm.slane %v1256, %v1261
        %v1264 = vunpack.c.l.s4 1934713408
        %v1265 = vunpack.c.0.s8 %v1264
        %v1266 = vperm.slane %v1258, %v1265
        %v1267 = vrot.slane %v1262, 4
        %v1268 = vsel %vm857, %v1267, %v1250
        %v1269 = vrot.slane %v1250, 4
        %v1270 = vsel %vm857, %v1262, %v1269
        %v1271 = vrot.slane %v1266, 4
        %v1272 = vsel %vm857, %v1271, %v1254
        %v1273 = vrot.slane %v1254, 4
        %v1274 = vsel %vm857, %v1266, %v1273
        %v1275 = vsel %vm857, %v1215, %v1196
        %v1277 = vunpack.c.l.s4 1983009808
        %v1278 = vunpack.c.0.s8 %v1277
        %v1279 = vperm.slane %v1275, %v1278
        %v1280 = vrot.slane %v1216, 4
        %v1281 = vsel %vm857, %v1280, %v1214
        %v1283 = vunpack.c.l.s4 1983009808
        %v1284 = vunpack.c.0.s8 %v1283
        %v1285 = vperm.slane %v1281, %v1284
        %v1286 = vsel %vm857, %v1219, %v1208
        %v1288 = vunpack.c.l.s4 1983009808
        %v1289 = vunpack.c.0.s8 %v1288
        %v1290 = vperm.slane %v1286, %v1289
        %v1291 = vrot.slane %v1220, 4
        %v1292 = vsel %vm857, %v1291, %v1218
        %v1294 = vunpack.c.l.s4 1983009808
        %v1295 = vunpack.c.0.s8 %v1294
        %v1296 = vperm.slane %v1292, %v1295
        %v1297 = vrot.slane %v1285, 4
        %v1298 = vsel %vm857, %v1297, %v1279
        %v1299 = vrot.slane %v1279, 4
        %v1300 = vsel %vm857, %v1285, %v1299
        %v1302 = vunpack.c.l.s4 1934713408
        %v1303 = vunpack.c.0.s8 %v1302
        %v1304 = vperm.slane %v1298, %v1303
        %v1306 = vunpack.c.l.s4 1934713408
        %v1307 = vunpack.c.0.s8 %v1306
        %v1308 = vperm.slane %v1300, %v1307
        %v1309 = vrot.slane %v1296, 4
        %v1310 = vsel %vm857, %v1309, %v1290
        %v1311 = vrot.slane %v1290, 4
        %v1312 = vsel %vm857, %v1296, %v1311
        %v1314 = vunpack.c.l.s4 1934713408
        %v1315 = vunpack.c.0.s8 %v1314
        %v1316 = vperm.slane %v1310, %v1315
        %v1318 = vunpack.c.l.s4 1934713408
        %v1319 = vunpack.c.0.s8 %v1318
        %v1320 = vperm.slane %v1312, %v1319
        %v1321 = vrot.slane %v1316, 4
        %v1322 = vsel %vm857, %v1321, %v1304
        %v1323 = vrot.slane %v1304, 4
        %v1324 = vsel %vm857, %v1316, %v1323
        %v1325 = vrot.slane %v1320, 4
        %v1326 = vsel %vm857, %v1325, %v1308
        %v1327 = vrot.slane %v1308, 4
        %v1328 = vsel %vm857, %v1320, %v1327
        %v1329 = vpack.c.bf16 %v1268, %v1268
        %v1330 = vpack.c.bf16 %v1270, %v1270
        %v1331 = vpack.c.bf16 %v1272, %v1272
        %v1332 = vpack.c.bf16 %v1274, %v1274
        %v1333 = vpack.c.bf16 %v1322, %v1322
        %v1334 = vpack.c.bf16 %v1324, %v1324
        %v1335 = vpack.c.bf16 %v1326, %v1326
        %v1336 = vpack.c.bf16 %v1328, %v1328
        %1337 = vrot.lane.b32.xlu0 %v832, 64
        %v1338 = vpop.permute.xlu0 %1337
        %1339 = vrot.lane.b32.xlu0 %v834, 64
        %v1340 = vpop.permute.xlu0 %1339
        %1341 = vrot.lane.b32.xlu0 %v839, 64
        %v1342 = vpop.permute.xlu0 %1341
        %1343 = vrot.lane.b32.xlu0 %v841, 64
        %v1344 = vpop.permute.xlu0 %1343
        %1345 = vrot.lane.b32.xlu0 %v845, 64
        %v1346 = vpop.permute.xlu0 %1345
        %1347 = vrot.lane.b32.xlu0 %v847, 64
        %v1348 = vpop.permute.xlu0 %1347
        %1349 = vrot.lane.b32.xlu0 %v851, 64
        %v1350 = vpop.permute.xlu0 %1349
        %1351 = vrot.lane.b32.xlu0 %v853, 64
        %v1352 = vpop.permute.xlu0 %1351
        %v1361 = vrot.slane %v1346, 4
        %v1362 = vsel %vm857, %v1361, %v1338
        %v1363 = vrot.slane %v1338, 4
        %v1364 = vsel %vm857, %v1346, %v1363
        %v1366 = vunpack.c.l.s4 1983009808
        %v1367 = vunpack.c.0.s8 %v1366
        %v1368 = vperm.slane %v1362, %v1367
        %v1370 = vunpack.c.l.s4 1983009808
        %v1371 = vunpack.c.0.s8 %v1370
        %v1372 = vperm.slane %v1364, %v1371
        %v1373 = vrot.slane %v1350, 4
        %v1374 = vsel %vm857, %v1373, %v1342
        %v1375 = vrot.slane %v1342, 4
        %v1376 = vsel %vm857, %v1350, %v1375
        %v1378 = vunpack.c.l.s4 1983009808
        %v1379 = vunpack.c.0.s8 %v1378
        %v1380 = vperm.slane %v1374, %v1379
        %v1382 = vunpack.c.l.s4 1983009808
        %v1383 = vunpack.c.0.s8 %v1382
        %v1384 = vperm.slane %v1376, %v1383
        %v1385 = vrot.slane %v1380, 4
        %v1386 = vsel %vm857, %v1385, %v1368
        %v1387 = vrot.slane %v1368, 4
        %v1388 = vsel %vm857, %v1380, %v1387
        %v1390 = vunpack.c.l.s4 1934713408
        %v1391 = vunpack.c.0.s8 %v1390
        %v1392 = vperm.slane %v1386, %v1391
        %v1394 = vunpack.c.l.s4 1934713408
        %v1395 = vunpack.c.0.s8 %v1394
        %v1396 = vperm.slane %v1388, %v1395
        %v1397 = vrot.slane %v1384, 4
        %v1398 = vsel %vm857, %v1397, %v1372
        %v1399 = vrot.slane %v1372, 4
        %v1400 = vsel %vm857, %v1384, %v1399
        %v1402 = vunpack.c.l.s4 1934713408
        %v1403 = vunpack.c.0.s8 %v1402
        %v1404 = vperm.slane %v1398, %v1403
        %v1406 = vunpack.c.l.s4 1934713408
        %v1407 = vunpack.c.0.s8 %v1406
        %v1408 = vperm.slane %v1400, %v1407
        %v1409 = vrot.slane %v1392, 4
        %v1410 = vsel %vm857, 0.0, %v1409
        %v1411 = vrot.slane %v1396, 4
        %v1412 = vsel %vm857, 0.0, %v1411
        %v1413 = vrot.slane %v1404, 4
        %v1414 = vsel %vm857, 0.0, %v1413
        %v1415 = vrot.slane %v1408, 4
        %v1416 = vsel %vm857, 0.0, %v1415
        %v1417 = vrot.slane %v1348, 4
        %v1418 = vsel %vm857, %v1417, %v1340
        %v1419 = vrot.slane %v1340, 4
        %v1420 = vsel %vm857, %v1348, %v1419
        %v1422 = vunpack.c.l.s4 1983009808
        %v1423 = vunpack.c.0.s8 %v1422
        %v1424 = vperm.slane %v1418, %v1423
        %v1426 = vunpack.c.l.s4 1983009808
        %v1427 = vunpack.c.0.s8 %v1426
        %v1428 = vperm.slane %v1420, %v1427
        %v1429 = vrot.slane %v1352, 4
        %v1430 = vsel %vm857, %v1429, %v1344
        %v1431 = vrot.slane %v1344, 4
        %v1432 = vsel %vm857, %v1352, %v1431
        %v1434 = vunpack.c.l.s4 1983009808
        %v1435 = vunpack.c.0.s8 %v1434
        %v1436 = vperm.slane %v1430, %v1435
        %v1438 = vunpack.c.l.s4 1983009808
        %v1439 = vunpack.c.0.s8 %v1438
        %v1440 = vperm.slane %v1432, %v1439
        %v1441 = vrot.slane %v1436, 4
        %v1442 = vsel %vm857, %v1441, %v1424
        %v1443 = vrot.slane %v1424, 4
        %v1444 = vsel %vm857, %v1436, %v1443
        %v1446 = vunpack.c.l.s4 1934713408
        %v1447 = vunpack.c.0.s8 %v1446
        %v1448 = vperm.slane %v1442, %v1447
        %v1450 = vunpack.c.l.s4 1934713408
        %v1451 = vunpack.c.0.s8 %v1450
        %v1452 = vperm.slane %v1444, %v1451
        %v1453 = vrot.slane %v1440, 4
        %v1454 = vsel %vm857, %v1453, %v1428
        %v1455 = vrot.slane %v1428, 4
        %v1456 = vsel %vm857, %v1440, %v1455
        %v1458 = vunpack.c.l.s4 1934713408
        %v1459 = vunpack.c.0.s8 %v1458
        %v1460 = vperm.slane %v1454, %v1459
        %v1462 = vunpack.c.l.s4 1934713408
        %v1463 = vunpack.c.0.s8 %v1462
        %v1464 = vperm.slane %v1456, %v1463
        %v1465 = vrot.slane %v1448, 4
        %v1466 = vsel %vm857, 0.0, %v1465
        %v1467 = vrot.slane %v1452, 4
        %v1468 = vsel %vm857, 0.0, %v1467
        %v1469 = vrot.slane %v1460, 4
        %v1470 = vsel %vm857, 0.0, %v1469
        %v1471 = vrot.slane %v1464, 4
        %v1472 = vsel %vm857, 0.0, %v1471
        %v1473 = vsel %vm857, %v1411, %v1392
        %v1475 = vunpack.c.l.s4 1983009808
        %v1476 = vunpack.c.0.s8 %v1475
        %v1477 = vperm.slane %v1473, %v1476
        %v1478 = vrot.slane %v1412, 4
        %v1479 = vsel %vm857, %v1478, %v1410
        %v1481 = vunpack.c.l.s4 1983009808
        %v1482 = vunpack.c.0.s8 %v1481
        %v1483 = vperm.slane %v1479, %v1482
        %v1484 = vsel %vm857, %v1415, %v1404
        %v1486 = vunpack.c.l.s4 1983009808
        %v1487 = vunpack.c.0.s8 %v1486
        %v1488 = vperm.slane %v1484, %v1487
        %v1489 = vrot.slane %v1416, 4
        %v1490 = vsel %vm857, %v1489, %v1414
        %v1492 = vunpack.c.l.s4 1983009808
        %v1493 = vunpack.c.0.s8 %v1492
        %v1494 = vperm.slane %v1490, %v1493
        %v1495 = vrot.slane %v1483, 4
        %v1496 = vsel %vm857, %v1495, %v1477
        %v1497 = vrot.slane %v1477, 4
        %v1498 = vsel %vm857, %v1483, %v1497
        %v1500 = vunpack.c.l.s4 1934713408
        %v1501 = vunpack.c.0.s8 %v1500
        %v1502 = vperm.slane %v1496, %v1501
        %v1504 = vunpack.c.l.s4 1934713408
        %v1505 = vunpack.c.0.s8 %v1504
        %v1506 = vperm.slane %v1498, %v1505
        %v1507 = vrot.slane %v1494, 4
        %v1508 = vsel %vm857, %v1507, %v1488
        %v1509 = vrot.slane %v1488, 4
        %v1510 = vsel %vm857, %v1494, %v1509
        %v1512 = vunpack.c.l.s4 1934713408
        %v1513 = vunpack.c.0.s8 %v1512
        %v1514 = vperm.slane %v1508, %v1513
        %v1516 = vunpack.c.l.s4 1934713408
        %v1517 = vunpack.c.0.s8 %v1516
        %v1518 = vperm.slane %v1510, %v1517
        %v1519 = vrot.slane %v1514, 4
        %v1520 = vsel %vm857, %v1519, %v1502
        %v1521 = vrot.slane %v1502, 4
        %v1522 = vsel %vm857, %v1514, %v1521
        %v1523 = vrot.slane %v1518, 4
        %v1524 = vsel %vm857, %v1523, %v1506
        %v1525 = vrot.slane %v1506, 4
        %v1526 = vsel %vm857, %v1518, %v1525
        %v1527 = vsel %vm857, %v1467, %v1448
        %v1529 = vunpack.c.l.s4 1983009808
        %v1530 = vunpack.c.0.s8 %v1529
        %v1531 = vperm.slane %v1527, %v1530
        %v1532 = vrot.slane %v1468, 4
        %v1533 = vsel %vm857, %v1532, %v1466
        %v1535 = vunpack.c.l.s4 1983009808
        %v1536 = vunpack.c.0.s8 %v1535
        %v1537 = vperm.slane %v1533, %v1536
        %v1538 = vsel %vm857, %v1471, %v1460
        %v1540 = vunpack.c.l.s4 1983009808
        %v1541 = vunpack.c.0.s8 %v1540
        %v1542 = vperm.slane %v1538, %v1541
        %v1543 = vrot.slane %v1472, 4
        %v1544 = vsel %vm857, %v1543, %v1470
        %v1546 = vunpack.c.l.s4 1983009808
        %v1547 = vunpack.c.0.s8 %v1546
        %v1548 = vperm.slane %v1544, %v1547
        %v1549 = vrot.slane %v1537, 4
        %v1550 = vsel %vm857, %v1549, %v1531
        %v1551 = vrot.slane %v1531, 4
        %v1552 = vsel %vm857, %v1537, %v1551
        %v1554 = vunpack.c.l.s4 1934713408
        %v1555 = vunpack.c.0.s8 %v1554
        %v1556 = vperm.slane %v1550, %v1555
        %v1558 = vunpack.c.l.s4 1934713408
        %v1559 = vunpack.c.0.s8 %v1558
        %v1560 = vperm.slane %v1552, %v1559
        %v1561 = vrot.slane %v1548, 4
        %v1562 = vsel %vm857, %v1561, %v1542
        %v1563 = vrot.slane %v1542, 4
        %v1564 = vsel %vm857, %v1548, %v1563
        %v1566 = vunpack.c.l.s4 1934713408
        %v1567 = vunpack.c.0.s8 %v1566
        %v1568 = vperm.slane %v1562, %v1567
        %v1570 = vunpack.c.l.s4 1934713408
        %v1571 = vunpack.c.0.s8 %v1570
        %v1572 = vperm.slane %v1564, %v1571
        %v1573 = vrot.slane %v1568, 4
        %v1574 = vsel %vm857, %v1573, %v1556
        %v1575 = vrot.slane %v1556, 4
        %v1576 = vsel %vm857, %v1568, %v1575
        %v1577 = vrot.slane %v1572, 4
        %v1578 = vsel %vm857, %v1577, %v1560
        %v1579 = vrot.slane %v1560, 4
        %v1580 = vsel %vm857, %v1572, %v1579
        %v1581 = vpack.c.bf16 %v1520, %v1520
        %v1582 = vpack.c.bf16 %v1522, %v1522
        %v1583 = vpack.c.bf16 %v1524, %v1524
        %v1584 = vpack.c.bf16 %v1526, %v1526
        %v1585 = vpack.c.bf16 %v1574, %v1574
        %v1586 = vpack.c.bf16 %v1576, %v1576
        %v1587 = vpack.c.bf16 %v1578, %v1578
        %v1588 = vpack.c.bf16 %v1580, %v1580
        %vm1589 = vcmask 64512
        %v1591 = vsel %vm1589, %v1077, 0
        %v1594 = vsel %vm1589, %v1329, 0
        %1596 = vmatpush.bf16.xpose.msra.mxu0 0
        %1597 = vmatpush.bf16.xpose.msra.mxu0 0
        %1598 = vmatpush.bf16.xpose.msra.mxu0 0
        %1599 = vmatpush.bf16.xpose.msra.mxu0 0
        %1600 = vmatpush.bf16.xpose.msra.mxu0 0
        %1601 = vmatpush.bf16.xpose.msra.mxu0 0
        %1602 = vmatpush.bf16.xpose.msra.mxu0 0
        %1603 = vmatpush.bf16.xpose.msra.mxu0 %v1594
        %1604 = vmatmul.bf16.gmra.mxu0 %v1591
        %v1605 = vpop.f32.mrf.mxu0
        %v1606 = vadd.f32 0.0, %v1605
        %v1607 = vpop.f32.mrf.mxu0
        %1608 = vdwg.mxu0
        %v1610 = vsel %vm1589, %v1078, 0
        %v1613 = vsel %vm1589, %v1330, 0
        %1615 = vmatpush.bf16.xpose.msra.mxu0 0
        %1616 = vmatpush.bf16.xpose.msra.mxu0 0
        %1617 = vmatpush.bf16.xpose.msra.mxu0 0
        %1618 = vmatpush.bf16.xpose.msra.mxu0 0
        %1619 = vmatpush.bf16.xpose.msra.mxu0 0
        %1620 = vmatpush.bf16.xpose.msra.mxu0 0
        %1621 = vmatpush.bf16.xpose.msra.mxu0 0
        %1622 = vmatpush.bf16.xpose.msra.mxu0 %v1613
        %1623 = vmatmul.bf16.gmra.mxu0 %v1610
        %v1624 = vpop.f32.mrf.mxu0
        %v1625 = vadd.f32 0.0, %v1624
        %v1626 = vpop.f32.mrf.mxu0
        %1627 = vdwg.mxu0
        %v1629 = vsel %vm1589, %v1079, 0
        %v1632 = vsel %vm1589, %v1331, 0
        %1634 = vmatpush.bf16.xpose.msra.mxu0 0
        %1635 = vmatpush.bf16.xpose.msra.mxu0 0
        %1636 = vmatpush.bf16.xpose.msra.mxu0 0
        %1637 = vmatpush.bf16.xpose.msra.mxu0 0
        %1638 = vmatpush.bf16.xpose.msra.mxu0 0
        %1639 = vmatpush.bf16.xpose.msra.mxu0 0
        %1640 = vmatpush.bf16.xpose.msra.mxu0 0
        %1641 = vmatpush.bf16.xpose.msra.mxu0 %v1632
        %1642 = vmatmul.bf16.gmra.mxu0 %v1629
        %v1643 = vpop.f32.mrf.mxu0
        %v1644 = vadd.f32 0.0, %v1643
        %v1645 = vpop.f32.mrf.mxu0
        %1646 = vdwg.mxu0
        %v1648 = vsel %vm1589, %v1080, 0
        %v1651 = vsel %vm1589, %v1332, 0
        %1653 = vmatpush.bf16.xpose.msra.mxu0 0
        %1654 = vmatpush.bf16.xpose.msra.mxu0 0
        %1655 = vmatpush.bf16.xpose.msra.mxu0 0
        %1656 = vmatpush.bf16.xpose.msra.mxu0 0
        %1657 = vmatpush.bf16.xpose.msra.mxu0 0
        %1658 = vmatpush.bf16.xpose.msra.mxu0 0
        %1659 = vmatpush.bf16.xpose.msra.mxu0 0
        %1660 = vmatpush.bf16.xpose.msra.mxu0 %v1651
        %1661 = vmatmul.bf16.gmra.mxu0 %v1648
        %v1662 = vpop.f32.mrf.mxu0
        %v1663 = vadd.f32 0.0, %v1662
        %v1664 = vpop.f32.mrf.mxu0
        %1665 = vdwg.mxu0
        %v1667 = vsel %vm1589, %v1081, 0
        %v1670 = vsel %vm1589, %v1333, 0
        %1672 = vmatpush.bf16.xpose.msra.mxu0 0
        %1673 = vmatpush.bf16.xpose.msra.mxu0 0
        %1674 = vmatpush.bf16.xpose.msra.mxu0 0
        %1675 = vmatpush.bf16.xpose.msra.mxu0 0
        %1676 = vmatpush.bf16.xpose.msra.mxu0 0
        %1677 = vmatpush.bf16.xpose.msra.mxu0 0
        %1678 = vmatpush.bf16.xpose.msra.mxu0 0
        %1679 = vmatpush.bf16.xpose.msra.mxu0 %v1670
        %1680 = vmatmul.bf16.gmra.mxu0 %v1667
        %v1681 = vpop.f32.mrf.mxu0
        %v1682 = vadd.f32 0.0, %v1681
        %v1683 = vpop.f32.mrf.mxu0
        %1684 = vdwg.mxu0
        %v1686 = vsel %vm1589, %v1082, 0
        %v1689 = vsel %vm1589, %v1334, 0
        %1691 = vmatpush.bf16.xpose.msra.mxu0 0
        %1692 = vmatpush.bf16.xpose.msra.mxu0 0
        %1693 = vmatpush.bf16.xpose.msra.mxu0 0
        %1694 = vmatpush.bf16.xpose.msra.mxu0 0
        %1695 = vmatpush.bf16.xpose.msra.mxu0 0
        %1696 = vmatpush.bf16.xpose.msra.mxu0 0
        %1697 = vmatpush.bf16.xpose.msra.mxu0 0
        %1698 = vmatpush.bf16.xpose.msra.mxu0 %v1689
        %1699 = vmatmul.bf16.gmra.mxu0 %v1686
        %v1700 = vpop.f32.mrf.mxu0
        %v1701 = vadd.f32 0.0, %v1700
        %v1702 = vpop.f32.mrf.mxu0
        %1703 = vdwg.mxu0
        %v1705 = vsel %vm1589, %v1083, 0
        %v1708 = vsel %vm1589, %v1335, 0
        %1710 = vmatpush.bf16.xpose.msra.mxu0 0
        %1711 = vmatpush.bf16.xpose.msra.mxu0 0
        %1712 = vmatpush.bf16.xpose.msra.mxu0 0
        %1713 = vmatpush.bf16.xpose.msra.mxu0 0
        %1714 = vmatpush.bf16.xpose.msra.mxu0 0
        %1715 = vmatpush.bf16.xpose.msra.mxu0 0
        %1716 = vmatpush.bf16.xpose.msra.mxu0 0
        %1717 = vmatpush.bf16.xpose.msra.mxu0 %v1708
        %1718 = vmatmul.bf16.gmra.mxu0 %v1705
        %v1719 = vpop.f32.mrf.mxu0
        %v1720 = vadd.f32 0.0, %v1719
        %v1721 = vpop.f32.mrf.mxu0
        %1722 = vdwg.mxu0
        %v1724 = vsel %vm1589, %v1084, 0
        %v1727 = vsel %vm1589, %v1336, 0
        %1729 = vmatpush.bf16.xpose.msra.mxu0 0
        %1730 = vmatpush.bf16.xpose.msra.mxu0 0
        %1731 = vmatpush.bf16.xpose.msra.mxu0 0
        %1732 = vmatpush.bf16.xpose.msra.mxu0 0
        %1733 = vmatpush.bf16.xpose.msra.mxu0 0
        %1734 = vmatpush.bf16.xpose.msra.mxu0 0
        %1735 = vmatpush.bf16.xpose.msra.mxu0 0
        %1736 = vmatpush.bf16.xpose.msra.mxu0 %v1727
        %1737 = vmatmul.bf16.gmra.mxu0 %v1724
        %v1738 = vpop.f32.mrf.mxu0
        %v1739 = vadd.f32 0.0, %v1738
        %v1740 = vpop.f32.mrf.mxu0
        %1741 = vdwg.mxu0
        %v1742 = vmul.f32 %v1606, 0.35355338
        %v1743 = vmul.f32 %v1625, 0.35355338
        %v1744 = vmul.f32 %v1644, 0.35355338
        %v1745 = vmul.f32 %v1663, 0.35355338
        %v1746 = vmul.f32 %v1682, 0.35355338
        %v1747 = vmul.f32 %v1701, 0.35355338
        %v1748 = vmul.f32 %v1720, 0.35355338
        %v1749 = vmul.f32 %v1739, 0.35355338
        %v1750 = vadd.f32 %v1742, %v794
        %v1751 = vadd.f32 %v1743, %v794
        %v1752 = vadd.f32 %v1744, %v794
        %v1753 = vadd.f32 %v1745, %v794
        %v1754 = vadd.f32 %v1746, %v795
        %v1755 = vadd.f32 %v1747, %v795
        %v1756 = vadd.f32 %v1748, %v795
        %v1757 = vadd.f32 %v1749, %v795
        %v1758 = vsel %vm1589, %v1750, -inf
        %1759 = vmax.xlane.f32.xlu0 %v1758
        %v1760 = vpop.xlane.xlu0 %1759
        %v1761 = vsel %vm1589, %v1751, -inf
        %1762 = vmax.xlane.f32.xlu0 %v1761
        %v1763 = vpop.xlane.xlu0 %1762
        %v1764 = vsel %vm1589, %v1752, -inf
        %1765 = vmax.xlane.f32.xlu0 %v1764
        %v1766 = vpop.xlane.xlu0 %1765
        %v1767 = vsel %vm1589, %v1753, -inf
        %1768 = vmax.xlane.f32.xlu0 %v1767
        %v1769 = vpop.xlane.xlu0 %1768
        %v1770 = vsel %vm1589, %v1754, -inf
        %1771 = vmax.xlane.f32.xlu0 %v1770
        %v1772 = vpop.xlane.xlu0 %1771
        %v1773 = vsel %vm1589, %v1755, -inf
        %1774 = vmax.xlane.f32.xlu0 %v1773
        %v1775 = vpop.xlane.xlu0 %1774
        %v1776 = vsel %vm1589, %v1756, -inf
        %1777 = vmax.xlane.f32.xlu0 %v1776
        %v1778 = vpop.xlane.xlu0 %1777
        %v1779 = vsel %vm1589, %v1757, -inf
        %1780 = vmax.xlane.f32.xlu0 %v1779
        %v1781 = vpop.xlane.xlu0 %1780
        %v1782 = vsub.f32 %v1750, %v1760
        %v1783 = vsub.f32 %v1751, %v1763
        %v1784 = vsub.f32 %v1752, %v1766
        %v1785 = vsub.f32 %v1753, %v1769
        %v1786 = vsub.f32 %v1754, %v1772
        %v1787 = vsub.f32 %v1755, %v1775
        %v1788 = vsub.f32 %v1756, %v1778
        %v1789 = vsub.f32 %v1757, %v1781
        %v1790 = vmul.f32 %v1782, 1.442695
        %v1791 = vpow.pop %v1790
        %v1792 = vmul.f32 %v1783, 1.442695
        %v1793 = vpow.pop %v1792
        %v1794 = vmul.f32 %v1784, 1.442695
        %v1795 = vpow.pop %v1794
        %v1796 = vmul.f32 %v1785, 1.442695
        %v1797 = vpow.pop %v1796
        %v1798 = vmul.f32 %v1786, 1.442695
        %v1799 = vpow.pop %v1798
        %v1800 = vmul.f32 %v1787, 1.442695
        %v1801 = vpow.pop %v1800
        %v1802 = vmul.f32 %v1788, 1.442695
        %v1803 = vpow.pop %v1802
        %v1804 = vmul.f32 %v1789, 1.442695
        %v1805 = vpow.pop %v1804
        %v1806 = vsel %vm1589, %v1791, 0.0
        %1807 = vadd.xlane.f32.xlu0 %v1806
        %v1808 = vpop.xlane.xlu0 %1807
        %v1809 = vsel %vm1589, %v1793, 0.0
        %1810 = vadd.xlane.f32.xlu0 %v1809
        %v1811 = vpop.xlane.xlu0 %1810
        %v1812 = vsel %vm1589, %v1795, 0.0
        %1813 = vadd.xlane.f32.xlu0 %v1812
        %v1814 = vpop.xlane.xlu0 %1813
        %v1815 = vsel %vm1589, %v1797, 0.0
        %1816 = vadd.xlane.f32.xlu0 %v1815
        %v1817 = vpop.xlane.xlu0 %1816
        %v1818 = vsel %vm1589, %v1799, 0.0
        %1819 = vadd.xlane.f32.xlu0 %v1818
        %v1820 = vpop.xlane.xlu0 %1819
        %v1821 = vsel %vm1589, %v1801, 0.0
        %1822 = vadd.xlane.f32.xlu0 %v1821
        %v1823 = vpop.xlane.xlu0 %1822
        %v1824 = vsel %vm1589, %v1803, 0.0
        %1825 = vadd.xlane.f32.xlu0 %v1824
        %v1826 = vpop.xlane.xlu0 %1825
        %v1827 = vsel %vm1589, %v1805, 0.0
        %1828 = vadd.xlane.f32.xlu0 %v1827
        %v1829 = vpop.xlane.xlu0 %1828
        %v1830 = vrcp.pop %v1808
        %v1831 = vrcp.pop %v1811
        %v1832 = vrcp.pop %v1814
        %v1833 = vrcp.pop %v1817
        %v1834 = vrcp.pop %v1820
        %v1835 = vrcp.pop %v1823
        %v1836 = vrcp.pop %v1826
        %v1837 = vrcp.pop %v1829
        %v1838 = vmul.f32 %v1791, %v1830
        %v1839 = vmul.f32 %v1793, %v1831
        %v1840 = vmul.f32 %v1795, %v1832
        %v1841 = vmul.f32 %v1797, %v1833
        %v1842 = vmul.f32 %v1799, %v1834
        %v1843 = vmul.f32 %v1801, %v1835
        %v1844 = vmul.f32 %v1803, %v1836
        %v1845 = vmul.f32 %v1805, %v1837
        %v1846 = vpack.c.bf16 %v1838, %v1838
        %v1847 = vpack.c.bf16 %v1839, %v1839
        %v1848 = vpack.c.bf16 %v1840, %v1840
        %v1849 = vpack.c.bf16 %v1841, %v1841
        %v1850 = vpack.c.bf16 %v1842, %v1842
        %v1851 = vpack.c.bf16 %v1843, %v1843
        %v1852 = vpack.c.bf16 %v1844, %v1844
        %v1853 = vpack.c.bf16 %v1845, %v1845
        %v1855 = vsel %vm1589, %v1846, 0
        %vm1857 = vcmask 1043456
        %v1859 = vsel %vm1857, %v1581, 0
        %1861 = vmatpush.bf16.msra.mxu0 0
        %1862 = vmatpush.bf16.msra.mxu0 0
        %1863 = vmatpush.bf16.msra.mxu0 0
        %1864 = vmatpush.bf16.msra.mxu0 0
        %1865 = vmatpush.bf16.msra.mxu0 0
        %1866 = vmatpush.bf16.msra.mxu0 0
        %1867 = vmatpush.bf16.msra.mxu0 0
        %1868 = vmatpush.bf16.msra.mxu0 %v1859
        %1869 = vmatmul.bf16.gmra.mxu0 %v1855
        %v1870 = vpop.f32.mrf.mxu0
        %v1871 = vadd.f32 0.0, %v1870
        %v1872 = vpop.f32.mrf.mxu0
        %1873 = vdwg.mxu0
        %v1875 = vsel %vm1589, %v1847, 0
        %v1878 = vsel %vm1857, %v1582, 0
        %1880 = vmatpush.bf16.msra.mxu0 0
        %1881 = vmatpush.bf16.msra.mxu0 0
        %1882 = vmatpush.bf16.msra.mxu0 0
        %1883 = vmatpush.bf16.msra.mxu0 0
        %1884 = vmatpush.bf16.msra.mxu0 0
        %1885 = vmatpush.bf16.msra.mxu0 0
        %1886 = vmatpush.bf16.msra.mxu0 0
        %1887 = vmatpush.bf16.msra.mxu0 %v1878
        %1888 = vmatmul.bf16.gmra.mxu0 %v1875
        %v1889 = vpop.f32.mrf.mxu0
        %v1890 = vadd.f32 0.0, %v1889
        %v1891 = vpop.f32.mrf.mxu0
        %1892 = vdwg.mxu0
        %v1894 = vsel %vm1589, %v1848, 0
        %v1897 = vsel %vm1857, %v1583, 0
        %1899 = vmatpush.bf16.msra.mxu0 0
        %1900 = vmatpush.bf16.msra.mxu0 0
        %1901 = vmatpush.bf16.msra.mxu0 0
        %1902 = vmatpush.bf16.msra.mxu0 0
        %1903 = vmatpush.bf16.msra.mxu0 0
        %1904 = vmatpush.bf16.msra.mxu0 0
        %1905 = vmatpush.bf16.msra.mxu0 0
        %1906 = vmatpush.bf16.msra.mxu0 %v1897
        %1907 = vmatmul.bf16.gmra.mxu0 %v1894
        %v1908 = vpop.f32.mrf.mxu0
        %v1909 = vadd.f32 0.0, %v1908
        %v1910 = vpop.f32.mrf.mxu0
        %1911 = vdwg.mxu0
        %v1913 = vsel %vm1589, %v1849, 0
        %v1916 = vsel %vm1857, %v1584, 0
        %1918 = vmatpush.bf16.msra.mxu0 0
        %1919 = vmatpush.bf16.msra.mxu0 0
        %1920 = vmatpush.bf16.msra.mxu0 0
        %1921 = vmatpush.bf16.msra.mxu0 0
        %1922 = vmatpush.bf16.msra.mxu0 0
        %1923 = vmatpush.bf16.msra.mxu0 0
        %1924 = vmatpush.bf16.msra.mxu0 0
        %1925 = vmatpush.bf16.msra.mxu0 %v1916
        %1926 = vmatmul.bf16.gmra.mxu0 %v1913
        %v1927 = vpop.f32.mrf.mxu0
        %v1928 = vadd.f32 0.0, %v1927
        %v1929 = vpop.f32.mrf.mxu0
        %1930 = vdwg.mxu0
        %v1932 = vsel %vm1589, %v1850, 0
        %v1935 = vsel %vm1857, %v1585, 0
        %1937 = vmatpush.bf16.msra.mxu0 0
        %1938 = vmatpush.bf16.msra.mxu0 0
        %1939 = vmatpush.bf16.msra.mxu0 0
        %1940 = vmatpush.bf16.msra.mxu0 0
        %1941 = vmatpush.bf16.msra.mxu0 0
        %1942 = vmatpush.bf16.msra.mxu0 0
        %1943 = vmatpush.bf16.msra.mxu0 0
        %1944 = vmatpush.bf16.msra.mxu0 %v1935
        %1945 = vmatmul.bf16.gmra.mxu0 %v1932
        %v1946 = vpop.f32.mrf.mxu0
        %v1947 = vadd.f32 0.0, %v1946
        %v1948 = vpop.f32.mrf.mxu0
        %1949 = vdwg.mxu0
        %v1951 = vsel %vm1589, %v1851, 0
        %v1954 = vsel %vm1857, %v1586, 0
        %1956 = vmatpush.bf16.msra.mxu0 0
        %1957 = vmatpush.bf16.msra.mxu0 0
        %1958 = vmatpush.bf16.msra.mxu0 0
        %1959 = vmatpush.bf16.msra.mxu0 0
        %1960 = vmatpush.bf16.msra.mxu0 0
        %1961 = vmatpush.bf16.msra.mxu0 0
        %1962 = vmatpush.bf16.msra.mxu0 0
        %1963 = vmatpush.bf16.msra.mxu0 %v1954
        %1964 = vmatmul.bf16.gmra.mxu0 %v1951
        %v1965 = vpop.f32.mrf.mxu0
        %v1966 = vadd.f32 0.0, %v1965
        %v1967 = vpop.f32.mrf.mxu0
        %1968 = vdwg.mxu0
        %v1970 = vsel %vm1589, %v1852, 0
        %v1973 = vsel %vm1857, %v1587, 0
        %1975 = vmatpush.bf16.msra.mxu0 0
        %1976 = vmatpush.bf16.msra.mxu0 0
        %1977 = vmatpush.bf16.msra.mxu0 0
        %1978 = vmatpush.bf16.msra.mxu0 0
        %1979 = vmatpush.bf16.msra.mxu0 0
        %1980 = vmatpush.bf16.msra.mxu0 0
        %1981 = vmatpush.bf16.msra.mxu0 0
        %1982 = vmatpush.bf16.msra.mxu0 %v1973
        %1983 = vmatmul.bf16.gmra.mxu0 %v1970
        %v1984 = vpop.f32.mrf.mxu0
        %v1985 = vadd.f32 0.0, %v1984
        %v1986 = vpop.f32.mrf.mxu0
        %1987 = vdwg.mxu0
        %v1989 = vsel %vm1589, %v1853, 0
        %v1992 = vsel %vm1857, %v1588, 0
        %1994 = vmatpush.bf16.msra.mxu0 0
        %1995 = vmatpush.bf16.msra.mxu0 0
        %1996 = vmatpush.bf16.msra.mxu0 0
        %1997 = vmatpush.bf16.msra.mxu0 0
        %1998 = vmatpush.bf16.msra.mxu0 0
        %1999 = vmatpush.bf16.msra.mxu0 0
        %2000 = vmatpush.bf16.msra.mxu0 0
        %2001 = vmatpush.bf16.msra.mxu0 %v1992
        %2002 = vmatmul.bf16.gmra.mxu0 %v1989
        %v2003 = vpop.f32.mrf.mxu0
        %v2004 = vadd.f32 0.0, %v2003
        %v2005 = vpop.f32.mrf.mxu0
        %2006 = vdwg.mxu0
        %v2007 = vrot.slane %v1909, 4
        %v2008 = vsel %vm857, %v2007, %v1871
        %v2009 = vrot.slane %v1871, 4
        %v2010 = vsel %vm857, %v1909, %v2009
        %v2012 = vunpack.c.l.s4 1983009808
        %v2013 = vunpack.c.0.s8 %v2012
        %v2014 = vperm.slane %v2008, %v2013
        %v2016 = vunpack.c.l.s4 1983009808
        %v2017 = vunpack.c.0.s8 %v2016
        %v2018 = vperm.slane %v2010, %v2017
        %v2019 = vrot.slane %v1928, 4
        %v2020 = vsel %vm857, %v2019, %v1890
        %v2021 = vrot.slane %v1890, 4
        %v2022 = vsel %vm857, %v1928, %v2021
        %v2024 = vunpack.c.l.s4 1983009808
        %v2025 = vunpack.c.0.s8 %v2024
        %v2026 = vperm.slane %v2020, %v2025
        %v2028 = vunpack.c.l.s4 1983009808
        %v2029 = vunpack.c.0.s8 %v2028
        %v2030 = vperm.slane %v2022, %v2029
        %v2031 = vrot.slane %v2026, 4
        %v2032 = vsel %vm857, %v2031, %v2014
        %v2033 = vrot.slane %v2014, 4
        %v2034 = vsel %vm857, %v2026, %v2033
        %v2036 = vunpack.c.l.s4 1934713408
        %v2037 = vunpack.c.0.s8 %v2036
        %v2038 = vperm.slane %v2032, %v2037
        %v2040 = vunpack.c.l.s4 1934713408
        %v2041 = vunpack.c.0.s8 %v2040
        %v2042 = vperm.slane %v2034, %v2041
        %v2043 = vrot.slane %v2030, 4
        %v2044 = vsel %vm857, %v2043, %v2018
        %v2045 = vrot.slane %v2018, 4
        %v2046 = vsel %vm857, %v2030, %v2045
        %v2048 = vunpack.c.l.s4 1934713408
        %v2049 = vunpack.c.0.s8 %v2048
        %v2050 = vperm.slane %v2044, %v2049
        %v2052 = vunpack.c.l.s4 1934713408
        %v2053 = vunpack.c.0.s8 %v2052
        %v2054 = vperm.slane %v2046, %v2053
        %v2055 = vrot.slane %v2038, 4
        %v2056 = vsel %vm857, 0.0, %v2055
        %v2057 = vrot.slane %v2042, 4
        %v2058 = vsel %vm857, 0.0, %v2057
        %v2059 = vrot.slane %v2050, 4
        %v2060 = vsel %vm857, 0.0, %v2059
        %v2061 = vrot.slane %v2054, 4
        %v2062 = vsel %vm857, 0.0, %v2061
        %v2063 = vrot.slane %v1985, 4
        %v2064 = vsel %vm857, %v2063, %v1947
        %v2065 = vrot.slane %v1947, 4
        %v2066 = vsel %vm857, %v1985, %v2065
        %v2068 = vunpack.c.l.s4 1983009808
        %v2069 = vunpack.c.0.s8 %v2068
        %v2070 = vperm.slane %v2064, %v2069
        %v2072 = vunpack.c.l.s4 1983009808
        %v2073 = vunpack.c.0.s8 %v2072
        %v2074 = vperm.slane %v2066, %v2073
        %v2075 = vrot.slane %v2004, 4
        %v2076 = vsel %vm857, %v2075, %v1966
        %v2077 = vrot.slane %v1966, 4
        %v2078 = vsel %vm857, %v2004, %v2077
        %v2080 = vunpack.c.l.s4 1983009808
        %v2081 = vunpack.c.0.s8 %v2080
        %v2082 = vperm.slane %v2076, %v2081
        %v2084 = vunpack.c.l.s4 1983009808
        %v2085 = vunpack.c.0.s8 %v2084
        %v2086 = vperm.slane %v2078, %v2085
        %v2087 = vrot.slane %v2082, 4
        %v2088 = vsel %vm857, %v2087, %v2070
        %v2089 = vrot.slane %v2070, 4
        %v2090 = vsel %vm857, %v2082, %v2089
        %v2092 = vunpack.c.l.s4 1934713408
        %v2093 = vunpack.c.0.s8 %v2092
        %v2094 = vperm.slane %v2088, %v2093
        %v2096 = vunpack.c.l.s4 1934713408
        %v2097 = vunpack.c.0.s8 %v2096
        %v2098 = vperm.slane %v2090, %v2097
        %v2099 = vrot.slane %v2086, 4
        %v2100 = vsel %vm857, %v2099, %v2074
        %v2101 = vrot.slane %v2074, 4
        %v2102 = vsel %vm857, %v2086, %v2101
        %v2104 = vunpack.c.l.s4 1934713408
        %v2105 = vunpack.c.0.s8 %v2104
        %v2106 = vperm.slane %v2100, %v2105
        %v2108 = vunpack.c.l.s4 1934713408
        %v2109 = vunpack.c.0.s8 %v2108
        %v2110 = vperm.slane %v2102, %v2109
        %v2111 = vrot.slane %v2094, 4
        %v2112 = vsel %vm857, 0.0, %v2111
        %v2113 = vrot.slane %v2098, 4
        %v2114 = vsel %vm857, 0.0, %v2113
        %v2115 = vrot.slane %v2106, 4
        %v2116 = vsel %vm857, 0.0, %v2115
        %v2117 = vrot.slane %v2110, 4
        %v2118 = vsel %vm857, 0.0, %v2117
        %v2119 = vsel %vm857, %v2057, %v2038
        %v2121 = vunpack.c.l.s4 1983009808
        %v2122 = vunpack.c.0.s8 %v2121
        %v2123 = vperm.slane %v2119, %v2122
        %v2124 = vrot.slane %v2058, 4
        %v2125 = vsel %vm857, %v2124, %v2056
        %v2127 = vunpack.c.l.s4 1983009808
        %v2128 = vunpack.c.0.s8 %v2127
        %v2129 = vperm.slane %v2125, %v2128
        %v2130 = vsel %vm857, %v2061, %v2050
        %v2132 = vunpack.c.l.s4 1983009808
        %v2133 = vunpack.c.0.s8 %v2132
        %v2134 = vperm.slane %v2130, %v2133
        %v2135 = vrot.slane %v2062, 4
        %v2136 = vsel %vm857, %v2135, %v2060
        %v2138 = vunpack.c.l.s4 1983009808
        %v2139 = vunpack.c.0.s8 %v2138
        %v2140 = vperm.slane %v2136, %v2139
        %v2141 = vrot.slane %v2129, 4
        %v2142 = vsel %vm857, %v2141, %v2123
        %v2143 = vrot.slane %v2123, 4
        %v2144 = vsel %vm857, %v2129, %v2143
        %v2146 = vunpack.c.l.s4 1934713408
        %v2147 = vunpack.c.0.s8 %v2146
        %v2148 = vperm.slane %v2142, %v2147
        %v2150 = vunpack.c.l.s4 1934713408
        %v2151 = vunpack.c.0.s8 %v2150
        %v2152 = vperm.slane %v2144, %v2151
        %v2153 = vrot.slane %v2140, 4
        %v2154 = vsel %vm857, %v2153, %v2134
        %v2155 = vrot.slane %v2134, 4
        %v2156 = vsel %vm857, %v2140, %v2155
        %v2158 = vunpack.c.l.s4 1934713408
        %v2159 = vunpack.c.0.s8 %v2158
        %v2160 = vperm.slane %v2154, %v2159
        %v2162 = vunpack.c.l.s4 1934713408
        %v2163 = vunpack.c.0.s8 %v2162
        %v2164 = vperm.slane %v2156, %v2163
        %v2165 = vrot.slane %v2160, 4
        %v2166 = vsel %vm857, %v2165, %v2148
        %v2167 = vrot.slane %v2148, 4
        %v2168 = vsel %vm857, %v2160, %v2167
        %v2169 = vrot.slane %v2164, 4
        %v2170 = vsel %vm857, %v2169, %v2152
        %v2171 = vrot.slane %v2152, 4
        %v2172 = vsel %vm857, %v2164, %v2171
        %v2173 = vsel %vm857, %v2113, %v2094
        %v2175 = vunpack.c.l.s4 1983009808
        %v2176 = vunpack.c.0.s8 %v2175
        %v2177 = vperm.slane %v2173, %v2176
        %v2178 = vrot.slane %v2114, 4
        %v2179 = vsel %vm857, %v2178, %v2112
        %v2181 = vunpack.c.l.s4 1983009808
        %v2182 = vunpack.c.0.s8 %v2181
        %v2183 = vperm.slane %v2179, %v2182
        %v2184 = vsel %vm857, %v2117, %v2106
        %v2186 = vunpack.c.l.s4 1983009808
        %v2187 = vunpack.c.0.s8 %v2186
        %v2188 = vperm.slane %v2184, %v2187
        %v2189 = vrot.slane %v2118, 4
        %v2190 = vsel %vm857, %v2189, %v2116
        %v2192 = vunpack.c.l.s4 1983009808
        %v2193 = vunpack.c.0.s8 %v2192
        %v2194 = vperm.slane %v2190, %v2193
        %v2195 = vrot.slane %v2183, 4
        %v2196 = vsel %vm857, %v2195, %v2177
        %v2197 = vrot.slane %v2177, 4
        %v2198 = vsel %vm857, %v2183, %v2197
        %v2200 = vunpack.c.l.s4 1934713408
        %v2201 = vunpack.c.0.s8 %v2200
        %v2202 = vperm.slane %v2196, %v2201
        %v2204 = vunpack.c.l.s4 1934713408
        %v2205 = vunpack.c.0.s8 %v2204
        %v2206 = vperm.slane %v2198, %v2205
        %v2207 = vrot.slane %v2194, 4
        %v2208 = vsel %vm857, %v2207, %v2188
        %v2209 = vrot.slane %v2188, 4
        %v2210 = vsel %vm857, %v2194, %v2209
        %v2212 = vunpack.c.l.s4 1934713408
        %v2213 = vunpack.c.0.s8 %v2212
        %v2214 = vperm.slane %v2208, %v2213
        %v2216 = vunpack.c.l.s4 1934713408
        %v2217 = vunpack.c.0.s8 %v2216
        %v2218 = vperm.slane %v2210, %v2217
        %v2219 = vrot.slane %v2214, 4
        %v2220 = vsel %vm857, %v2219, %v2202
        %v2221 = vrot.slane %v2202, 4
        %v2222 = vsel %vm857, %v2214, %v2221
        %v2223 = vrot.slane %v2218, 4
        %v2224 = vsel %vm857, %v2223, %v2206
        %v2225 = vrot.slane %v2206, 4
        %v2226 = vsel %vm857, %v2218, %v2225
        %2229 = vrot.lane.b32.xlu0 %v2168, 8
        %v2230 = vpop.permute.xlu0 %2229
        %2231 = vrot.lane.b32.xlu0 %v2222, 8
        %v2232 = vpop.permute.xlu0 %2231
        %2237 = vrot.lane.b32.xlu0 %v2170, 16
        %v2238 = vpop.permute.xlu0 %2237
        %2239 = vrot.lane.b32.xlu0 %v2224, 16
        %v2240 = vpop.permute.xlu0 %2239
        %2245 = vrot.lane.b32.xlu0 %v2172, 24
        %v2246 = vpop.permute.xlu0 %2245
        %2247 = vrot.lane.b32.xlu0 %v2226, 24
        %v2248 = vpop.permute.xlu0 %2247
        %v2251 = vsel %vm1589, %v2166, %v2230
        %v2252 = vsel %vm1589, %v2220, %v2232
        %vm2253 = vcmask 130048
        %v2254 = vsel %vm2253, %v2251, %v2238
        %v2255 = vsel %vm2253, %v2252, %v2240
        %vm2256 = vcmask 195584
        %v2257 = vsel %vm2256, %v2254, %v2246
        %v2258 = vsel %vm2256, %v2255, %v2248
        %v2259 = vpack.c.bf16 %v2258, %v2257
        %v2260 = vld [vmem:[%s8] sm:$0xf]
        %v2261 = vld [vmem:[%s8 + $0x4] sm:$0xf]
        %v2262 = vld [vmem:[%s8 + $0x8] sm:$0xf]
        %v2263 = vld [vmem:[%s8 + $0xc] sm:$0xf]
        %v2264 = vld [vmem:[%s9] sm:$0x1]
        %v2266 = vperm.slane %v2264, 0
        %v2272 = vunpack.c.l.b16 %v2260
        %v2273 = vunpack.c.l.b16 %v2261
        %v2274 = vunpack.c.l.b16 %v2262
        %v2275 = vunpack.c.l.b16 %v2263
        %v2276 = vpack.c.b16 %v2273, %v2272
        %v2277 = vpack.c.b16 %v2275, %v2274
        %v2281 = vsel %vm727, %v2259, 0
        %2283 = vmatpush.bf16.msra.mxu0 0
        %2284 = vmatpush.bf16.msra.mxu0 0
        %2285 = vmatpush.bf16.msra.mxu0 0
        %2286 = vmatpush.bf16.msra.mxu0 0
        %2287 = vmatpush.bf16.msra.mxu0 0
        %2288 = vmatpush.bf16.msra.mxu0 0
        %2289 = vmatpush.bf16.msra.mxu0 %v2277
        %2290 = vmatpush.bf16.msra.mxu0 %v2276
        %2291 = vmatmul.bf16.gmra.mxu0 %v2281
        %v2292 = vpop.f32.mrf.mxu0
        %v2293 = vadd.f32 %v2266, %v2292
        %v2294 = vpop.f32.mrf.mxu0
        %v2295 = vadd.f32 %v2266, %v2294
        %2296 = vdwg.mxu0
        %v2297 = vadd.f32 %v2293, %v787
        %v2298 = vadd.f32 %v2295, %v788
        %v2299 = vld [vmem:[%s10] sm:$0x1]
        %v2300 = vld [vmem:[%s11] sm:$0x1]
        %v2301 = vsel %vm727, %v2297, 0.0
        %2302 = vadd.xlane.f32.xlu0 %v2301
        %v2303 = vpop.xlane.xlu0 %2302
        %v2304 = vsel %vm727, %v2298, 0.0
        %2305 = vadd.xlane.f32.xlu0 %v2304
        %v2306 = vpop.xlane.xlu0 %2305
        %v2307 = vmul.f32 %v2303, %v740
        %v2308 = vmul.f32 %v2306, %v740
        %v2309 = vsub.f32 %v2297, %v2307
        %v2310 = vsub.f32 %v2298, %v2308
        %v2311 = vmul.f32 %v2309, %v2309
        %v2312 = vmul.f32 %v2310, %v2310
        %v2313 = vsel %vm727, %v2311, 0.0
        %2314 = vadd.xlane.f32.xlu0 %v2313
        %v2315 = vpop.xlane.xlu0 %2314
        %v2316 = vsel %vm727, %v2312, 0.0
        %2317 = vadd.xlane.f32.xlu0 %v2316
        %v2318 = vpop.xlane.xlu0 %2317
        %v2319 = vmul.f32 %v2315, %v740
        %v2320 = vmul.f32 %v2318, %v740
        %v2321 = vadd.f32 %v2319, 1e-12
        %v2322 = vadd.f32 %v2320, 1e-12
        %v2323 = vrsqrt.pop %v2321
        %v2324 = vmul.f32 %v2323, %v2321
        %v2325 = vmul.f32 %v2324, %v2323
        %v2326 = vmul.f32 0.5, %v2325
        %v2327 = vsub.f32 1.5, %v2326
        %v2328 = vmul.f32 %v2323, %v2327
        %vm2329 = vweird.f32 %v2321
        %vm2330 = vweird.f32 %v2323
        %vm2331 = vmor %vm2329, %vm2330
        %v2332 = vsel %vm2331, %v2323, %v2328
        %v2333 = vrsqrt.pop %v2322
        %v2334 = vmul.f32 %v2333, %v2322
        %v2335 = vmul.f32 %v2334, %v2333
        %v2336 = vmul.f32 0.5, %v2335
        %v2337 = vsub.f32 1.5, %v2336
        %v2338 = vmul.f32 %v2333, %v2337
        %vm2339 = vweird.f32 %v2322
        %vm2340 = vweird.f32 %v2333
        %vm2341 = vmor %vm2339, %vm2340
        %v2342 = vsel %vm2341, %v2333, %v2338
        %v2343 = vmul.f32 %v2309, %v2332
        %v2344 = vmul.f32 %v2310, %v2342
        %v2346 = vperm.slane %v2299, 0
        %v2348 = vmul.f32 %v2343, %v2346
        %v2349 = vmul.f32 %v2344, %v2346
        %v2351 = vperm.slane %v2300, 0
        %v2353 = vadd.f32 %v2348, %v2351
        %v2354 = vadd.f32 %v2349, %v2351
        %v2355 = vpack.c.bf16 %v2354, %v2353
        %v2356 = vld [vmem:[%s12] sm:$0xf]
        %v2357 = vld [vmem:[%s12 + $0x4] sm:$0xf]
        %v2358 = vld [vmem:[%s12 + $0x8] sm:$0xf]
        %v2359 = vld [vmem:[%s12 + $0xc] sm:$0xf]
        %v2360 = vld [vmem:[%s13] sm:$0x1]
        %v2362 = vperm.slane %v2360, 0
        %v2368 = vunpack.c.l.b16 %v2356
        %v2369 = vunpack.c.l.b16 %v2357
        %v2370 = vunpack.c.l.b16 %v2358
        %v2371 = vunpack.c.l.b16 %v2359
        %v2372 = vpack.c.b16 %v2369, %v2368
        %v2373 = vpack.c.b16 %v2371, %v2370
        %v2377 = vsel %vm727, %v2355, 0
        %2379 = vmatpush.bf16.msra.mxu0 0
        %2380 = vmatpush.bf16.msra.mxu0 0
        %2381 = vmatpush.bf16.msra.mxu0 0
        %2382 = vmatpush.bf16.msra.mxu0 0
        %2383 = vmatpush.bf16.msra.mxu0 0
        %2384 = vmatpush.bf16.msra.mxu0 0
        %2385 = vmatpush.bf16.msra.mxu0 %v2373
        %2386 = vmatpush.bf16.msra.mxu0 %v2372
        %2387 = vmatmul.bf16.gmra.mxu0 %v2377
        %v2388 = vpop.f32.mrf.mxu0
        %v2389 = vadd.f32 %v2362, %v2388
        %v2390 = vpop.f32.mrf.mxu0
        %v2391 = vadd.f32 %v2362, %v2390
        %2392 = vdwg.mxu0
        %v2393 = vmul.f32 %v2389, %v2389
        %v2394 = vmul.f32 %v2391, %v2391
        %v2395 = vmul.f32 %v2389, %v2393
        %v2396 = vmul.f32 %v2391, %v2394
        %v2397 = vmul.f32 %v2395, 0.044715
        %v2398 = vmul.f32 %v2396, 0.044715
        %v2399 = vadd.f32 %v2389, %v2397
        %v2400 = vadd.f32 %v2391, %v2398
        %v2401 = vmul.f32 %v2399, 0.7978846
        %v2402 = vmul.f32 %v2400, 0.7978846
        %v2403 = vtanh.pop %v2401
        %v2404 = vtanh.pop %v2402
        %v2405 = vadd.f32 %v2403, 1.0
        %v2406 = vadd.f32 %v2404, 1.0
        %v2407 = vmul.f32 %v2405, 0.5
        %v2408 = vmul.f32 %v2406, 0.5
        %v2409 = vmul.f32 %v2389, %v2407
        %v2410 = vmul.f32 %v2391, %v2408
        %v2411 = vpack.c.bf16 %v2410, %v2409
        %v2412 = vld [vmem:[%s14] sm:$0xf]
        %v2413 = vld [vmem:[%s14 + $0x4] sm:$0xf]
        %v2414 = vld [vmem:[%s14 + $0x8] sm:$0xf]
        %v2415 = vld [vmem:[%s14 + $0xc] sm:$0xf]
        %v2416 = vld [vmem:[%s14 + $0x10] sm:$0xf]
        %v2417 = vld [vmem:[%s14 + $0x14] sm:$0xf]
        %v2418 = vld [vmem:[%s14 + $0x18] sm:$0xf]
        %v2419 = vld [vmem:[%s14 + $0x1c] sm:$0xf]
        %v2420 = vld [vmem:[%s15] sm:$0x1]
        %v2422 = vperm.slane %v2420, 0
        %v2432 = vunpack.c.l.b16 %v2412
        %v2433 = vunpack.c.l.b16 %v2413
        %v2434 = vunpack.c.l.b16 %v2414
        %v2435 = vunpack.c.l.b16 %v2415
        %v2436 = vunpack.c.l.b16 %v2416
        %v2437 = vunpack.c.l.b16 %v2417
        %v2438 = vunpack.c.l.b16 %v2418
        %v2439 = vunpack.c.l.b16 %v2419
        %v2440 = vpack.c.b16 %v2433, %v2432
        %v2441 = vpack.c.b16 %v2435, %v2434
        %v2442 = vpack.c.b16 %v2437, %v2436
        %v2443 = vpack.c.b16 %v2439, %v2438
        %vm2448 = vcmask 523264
        %v2450 = vsel %vm2448, %v2411, 0
        %2452 = vmatpush.bf16.msra.mxu0 0
        %2453 = vmatpush.bf16.msra.mxu0 0
        %2454 = vmatpush.bf16.msra.mxu0 0
        %2455 = vmatpush.bf16.msra.mxu0 0
        %2456 = vmatpush.bf16.msra.mxu0 %v2443
        %2457 = vmatpush.bf16.msra.mxu0 %v2442
        %2458 = vmatpush.bf16.msra.mxu0 %v2441
        %2459 = vmatpush.bf16.msra.mxu0 %v2440
        %2460 = vmatmul.bf16.gmra.mxu0 %v2450
        %v2461 = vpop.f32.mrf.mxu0
        %v2462 = vadd.f32 %v2422, %v2461
        %v2463 = vpop.f32.mrf.mxu0
        %v2464 = vadd.f32 %v2422, %v2463
        %2465 = vdwg.mxu0
        %v2466 = vadd.f32 %v2462, %v2353
        %v2467 = vadd.f32 %v2464, %v2354
        %v2468 = vld [vmem:[%s16] sm:$0x1]
        %v2469 = vld [vmem:[%s17] sm:$0x1]
        %v2470 = vsel %vm727, %v2466, 0.0
        %2471 = vadd.xlane.f32.xlu0 %v2470
        %v2472 = vpop.xlane.xlu0 %2471
        %v2473 = vsel %vm727, %v2467, 0.0
        %2474 = vadd.xlane.f32.xlu0 %v2473
        %v2475 = vpop.xlane.xlu0 %2474
        %v2476 = vmul.f32 %v2472, %v740
        %v2477 = vmul.f32 %v2475, %v740
        %v2478 = vsub.f32 %v2466, %v2476
        %v2479 = vsub.f32 %v2467, %v2477
        %v2480 = vmul.f32 %v2478, %v2478
        %v2481 = vmul.f32 %v2479, %v2479
        %v2482 = vsel %vm727, %v2480, 0.0
        %2483 = vadd.xlane.f32.xlu0 %v2482
        %v2484 = vpop.xlane.xlu0 %2483
        %v2485 = vsel %vm727, %v2481, 0.0
        %2486 = vadd.xlane.f32.xlu0 %v2485
        %v2487 = vpop.xlane.xlu0 %2486
        %v2488 = vmul.f32 %v2484, %v740
        %v2489 = vmul.f32 %v2487, %v740
        %v2490 = vadd.f32 %v2488, 1e-12
        %v2491 = vadd.f32 %v2489, 1e-12
        %v2492 = vrsqrt.pop %v2490
        %v2493 = vmul.f32 %v2492, %v2490
        %v2494 = vmul.f32 %v2493, %v2492
        %v2495 = vmul.f32 0.5, %v2494
        %v2496 = vsub.f32 1.5, %v2495
        %v2497 = vmul.f32 %v2492, %v2496
        %vm2498 = vweird.f32 %v2490
        %vm2499 = vweird.f32 %v2492
        %vm2500 = vmor %vm2498, %vm2499
        %v2501 = vsel %vm2500, %v2492, %v2497
        %v2502 = vrsqrt.pop %v2491
        %v2503 = vmul.f32 %v2502, %v2491
        %v2504 = vmul.f32 %v2503, %v2502
        %v2505 = vmul.f32 0.5, %v2504
        %v2506 = vsub.f32 1.5, %v2505
        %v2507 = vmul.f32 %v2502, %v2506
        %vm2508 = vweird.f32 %v2491
        %vm2509 = vweird.f32 %v2502
        %vm2510 = vmor %vm2508, %vm2509
        %v2511 = vsel %vm2510, %v2502, %v2507
        %v2512 = vmul.f32 %v2478, %v2501
        %v2513 = vmul.f32 %v2479, %v2511
        %v2515 = vperm.slane %v2468, 0
        %v2517 = vmul.f32 %v2512, %v2515
        %v2518 = vmul.f32 %v2513, %v2515
        %v2520 = vperm.slane %v2469, 0
        %v2522 = vadd.f32 %v2517, %v2520
        %v2523 = vadd.f32 %v2518, %v2520
        %v2524 = vpack.c.bf16 %v2523, %v2522
        %s2525 = scalar_lea.vmem %s6, 16
        %v2526 = vld [vmem:[%s2525] sm:$0xf]
        %v2527 = vld [vmem:[%s2525 + $0x4] sm:$0xf]
        %v2528 = vld [vmem:[%s2525 + $0x8] sm:$0xf]
        %v2529 = vld [vmem:[%s2525 + $0xc] sm:$0xf]
        %s2530 = scalar_lea.vmem %s7, 1
        %v2531 = vld [vmem:[%s2530] sm:$0x1]
        %v2533 = vperm.slane %v2531, 0
        %v2539 = vunpack.c.l.b16 %v2526
        %v2540 = vunpack.c.l.b16 %v2527
        %v2541 = vunpack.c.l.b16 %v2528
        %v2542 = vunpack.c.l.b16 %v2529
        %v2543 = vpack.c.b16 %v2540, %v2539
        %v2544 = vpack.c.b16 %v2542, %v2541
        %v2548 = vsel %vm727, %v2524, 0
        %2550 = vmatpush.bf16.msra.mxu0 0
        %2551 = vmatpush.bf16.msra.mxu0 0
        %2552 = vmatpush.bf16.msra.mxu0 0
        %2553 = vmatpush.bf16.msra.mxu0 0
        %2554 = vmatpush.bf16.msra.mxu0 0
        %2555 = vmatpush.bf16.msra.mxu0 0
        %2556 = vmatpush.bf16.msra.mxu0 %v2544
        %2557 = vmatpush.bf16.msra.mxu0 %v2543
        %2558 = vmatmul.bf16.gmra.mxu0 %v2548
        %v2559 = vpop.f32.mrf.mxu0
        %v2560 = vadd.f32 %v2533, %v2559
        %v2561 = vpop.f32.mrf.mxu0
        %v2562 = vadd.f32 %v2533, %v2561
        %2563 = vdwg.mxu0
        %2566 = vrot.lane.b32.xlu0 %v2560, 120
        %v2567 = vpop.permute.xlu0 %2566
        %2568 = vrot.lane.b32.xlu0 %v2562, 120
        %v2569 = vpop.permute.xlu0 %2568
        %2572 = vrot.lane.b32.xlu0 %v2560, 112
        %v2573 = vpop.permute.xlu0 %2572
        %2574 = vrot.lane.b32.xlu0 %v2562, 112
        %v2575 = vpop.permute.xlu0 %2574
        %2578 = vrot.lane.b32.xlu0 %v2560, 104
        %v2579 = vpop.permute.xlu0 %2578
        %2580 = vrot.lane.b32.xlu0 %v2562, 104
        %v2581 = vpop.permute.xlu0 %2580
        %v2584 = vrot.slane %v2573, 4
        %v2585 = vsel %vm857, %v2584, %v2560
        %v2586 = vrot.slane %v2560, 4
        %v2587 = vsel %vm857, %v2573, %v2586
        %v2589 = vunpack.c.l.s4 1983009808
        %v2590 = vunpack.c.0.s8 %v2589
        %v2591 = vperm.slane %v2585, %v2590
        %v2593 = vunpack.c.l.s4 1983009808
        %v2594 = vunpack.c.0.s8 %v2593
        %v2595 = vperm.slane %v2587, %v2594
        %v2596 = vrot.slane %v2579, 4
        %v2597 = vsel %vm857, %v2596, %v2567
        %v2598 = vrot.slane %v2567, 4
        %v2599 = vsel %vm857, %v2579, %v2598
        %v2601 = vunpack.c.l.s4 1983009808
        %v2602 = vunpack.c.0.s8 %v2601
        %v2603 = vperm.slane %v2597, %v2602
        %v2605 = vunpack.c.l.s4 1983009808
        %v2606 = vunpack.c.0.s8 %v2605
        %v2607 = vperm.slane %v2599, %v2606
        %v2608 = vrot.slane %v2603, 4
        %v2609 = vsel %vm857, %v2608, %v2591
        %v2610 = vrot.slane %v2591, 4
        %v2611 = vsel %vm857, %v2603, %v2610
        %v2613 = vunpack.c.l.s4 1934713408
        %v2614 = vunpack.c.0.s8 %v2613
        %v2615 = vperm.slane %v2609, %v2614
        %v2617 = vunpack.c.l.s4 1934713408
        %v2618 = vunpack.c.0.s8 %v2617
        %v2619 = vperm.slane %v2611, %v2618
        %v2620 = vrot.slane %v2607, 4
        %v2621 = vsel %vm857, %v2620, %v2595
        %v2622 = vrot.slane %v2595, 4
        %v2623 = vsel %vm857, %v2607, %v2622
        %v2625 = vunpack.c.l.s4 1934713408
        %v2626 = vunpack.c.0.s8 %v2625
        %v2627 = vperm.slane %v2621, %v2626
        %v2629 = vunpack.c.l.s4 1934713408
        %v2630 = vunpack.c.0.s8 %v2629
        %v2631 = vperm.slane %v2623, %v2630
        %v2632 = vrot.slane %v2615, 4
        %v2633 = vsel %vm857, 0.0, %v2632
        %v2634 = vrot.slane %v2619, 4
        %v2635 = vsel %vm857, 0.0, %v2634
        %v2636 = vrot.slane %v2627, 4
        %v2637 = vsel %vm857, 0.0, %v2636
        %v2638 = vrot.slane %v2631, 4
        %v2639 = vsel %vm857, 0.0, %v2638
        %v2640 = vrot.slane %v2575, 4
        %v2641 = vsel %vm857, %v2640, %v2562
        %v2642 = vrot.slane %v2562, 4
        %v2643 = vsel %vm857, %v2575, %v2642
        %v2645 = vunpack.c.l.s4 1983009808
        %v2646 = vunpack.c.0.s8 %v2645
        %v2647 = vperm.slane %v2641, %v2646
        %v2649 = vunpack.c.l.s4 1983009808
        %v2650 = vunpack.c.0.s8 %v2649
        %v2651 = vperm.slane %v2643, %v2650
        %v2652 = vrot.slane %v2581, 4
        %v2653 = vsel %vm857, %v2652, %v2569
        %v2654 = vrot.slane %v2569, 4
        %v2655 = vsel %vm857, %v2581, %v2654
        %v2657 = vunpack.c.l.s4 1983009808
        %v2658 = vunpack.c.0.s8 %v2657
        %v2659 = vperm.slane %v2653, %v2658
        %v2661 = vunpack.c.l.s4 1983009808
        %v2662 = vunpack.c.0.s8 %v2661
        %v2663 = vperm.slane %v2655, %v2662
        %v2664 = vrot.slane %v2659, 4
        %v2665 = vsel %vm857, %v2664, %v2647
        %v2666 = vrot.slane %v2647, 4
        %v2667 = vsel %vm857, %v2659, %v2666
        %v2669 = vunpack.c.l.s4 1934713408
        %v2670 = vunpack.c.0.s8 %v2669
        %v2671 = vperm.slane %v2665, %v2670
        %v2673 = vunpack.c.l.s4 1934713408
        %v2674 = vunpack.c.0.s8 %v2673
        %v2675 = vperm.slane %v2667, %v2674
        %v2676 = vrot.slane %v2663, 4
        %v2677 = vsel %vm857, %v2676, %v2651
        %v2678 = vrot.slane %v2651, 4
        %v2679 = vsel %vm857, %v2663, %v2678
        %v2681 = vunpack.c.l.s4 1934713408
        %v2682 = vunpack.c.0.s8 %v2681
        %v2683 = vperm.slane %v2677, %v2682
        %v2685 = vunpack.c.l.s4 1934713408
        %v2686 = vunpack.c.0.s8 %v2685
        %v2687 = vperm.slane %v2679, %v2686
        %v2688 = vrot.slane %v2671, 4
        %v2689 = vsel %vm857, 0.0, %v2688
        %v2690 = vrot.slane %v2675, 4
        %v2691 = vsel %vm857, 0.0, %v2690
        %v2692 = vrot.slane %v2683, 4
        %v2693 = vsel %vm857, 0.0, %v2692
        %v2694 = vrot.slane %v2687, 4
        %v2695 = vsel %vm857, 0.0, %v2694
        %v2696 = vsel %vm857, %v2634, %v2615
        %v2698 = vunpack.c.l.s4 1983009808
        %v2699 = vunpack.c.0.s8 %v2698
        %v2700 = vperm.slane %v2696, %v2699
        %v2701 = vrot.slane %v2635, 4
        %v2702 = vsel %vm857, %v2701, %v2633
        %v2704 = vunpack.c.l.s4 1983009808
        %v2705 = vunpack.c.0.s8 %v2704
        %v2706 = vperm.slane %v2702, %v2705
        %v2707 = vsel %vm857, %v2638, %v2627
        %v2709 = vunpack.c.l.s4 1983009808
        %v2710 = vunpack.c.0.s8 %v2709
        %v2711 = vperm.slane %v2707, %v2710
        %v2712 = vrot.slane %v2639, 4
        %v2713 = vsel %vm857, %v2712, %v2637
        %v2715 = vunpack.c.l.s4 1983009808
        %v2716 = vunpack.c.0.s8 %v2715
        %v2717 = vperm.slane %v2713, %v2716
        %v2718 = vrot.slane %v2706, 4
        %v2719 = vsel %vm857, %v2718, %v2700
        %v2720 = vrot.slane %v2700, 4
        %v2721 = vsel %vm857, %v2706, %v2720
        %v2723 = vunpack.c.l.s4 1934713408
        %v2724 = vunpack.c.0.s8 %v2723
        %v2725 = vperm.slane %v2719, %v2724
        %v2727 = vunpack.c.l.s4 1934713408
        %v2728 = vunpack.c.0.s8 %v2727
        %v2729 = vperm.slane %v2721, %v2728
        %v2730 = vrot.slane %v2717, 4
        %v2731 = vsel %vm857, %v2730, %v2711
        %v2732 = vrot.slane %v2711, 4
        %v2733 = vsel %vm857, %v2717, %v2732
        %v2735 = vunpack.c.l.s4 1934713408
        %v2736 = vunpack.c.0.s8 %v2735
        %v2737 = vperm.slane %v2731, %v2736
        %v2739 = vunpack.c.l.s4 1934713408
        %v2740 = vunpack.c.0.s8 %v2739
        %v2741 = vperm.slane %v2733, %v2740
        %v2742 = vrot.slane %v2737, 4
        %v2743 = vsel %vm857, %v2742, %v2725
        %v2744 = vrot.slane %v2725, 4
        %v2745 = vsel %vm857, %v2737, %v2744
        %v2746 = vrot.slane %v2741, 4
        %v2747 = vsel %vm857, %v2746, %v2729
        %v2748 = vrot.slane %v2729, 4
        %v2749 = vsel %vm857, %v2741, %v2748
        %v2750 = vsel %vm857, %v2690, %v2671
        %v2752 = vunpack.c.l.s4 1983009808
        %v2753 = vunpack.c.0.s8 %v2752
        %v2754 = vperm.slane %v2750, %v2753
        %v2755 = vrot.slane %v2691, 4
        %v2756 = vsel %vm857, %v2755, %v2689
        %v2758 = vunpack.c.l.s4 1983009808
        %v2759 = vunpack.c.0.s8 %v2758
        %v2760 = vperm.slane %v2756, %v2759
        %v2761 = vsel %vm857, %v2694, %v2683
        %v2763 = vunpack.c.l.s4 1983009808
        %v2764 = vunpack.c.0.s8 %v2763
        %v2765 = vperm.slane %v2761, %v2764
        %v2766 = vrot.slane %v2695, 4
        %v2767 = vsel %vm857, %v2766, %v2693
        %v2769 = vunpack.c.l.s4 1983009808
        %v2770 = vunpack.c.0.s8 %v2769
        %v2771 = vperm.slane %v2767, %v2770
        %v2772 = vrot.slane %v2760, 4
        %v2773 = vsel %vm857, %v2772, %v2754
        %v2774 = vrot.slane %v2754, 4
        %v2775 = vsel %vm857, %v2760, %v2774
        %v2777 = vunpack.c.l.s4 1934713408
        %v2778 = vunpack.c.0.s8 %v2777
        %v2779 = vperm.slane %v2773, %v2778
        %v2781 = vunpack.c.l.s4 1934713408
        %v2782 = vunpack.c.0.s8 %v2781
        %v2783 = vperm.slane %v2775, %v2782
        %v2784 = vrot.slane %v2771, 4
        %v2785 = vsel %vm857, %v2784, %v2765
        %v2786 = vrot.slane %v2765, 4
        %v2787 = vsel %vm857, %v2771, %v2786
        %v2789 = vunpack.c.l.s4 1934713408
        %v2790 = vunpack.c.0.s8 %v2789
        %v2791 = vperm.slane %v2785, %v2790
        %v2793 = vunpack.c.l.s4 1934713408
        %v2794 = vunpack.c.0.s8 %v2793
        %v2795 = vperm.slane %v2787, %v2794
        %v2796 = vrot.slane %v2791, 4
        %v2797 = vsel %vm857, %v2796, %v2779
        %v2798 = vrot.slane %v2779, 4
        %v2799 = vsel %vm857, %v2791, %v2798
        %v2800 = vrot.slane %v2795, 4
        %v2801 = vsel %vm857, %v2800, %v2783
        %v2802 = vrot.slane %v2783, 4
        %v2803 = vsel %vm857, %v2795, %v2802
        %v2804 = vpack.c.bf16 %v2743, %v2743
        %v2805 = vpack.c.bf16 %v2745, %v2745
        %v2806 = vpack.c.bf16 %v2747, %v2747
        %v2807 = vpack.c.bf16 %v2749, %v2749
        %v2808 = vpack.c.bf16 %v2797, %v2797
        %v2809 = vpack.c.bf16 %v2799, %v2799
        %v2810 = vpack.c.bf16 %v2801, %v2801
        %v2811 = vpack.c.bf16 %v2803, %v2803
        %2812 = vrot.lane.b32.xlu0 %v2560, 96
        %v2813 = vpop.permute.xlu0 %2812
        %2814 = vrot.lane.b32.xlu0 %v2562, 96
        %v2815 = vpop.permute.xlu0 %2814
        %2816 = vrot.lane.b32.xlu0 %v2567, 96
        %v2817 = vpop.permute.xlu0 %2816
        %2818 = vrot.lane.b32.xlu0 %v2569, 96
        %v2819 = vpop.permute.xlu0 %2818
        %2820 = vrot.lane.b32.xlu0 %v2573, 96
        %v2821 = vpop.permute.xlu0 %2820
        %2822 = vrot.lane.b32.xlu0 %v2575, 96
        %v2823 = vpop.permute.xlu0 %2822
        %2824 = vrot.lane.b32.xlu0 %v2579, 96
        %v2825 = vpop.permute.xlu0 %2824
        %2826 = vrot.lane.b32.xlu0 %v2581, 96
        %v2827 = vpop.permute.xlu0 %2826
        %v2836 = vrot.slane %v2821, 4
        %v2837 = vsel %vm857, %v2836, %v2813
        %v2838 = vrot.slane %v2813, 4
        %v2839 = vsel %vm857, %v2821, %v2838
        %v2841 = vunpack.c.l.s4 1983009808
        %v2842 = vunpack.c.0.s8 %v2841
        %v2843 = vperm.slane %v2837, %v2842
        %v2845 = vunpack.c.l.s4 1983009808
        %v2846 = vunpack.c.0.s8 %v2845
        %v2847 = vperm.slane %v2839, %v2846
        %v2848 = vrot.slane %v2825, 4
        %v2849 = vsel %vm857, %v2848, %v2817
        %v2850 = vrot.slane %v2817, 4
        %v2851 = vsel %vm857, %v2825, %v2850
        %v2853 = vunpack.c.l.s4 1983009808
        %v2854 = vunpack.c.0.s8 %v2853
        %v2855 = vperm.slane %v2849, %v2854
        %v2857 = vunpack.c.l.s4 1983009808
        %v2858 = vunpack.c.0.s8 %v2857
        %v2859 = vperm.slane %v2851, %v2858
        %v2860 = vrot.slane %v2855, 4
        %v2861 = vsel %vm857, %v2860, %v2843
        %v2862 = vrot.slane %v2843, 4
        %v2863 = vsel %vm857, %v2855, %v2862
        %v2865 = vunpack.c.l.s4 1934713408
        %v2866 = vunpack.c.0.s8 %v2865
        %v2867 = vperm.slane %v2861, %v2866
        %v2869 = vunpack.c.l.s4 1934713408
        %v2870 = vunpack.c.0.s8 %v2869
        %v2871 = vperm.slane %v2863, %v2870
        %v2872 = vrot.slane %v2859, 4
        %v2873 = vsel %vm857, %v2872, %v2847
        %v2874 = vrot.slane %v2847, 4
        %v2875 = vsel %vm857, %v2859, %v2874
        %v2877 = vunpack.c.l.s4 1934713408
        %v2878 = vunpack.c.0.s8 %v2877
        %v2879 = vperm.slane %v2873, %v2878
        %v2881 = vunpack.c.l.s4 1934713408
        %v2882 = vunpack.c.0.s8 %v2881
        %v2883 = vperm.slane %v2875, %v2882
        %v2884 = vrot.slane %v2867, 4
        %v2885 = vsel %vm857, 0.0, %v2884
        %v2886 = vrot.slane %v2871, 4
        %v2887 = vsel %vm857, 0.0, %v2886
        %v2888 = vrot.slane %v2879, 4
        %v2889 = vsel %vm857, 0.0, %v2888
        %v2890 = vrot.slane %v2883, 4
        %v2891 = vsel %vm857, 0.0, %v2890
        %v2892 = vrot.slane %v2823, 4
        %v2893 = vsel %vm857, %v2892, %v2815
        %v2894 = vrot.slane %v2815, 4
        %v2895 = vsel %vm857, %v2823, %v2894
        %v2897 = vunpack.c.l.s4 1983009808
        %v2898 = vunpack.c.0.s8 %v2897
        %v2899 = vperm.slane %v2893, %v2898
        %v2901 = vunpack.c.l.s4 1983009808
        %v2902 = vunpack.c.0.s8 %v2901
        %v2903 = vperm.slane %v2895, %v2902
        %v2904 = vrot.slane %v2827, 4
        %v2905 = vsel %vm857, %v2904, %v2819
        %v2906 = vrot.slane %v2819, 4
        %v2907 = vsel %vm857, %v2827, %v2906
        %v2909 = vunpack.c.l.s4 1983009808
        %v2910 = vunpack.c.0.s8 %v2909
        %v2911 = vperm.slane %v2905, %v2910
        %v2913 = vunpack.c.l.s4 1983009808
        %v2914 = vunpack.c.0.s8 %v2913
        %v2915 = vperm.slane %v2907, %v2914
        %v2916 = vrot.slane %v2911, 4
        %v2917 = vsel %vm857, %v2916, %v2899
        %v2918 = vrot.slane %v2899, 4
        %v2919 = vsel %vm857, %v2911, %v2918
        %v2921 = vunpack.c.l.s4 1934713408
        %v2922 = vunpack.c.0.s8 %v2921
        %v2923 = vperm.slane %v2917, %v2922
        %v2925 = vunpack.c.l.s4 1934713408
        %v2926 = vunpack.c.0.s8 %v2925
        %v2927 = vperm.slane %v2919, %v2926
        %v2928 = vrot.slane %v2915, 4
        %v2929 = vsel %vm857, %v2928, %v2903
        %v2930 = vrot.slane %v2903, 4
        %v2931 = vsel %vm857, %v2915, %v2930
        %v2933 = vunpack.c.l.s4 1934713408
        %v2934 = vunpack.c.0.s8 %v2933
        %v2935 = vperm.slane %v2929, %v2934
        %v2937 = vunpack.c.l.s4 1934713408
        %v2938 = vunpack.c.0.s8 %v2937
        %v2939 = vperm.slane %v2931, %v2938
        %v2940 = vrot.slane %v2923, 4
        %v2941 = vsel %vm857, 0.0, %v2940
        %v2942 = vrot.slane %v2927, 4
        %v2943 = vsel %vm857, 0.0, %v2942
        %v2944 = vrot.slane %v2935, 4
        %v2945 = vsel %vm857, 0.0, %v2944
        %v2946 = vrot.slane %v2939, 4
        %v2947 = vsel %vm857, 0.0, %v2946
        %v2948 = vsel %vm857, %v2886, %v2867
        %v2950 = vunpack.c.l.s4 1983009808
        %v2951 = vunpack.c.0.s8 %v2950
        %v2952 = vperm.slane %v2948, %v2951
        %v2953 = vrot.slane %v2887, 4
        %v2954 = vsel %vm857, %v2953, %v2885
        %v2956 = vunpack.c.l.s4 1983009808
        %v2957 = vunpack.c.0.s8 %v2956
        %v2958 = vperm.slane %v2954, %v2957
        %v2959 = vsel %vm857, %v2890, %v2879
        %v2961 = vunpack.c.l.s4 1983009808
        %v2962 = vunpack.c.0.s8 %v2961
        %v2963 = vperm.slane %v2959, %v2962
        %v2964 = vrot.slane %v2891, 4
        %v2965 = vsel %vm857, %v2964, %v2889
        %v2967 = vunpack.c.l.s4 1983009808
        %v2968 = vunpack.c.0.s8 %v2967
        %v2969 = vperm.slane %v2965, %v2968
        %v2970 = vrot.slane %v2958, 4
        %v2971 = vsel %vm857, %v2970, %v2952
        %v2972 = vrot.slane %v2952, 4
        %v2973 = vsel %vm857, %v2958, %v2972
        %v2975 = vunpack.c.l.s4 1934713408
        %v2976 = vunpack.c.0.s8 %v2975
        %v2977 = vperm.slane %v2971, %v2976
        %v2979 = vunpack.c.l.s4 1934713408
        %v2980 = vunpack.c.0.s8 %v2979
        %v2981 = vperm.slane %v2973, %v2980
        %v2982 = vrot.slane %v2969, 4
        %v2983 = vsel %vm857, %v2982, %v2963
        %v2984 = vrot.slane %v2963, 4
        %v2985 = vsel %vm857, %v2969, %v2984
        %v2987 = vunpack.c.l.s4 1934713408
        %v2988 = vunpack.c.0.s8 %v2987
        %v2989 = vperm.slane %v2983, %v2988
        %v2991 = vunpack.c.l.s4 1934713408
        %v2992 = vunpack.c.0.s8 %v2991
        %v2993 = vperm.slane %v2985, %v2992
        %v2994 = vrot.slane %v2989, 4
        %v2995 = vsel %vm857, %v2994, %v2977
        %v2996 = vrot.slane %v2977, 4
        %v2997 = vsel %vm857, %v2989, %v2996
        %v2998 = vrot.slane %v2993, 4
        %v2999 = vsel %vm857, %v2998, %v2981
        %v3000 = vrot.slane %v2981, 4
        %v3001 = vsel %vm857, %v2993, %v3000
        %v3002 = vsel %vm857, %v2942, %v2923
        %v3004 = vunpack.c.l.s4 1983009808
        %v3005 = vunpack.c.0.s8 %v3004
        %v3006 = vperm.slane %v3002, %v3005
        %v3007 = vrot.slane %v2943, 4
        %v3008 = vsel %vm857, %v3007, %v2941
        %v3010 = vunpack.c.l.s4 1983009808
        %v3011 = vunpack.c.0.s8 %v3010
        %v3012 = vperm.slane %v3008, %v3011
        %v3013 = vsel %vm857, %v2946, %v2935
        %v3015 = vunpack.c.l.s4 1983009808
        %v3016 = vunpack.c.0.s8 %v3015
        %v3017 = vperm.slane %v3013, %v3016
        %v3018 = vrot.slane %v2947, 4
        %v3019 = vsel %vm857, %v3018, %v2945
        %v3021 = vunpack.c.l.s4 1983009808
        %v3022 = vunpack.c.0.s8 %v3021
        %v3023 = vperm.slane %v3019, %v3022
        %v3024 = vrot.slane %v3012, 4
        %v3025 = vsel %vm857, %v3024, %v3006
        %v3026 = vrot.slane %v3006, 4
        %v3027 = vsel %vm857, %v3012, %v3026
        %v3029 = vunpack.c.l.s4 1934713408
        %v3030 = vunpack.c.0.s8 %v3029
        %v3031 = vperm.slane %v3025, %v3030
        %v3033 = vunpack.c.l.s4 1934713408
        %v3034 = vunpack.c.0.s8 %v3033
        %v3035 = vperm.slane %v3027, %v3034
        %v3036 = vrot.slane %v3023, 4
        %v3037 = vsel %vm857, %v3036, %v3017
        %v3038 = vrot.slane %v3017, 4
        %v3039 = vsel %vm857, %v3023, %v3038
        %v3041 = vunpack.c.l.s4 1934713408
        %v3042 = vunpack.c.0.s8 %v3041
        %v3043 = vperm.slane %v3037, %v3042
        %v3045 = vunpack.c.l.s4 1934713408
        %v3046 = vunpack.c.0.s8 %v3045
        %v3047 = vperm.slane %v3039, %v3046
        %v3048 = vrot.slane %v3043, 4
        %v3049 = vsel %vm857, %v3048, %v3031
        %v3050 = vrot.slane %v3031, 4
        %v3051 = vsel %vm857, %v3043, %v3050
        %v3052 = vrot.slane %v3047, 4
        %v3053 = vsel %vm857, %v3052, %v3035
        %v3054 = vrot.slane %v3035, 4
        %v3055 = vsel %vm857, %v3047, %v3054
        %v3056 = vpack.c.bf16 %v2995, %v2995
        %v3057 = vpack.c.bf16 %v2997, %v2997
        %v3058 = vpack.c.bf16 %v2999, %v2999
        %v3059 = vpack.c.bf16 %v3001, %v3001
        %v3060 = vpack.c.bf16 %v3049, %v3049
        %v3061 = vpack.c.bf16 %v3051, %v3051
        %v3062 = vpack.c.bf16 %v3053, %v3053
        %v3063 = vpack.c.bf16 %v3055, %v3055
        %3064 = vrot.lane.b32.xlu0 %v2560, 64
        %v3065 = vpop.permute.xlu0 %3064
        %3066 = vrot.lane.b32.xlu0 %v2562, 64
        %v3067 = vpop.permute.xlu0 %3066
        %3068 = vrot.lane.b32.xlu0 %v2567, 64
        %v3069 = vpop.permute.xlu0 %3068
        %3070 = vrot.lane.b32.xlu0 %v2569, 64
        %v3071 = vpop.permute.xlu0 %3070
        %3072 = vrot.lane.b32.xlu0 %v2573, 64
        %v3073 = vpop.permute.xlu0 %3072
        %3074 = vrot.lane.b32.xlu0 %v2575, 64
        %v3075 = vpop.permute.xlu0 %3074
        %3076 = vrot.lane.b32.xlu0 %v2579, 64
        %v3077 = vpop.permute.xlu0 %3076
        %3078 = vrot.lane.b32.xlu0 %v2581, 64
        %v3079 = vpop.permute.xlu0 %3078
        %v3088 = vrot.slane %v3073, 4
        %v3089 = vsel %vm857, %v3088, %v3065
        %v3090 = vrot.slane %v3065, 4
        %v3091 = vsel %vm857, %v3073, %v3090
        %v3093 = vunpack.c.l.s4 1983009808
        %v3094 = vunpack.c.0.s8 %v3093
        %v3095 = vperm.slane %v3089, %v3094
        %v3097 = vunpack.c.l.s4 1983009808
        %v3098 = vunpack.c.0.s8 %v3097
        %v3099 = vperm.slane %v3091, %v3098
        %v3100 = vrot.slane %v3077, 4
        %v3101 = vsel %vm857, %v3100, %v3069
        %v3102 = vrot.slane %v3069, 4
        %v3103 = vsel %vm857, %v3077, %v3102
        %v3105 = vunpack.c.l.s4 1983009808
        %v3106 = vunpack.c.0.s8 %v3105
        %v3107 = vperm.slane %v3101, %v3106
        %v3109 = vunpack.c.l.s4 1983009808
        %v3110 = vunpack.c.0.s8 %v3109
        %v3111 = vperm.slane %v3103, %v3110
        %v3112 = vrot.slane %v3107, 4
        %v3113 = vsel %vm857, %v3112, %v3095
        %v3114 = vrot.slane %v3095, 4
        %v3115 = vsel %vm857, %v3107, %v3114
        %v3117 = vunpack.c.l.s4 1934713408
        %v3118 = vunpack.c.0.s8 %v3117
        %v3119 = vperm.slane %v3113, %v3118
        %v3121 = vunpack.c.l.s4 1934713408
        %v3122 = vunpack.c.0.s8 %v3121
        %v3123 = vperm.slane %v3115, %v3122
        %v3124 = vrot.slane %v3111, 4
        %v3125 = vsel %vm857, %v3124, %v3099
        %v3126 = vrot.slane %v3099, 4
        %v3127 = vsel %vm857, %v3111, %v3126
        %v3129 = vunpack.c.l.s4 1934713408
        %v3130 = vunpack.c.0.s8 %v3129
        %v3131 = vperm.slane %v3125, %v3130
        %v3133 = vunpack.c.l.s4 1934713408
        %v3134 = vunpack.c.0.s8 %v3133
        %v3135 = vperm.slane %v3127, %v3134
        %v3136 = vrot.slane %v3119, 4
        %v3137 = vsel %vm857, 0.0, %v3136
        %v3138 = vrot.slane %v3123, 4
        %v3139 = vsel %vm857, 0.0, %v3138
        %v3140 = vrot.slane %v3131, 4
        %v3141 = vsel %vm857, 0.0, %v3140
        %v3142 = vrot.slane %v3135, 4
        %v3143 = vsel %vm857, 0.0, %v3142
        %v3144 = vrot.slane %v3075, 4
        %v3145 = vsel %vm857, %v3144, %v3067
        %v3146 = vrot.slane %v3067, 4
        %v3147 = vsel %vm857, %v3075, %v3146
        %v3149 = vunpack.c.l.s4 1983009808
        %v3150 = vunpack.c.0.s8 %v3149
        %v3151 = vperm.slane %v3145, %v3150
        %v3153 = vunpack.c.l.s4 1983009808
        %v3154 = vunpack.c.0.s8 %v3153
        %v3155 = vperm.slane %v3147, %v3154
        %v3156 = vrot.slane %v3079, 4
        %v3157 = vsel %vm857, %v3156, %v3071
        %v3158 = vrot.slane %v3071, 4
        %v3159 = vsel %vm857, %v3079, %v3158
        %v3161 = vunpack.c.l.s4 1983009808
        %v3162 = vunpack.c.0.s8 %v3161
        %v3163 = vperm.slane %v3157, %v3162
        %v3165 = vunpack.c.l.s4 1983009808
        %v3166 = vunpack.c.0.s8 %v3165
        %v3167 = vperm.slane %v3159, %v3166
        %v3168 = vrot.slane %v3163, 4
        %v3169 = vsel %vm857, %v3168, %v3151
        %v3170 = vrot.slane %v3151, 4
        %v3171 = vsel %vm857, %v3163, %v3170
        %v3173 = vunpack.c.l.s4 1934713408
        %v3174 = vunpack.c.0.s8 %v3173
        %v3175 = vperm.slane %v3169, %v3174
        %v3177 = vunpack.c.l.s4 1934713408
        %v3178 = vunpack.c.0.s8 %v3177
        %v3179 = vperm.slane %v3171, %v3178
        %v3180 = vrot.slane %v3167, 4
        %v3181 = vsel %vm857, %v3180, %v3155
        %v3182 = vrot.slane %v3155, 4
        %v3183 = vsel %vm857, %v3167, %v3182
        %v3185 = vunpack.c.l.s4 1934713408
        %v3186 = vunpack.c.0.s8 %v3185
        %v3187 = vperm.slane %v3181, %v3186
        %v3189 = vunpack.c.l.s4 1934713408
        %v3190 = vunpack.c.0.s8 %v3189
        %v3191 = vperm.slane %v3183, %v3190
        %v3192 = vrot.slane %v3175, 4
        %v3193 = vsel %vm857, 0.0, %v3192
        %v3194 = vrot.slane %v3179, 4
        %v3195 = vsel %vm857, 0.0, %v3194
        %v3196 = vrot.slane %v3187, 4
        %v3197 = vsel %vm857, 0.0, %v3196
        %v3198 = vrot.slane %v3191, 4
        %v3199 = vsel %vm857, 0.0, %v3198
        %v3200 = vsel %vm857, %v3138, %v3119
        %v3202 = vunpack.c.l.s4 1983009808
        %v3203 = vunpack.c.0.s8 %v3202
        %v3204 = vperm.slane %v3200, %v3203
        %v3205 = vrot.slane %v3139, 4
        %v3206 = vsel %vm857, %v3205, %v3137
        %v3208 = vunpack.c.l.s4 1983009808
        %v3209 = vunpack.c.0.s8 %v3208
        %v3210 = vperm.slane %v3206, %v3209
        %v3211 = vsel %vm857, %v3142, %v3131
        %v3213 = vunpack.c.l.s4 1983009808
        %v3214 = vunpack.c.0.s8 %v3213
        %v3215 = vperm.slane %v3211, %v3214
        %v3216 = vrot.slane %v3143, 4
        %v3217 = vsel %vm857, %v3216, %v3141
        %v3219 = vunpack.c.l.s4 1983009808
        %v3220 = vunpack.c.0.s8 %v3219
        %v3221 = vperm.slane %v3217, %v3220
        %v3222 = vrot.slane %v3210, 4
        %v3223 = vsel %vm857, %v3222, %v3204
        %v3224 = vrot.slane %v3204, 4
        %v3225 = vsel %vm857, %v3210, %v3224
        %v3227 = vunpack.c.l.s4 1934713408
        %v3228 = vunpack.c.0.s8 %v3227
        %v3229 = vperm.slane %v3223, %v3228
        %v3231 = vunpack.c.l.s4 1934713408
        %v3232 = vunpack.c.0.s8 %v3231
        %v3233 = vperm.slane %v3225, %v3232
        %v3234 = vrot.slane %v3221, 4
        %v3235 = vsel %vm857, %v3234, %v3215
        %v3236 = vrot.slane %v3215, 4
        %v3237 = vsel %vm857, %v3221, %v3236
        %v3239 = vunpack.c.l.s4 1934713408
        %v3240 = vunpack.c.0.s8 %v3239
        %v3241 = vperm.slane %v3235, %v3240
        %v3243 = vunpack.c.l.s4 1934713408
        %v3244 = vunpack.c.0.s8 %v3243
        %v3245 = vperm.slane %v3237, %v3244
        %v3246 = vrot.slane %v3241, 4
        %v3247 = vsel %vm857, %v3246, %v3229
        %v3248 = vrot.slane %v3229, 4
        %v3249 = vsel %vm857, %v3241, %v3248
        %v3250 = vrot.slane %v3245, 4
        %v3251 = vsel %vm857, %v3250, %v3233
        %v3252 = vrot.slane %v3233, 4
        %v3253 = vsel %vm857, %v3245, %v3252
        %v3254 = vsel %vm857, %v3194, %v3175
        %v3256 = vunpack.c.l.s4 1983009808
        %v3257 = vunpack.c.0.s8 %v3256
        %v3258 = vperm.slane %v3254, %v3257
        %v3259 = vrot.slane %v3195, 4
        %v3260 = vsel %vm857, %v3259, %v3193
        %v3262 = vunpack.c.l.s4 1983009808
        %v3263 = vunpack.c.0.s8 %v3262
        %v3264 = vperm.slane %v3260, %v3263
        %v3265 = vsel %vm857, %v3198, %v3187
        %v3267 = vunpack.c.l.s4 1983009808
        %v3268 = vunpack.c.0.s8 %v3267
        %v3269 = vperm.slane %v3265, %v3268
        %v3270 = vrot.slane %v3199, 4
        %v3271 = vsel %vm857, %v3270, %v3197
        %v3273 = vunpack.c.l.s4 1983009808
        %v3274 = vunpack.c.0.s8 %v3273
        %v3275 = vperm.slane %v3271, %v3274
        %v3276 = vrot.slane %v3264, 4
        %v3277 = vsel %vm857, %v3276, %v3258
        %v3278 = vrot.slane %v3258, 4
        %v3279 = vsel %vm857, %v3264, %v3278
        %v3281 = vunpack.c.l.s4 1934713408
        %v3282 = vunpack.c.0.s8 %v3281
        %v3283 = vperm.slane %v3277, %v3282
        %v3285 = vunpack.c.l.s4 1934713408
        %v3286 = vunpack.c.0.s8 %v3285
        %v3287 = vperm.slane %v3279, %v3286
        %v3288 = vrot.slane %v3275, 4
        %v3289 = vsel %vm857, %v3288, %v3269
        %v3290 = vrot.slane %v3269, 4
        %v3291 = vsel %vm857, %v3275, %v3290
        %v3293 = vunpack.c.l.s4 1934713408
        %v3294 = vunpack.c.0.s8 %v3293
        %v3295 = vperm.slane %v3289, %v3294
        %v3297 = vunpack.c.l.s4 1934713408
        %v3298 = vunpack.c.0.s8 %v3297
        %v3299 = vperm.slane %v3291, %v3298
        %v3300 = vrot.slane %v3295, 4
        %v3301 = vsel %vm857, %v3300, %v3283
        %v3302 = vrot.slane %v3283, 4
        %v3303 = vsel %vm857, %v3295, %v3302
        %v3304 = vrot.slane %v3299, 4
        %v3305 = vsel %vm857, %v3304, %v3287
        %v3306 = vrot.slane %v3287, 4
        %v3307 = vsel %vm857, %v3299, %v3306
        %v3308 = vpack.c.bf16 %v3247, %v3247
        %v3309 = vpack.c.bf16 %v3249, %v3249
        %v3310 = vpack.c.bf16 %v3251, %v3251
        %v3311 = vpack.c.bf16 %v3253, %v3253
        %v3312 = vpack.c.bf16 %v3301, %v3301
        %v3313 = vpack.c.bf16 %v3303, %v3303
        %v3314 = vpack.c.bf16 %v3305, %v3305
        %v3315 = vpack.c.bf16 %v3307, %v3307
        %v3317 = vsel %vm1589, %v2804, 0
        %v3320 = vsel %vm1589, %v3056, 0
        %3322 = vmatpush.bf16.xpose.msra.mxu0 0
        %3323 = vmatpush.bf16.xpose.msra.mxu0 0
        %3324 = vmatpush.bf16.xpose.msra.mxu0 0
        %3325 = vmatpush.bf16.xpose.msra.mxu0 0
        %3326 = vmatpush.bf16.xpose.msra.mxu0 0
        %3327 = vmatpush.bf16.xpose.msra.mxu0 0
        %3328 = vmatpush.bf16.xpose.msra.mxu0 0
        %3329 = vmatpush.bf16.xpose.msra.mxu0 %v3320
        %3330 = vmatmul.bf16.gmra.mxu0 %v3317
        %v3331 = vpop.f32.mrf.mxu0
        %v3332 = vadd.f32 0.0, %v3331
        %v3333 = vpop.f32.mrf.mxu0
        %3334 = vdwg.mxu0
        %v3336 = vsel %vm1589, %v2805, 0
        %v3339 = vsel %vm1589, %v3057, 0
        %3341 = vmatpush.bf16.xpose.msra.mxu0 0
        %3342 = vmatpush.bf16.xpose.msra.mxu0 0
        %3343 = vmatpush.bf16.xpose.msra.mxu0 0
        %3344 = vmatpush.bf16.xpose.msra.mxu0 0
        %3345 = vmatpush.bf16.xpose.msra.mxu0 0
        %3346 = vmatpush.bf16.xpose.msra.mxu0 0
        %3347 = vmatpush.bf16.xpose.msra.mxu0 0
        %3348 = vmatpush.bf16.xpose.msra.mxu0 %v3339
        %3349 = vmatmul.bf16.gmra.mxu0 %v3336
        %v3350 = vpop.f32.mrf.mxu0
        %v3351 = vadd.f32 0.0, %v3350
        %v3352 = vpop.f32.mrf.mxu0
        %3353 = vdwg.mxu0
        %v3355 = vsel %vm1589, %v2806, 0
        %v3358 = vsel %vm1589, %v3058, 0
        %3360 = vmatpush.bf16.xpose.msra.mxu0 0
        %3361 = vmatpush.bf16.xpose.msra.mxu0 0
        %3362 = vmatpush.bf16.xpose.msra.mxu0 0
        %3363 = vmatpush.bf16.xpose.msra.mxu0 0
        %3364 = vmatpush.bf16.xpose.msra.mxu0 0
        %3365 = vmatpush.bf16.xpose.msra.mxu0 0
        %3366 = vmatpush.bf16.xpose.msra.mxu0 0
        %3367 = vmatpush.bf16.xpose.msra.mxu0 %v3358
        %3368 = vmatmul.bf16.gmra.mxu0 %v3355
        %v3369 = vpop.f32.mrf.mxu0
        %v3370 = vadd.f32 0.0, %v3369
        %v3371 = vpop.f32.mrf.mxu0
        %3372 = vdwg.mxu0
        %v3374 = vsel %vm1589, %v2807, 0
        %v3377 = vsel %vm1589, %v3059, 0
        %3379 = vmatpush.bf16.xpose.msra.mxu0 0
        %3380 = vmatpush.bf16.xpose.msra.mxu0 0
        %3381 = vmatpush.bf16.xpose.msra.mxu0 0
        %3382 = vmatpush.bf16.xpose.msra.mxu0 0
        %3383 = vmatpush.bf16.xpose.msra.mxu0 0
        %3384 = vmatpush.bf16.xpose.msra.mxu0 0
        %3385 = vmatpush.bf16.xpose.msra.mxu0 0
        %3386 = vmatpush.bf16.xpose.msra.mxu0 %v3377
        %3387 = vmatmul.bf16.gmra.mxu0 %v3374
        %v3388 = vpop.f32.mrf.mxu0
        %v3389 = vadd.f32 0.0, %v3388
        %v3390 = vpop.f32.mrf.mxu0
        %3391 = vdwg.mxu0
        %v3393 = vsel %vm1589, %v2808, 0
        %v3396 = vsel %vm1589, %v3060, 0
        %3398 = vmatpush.bf16.xpose.msra.mxu0 0
        %3399 = vmatpush.bf16.xpose.msra.mxu0 0
        %3400 = vmatpush.bf16.xpose.msra.mxu0 0
        %3401 = vmatpush.bf16.xpose.msra.mxu0 0
        %3402 = vmatpush.bf16.xpose.msra.mxu0 0
        %3403 = vmatpush.bf16.xpose.msra.mxu0 0
        %3404 = vmatpush.bf16.xpose.msra.mxu0 0
        %3405 = vmatpush.bf16.xpose.msra.mxu0 %v3396
        %3406 = vmatmul.bf16.gmra.mxu0 %v3393
        %v3407 = vpop.f32.mrf.mxu0
        %v3408 = vadd.f32 0.0, %v3407
        %v3409 = vpop.f32.mrf.mxu0
        %3410 = vdwg.mxu0
        %v3412 = vsel %vm1589, %v2809, 0
        %v3415 = vsel %vm1589, %v3061, 0
        %3417 = vmatpush.bf16.xpose.msra.mxu0 0
        %3418 = vmatpush.bf16.xpose.msra.mxu0 0
        %3419 = vmatpush.bf16.xpose.msra.mxu0 0
        %3420 = vmatpush.bf16.xpose.msra.mxu0 0
        %3421 = vmatpush.bf16.xpose.msra.mxu0 0
        %3422 = vmatpush.bf16.xpose.msra.mxu0 0
        %3423 = vmatpush.bf16.xpose.msra.mxu0 0
        %3424 = vmatpush.bf16.xpose.msra.mxu0 %v3415
        %3425 = vmatmul.bf16.gmra.mxu0 %v3412
        %v3426 = vpop.f32.mrf.mxu0
        %v3427 = vadd.f32 0.0, %v3426
        %v3428 = vpop.f32.mrf.mxu0
        %3429 = vdwg.mxu0
        %v3431 = vsel %vm1589, %v2810, 0
        %v3434 = vsel %vm1589, %v3062, 0
        %3436 = vmatpush.bf16.xpose.msra.mxu0 0
        %3437 = vmatpush.bf16.xpose.msra.mxu0 0
        %3438 = vmatpush.bf16.xpose.msra.mxu0 0
        %3439 = vmatpush.bf16.xpose.msra.mxu0 0
        %3440 = vmatpush.bf16.xpose.msra.mxu0 0
        %3441 = vmatpush.bf16.xpose.msra.mxu0 0
        %3442 = vmatpush.bf16.xpose.msra.mxu0 0
        %3443 = vmatpush.bf16.xpose.msra.mxu0 %v3434
        %3444 = vmatmul.bf16.gmra.mxu0 %v3431
        %v3445 = vpop.f32.mrf.mxu0
        %v3446 = vadd.f32 0.0, %v3445
        %v3447 = vpop.f32.mrf.mxu0
        %3448 = vdwg.mxu0
        %v3450 = vsel %vm1589, %v2811, 0
        %v3453 = vsel %vm1589, %v3063, 0
        %3455 = vmatpush.bf16.xpose.msra.mxu0 0
        %3456 = vmatpush.bf16.xpose.msra.mxu0 0
        %3457 = vmatpush.bf16.xpose.msra.mxu0 0
        %3458 = vmatpush.bf16.xpose.msra.mxu0 0
        %3459 = vmatpush.bf16.xpose.msra.mxu0 0
        %3460 = vmatpush.bf16.xpose.msra.mxu0 0
        %3461 = vmatpush.bf16.xpose.msra.mxu0 0
        %3462 = vmatpush.bf16.xpose.msra.mxu0 %v3453
        %3463 = vmatmul.bf16.gmra.mxu0 %v3450
        %v3464 = vpop.f32.mrf.mxu0
        %v3465 = vadd.f32 0.0, %v3464
        %v3466 = vpop.f32.mrf.mxu0
        %3467 = vdwg.mxu0
        %v3468 = vmul.f32 %v3332, 0.35355338
        %v3469 = vmul.f32 %v3351, 0.35355338
        %v3470 = vmul.f32 %v3370, 0.35355338
        %v3471 = vmul.f32 %v3389, 0.35355338
        %v3472 = vmul.f32 %v3408, 0.35355338
        %v3473 = vmul.f32 %v3427, 0.35355338
        %v3474 = vmul.f32 %v3446, 0.35355338
        %v3475 = vmul.f32 %v3465, 0.35355338
        %v3476 = vadd.f32 %v3468, %v794
        %v3477 = vadd.f32 %v3469, %v794
        %v3478 = vadd.f32 %v3470, %v794
        %v3479 = vadd.f32 %v3471, %v794
        %v3480 = vadd.f32 %v3472, %v795
        %v3481 = vadd.f32 %v3473, %v795
        %v3482 = vadd.f32 %v3474, %v795
        %v3483 = vadd.f32 %v3475, %v795
        %v3484 = vsel %vm1589, %v3476, -inf
        %3485 = vmax.xlane.f32.xlu0 %v3484
        %v3486 = vpop.xlane.xlu0 %3485
        %v3487 = vsel %vm1589, %v3477, -inf
        %3488 = vmax.xlane.f32.xlu0 %v3487
        %v3489 = vpop.xlane.xlu0 %3488
        %v3490 = vsel %vm1589, %v3478, -inf
        %3491 = vmax.xlane.f32.xlu0 %v3490
        %v3492 = vpop.xlane.xlu0 %3491
        %v3493 = vsel %vm1589, %v3479, -inf
        %3494 = vmax.xlane.f32.xlu0 %v3493
        %v3495 = vpop.xlane.xlu0 %3494
        %v3496 = vsel %vm1589, %v3480, -inf
        %3497 = vmax.xlane.f32.xlu0 %v3496
        %v3498 = vpop.xlane.xlu0 %3497
        %v3499 = vsel %vm1589, %v3481, -inf
        %3500 = vmax.xlane.f32.xlu0 %v3499
        %v3501 = vpop.xlane.xlu0 %3500
        %v3502 = vsel %vm1589, %v3482, -inf
        %3503 = vmax.xlane.f32.xlu0 %v3502
        %v3504 = vpop.xlane.xlu0 %3503
        %v3505 = vsel %vm1589, %v3483, -inf
        %3506 = vmax.xlane.f32.xlu0 %v3505
        %v3507 = vpop.xlane.xlu0 %3506
        %v3508 = vsub.f32 %v3476, %v3486
        %v3509 = vsub.f32 %v3477, %v3489
        %v3510 = vsub.f32 %v3478, %v3492
        %v3511 = vsub.f32 %v3479, %v3495
        %v3512 = vsub.f32 %v3480, %v3498
        %v3513 = vsub.f32 %v3481, %v3501
        %v3514 = vsub.f32 %v3482, %v3504
        %v3515 = vsub.f32 %v3483, %v3507
        %v3516 = vmul.f32 %v3508, 1.442695
        %v3517 = vpow.pop %v3516
        %v3518 = vmul.f32 %v3509, 1.442695
        %v3519 = vpow.pop %v3518
        %v3520 = vmul.f32 %v3510, 1.442695
        %v3521 = vpow.pop %v3520
        %v3522 = vmul.f32 %v3511, 1.442695
        %v3523 = vpow.pop %v3522
        %v3524 = vmul.f32 %v3512, 1.442695
        %v3525 = vpow.pop %v3524
        %v3526 = vmul.f32 %v3513, 1.442695
        %v3527 = vpow.pop %v3526
        %v3528 = vmul.f32 %v3514, 1.442695
        %v3529 = vpow.pop %v3528
        %v3530 = vmul.f32 %v3515, 1.442695
        %v3531 = vpow.pop %v3530
        %v3532 = vsel %vm1589, %v3517, 0.0
        %3533 = vadd.xlane.f32.xlu0 %v3532
        %v3534 = vpop.xlane.xlu0 %3533
        %v3535 = vsel %vm1589, %v3519, 0.0
        %3536 = vadd.xlane.f32.xlu0 %v3535
        %v3537 = vpop.xlane.xlu0 %3536
        %v3538 = vsel %vm1589, %v3521, 0.0
        %3539 = vadd.xlane.f32.xlu0 %v3538
        %v3540 = vpop.xlane.xlu0 %3539
        %v3541 = vsel %vm1589, %v3523, 0.0
        %3542 = vadd.xlane.f32.xlu0 %v3541
        %v3543 = vpop.xlane.xlu0 %3542
        %v3544 = vsel %vm1589, %v3525, 0.0
        %3545 = vadd.xlane.f32.xlu0 %v3544
        %v3546 = vpop.xlane.xlu0 %3545
        %v3547 = vsel %vm1589, %v3527, 0.0
        %3548 = vadd.xlane.f32.xlu0 %v3547
        %v3549 = vpop.xlane.xlu0 %3548
        %v3550 = vsel %vm1589, %v3529, 0.0
        %3551 = vadd.xlane.f32.xlu0 %v3550
        %v3552 = vpop.xlane.xlu0 %3551
        %v3553 = vsel %vm1589, %v3531, 0.0
        %3554 = vadd.xlane.f32.xlu0 %v3553
        %v3555 = vpop.xlane.xlu0 %3554
        %v3556 = vrcp.pop %v3534
        %v3557 = vrcp.pop %v3537
        %v3558 = vrcp.pop %v3540
        %v3559 = vrcp.pop %v3543
        %v3560 = vrcp.pop %v3546
        %v3561 = vrcp.pop %v3549
        %v3562 = vrcp.pop %v3552
        %v3563 = vrcp.pop %v3555
        %v3564 = vmul.f32 %v3517, %v3556
        %v3565 = vmul.f32 %v3519, %v3557
        %v3566 = vmul.f32 %v3521, %v3558
        %v3567 = vmul.f32 %v3523, %v3559
        %v3568 = vmul.f32 %v3525, %v3560
        %v3569 = vmul.f32 %v3527, %v3561
        %v3570 = vmul.f32 %v3529, %v3562
        %v3571 = vmul.f32 %v3531, %v3563
        %v3572 = vpack.c.bf16 %v3564, %v3564
        %v3573 = vpack.c.bf16 %v3565, %v3565
        %v3574 = vpack.c.bf16 %v3566, %v3566
        %v3575 = vpack.c.bf16 %v3567, %v3567
        %v3576 = vpack.c.bf16 %v3568, %v3568
        %v3577 = vpack.c.bf16 %v3569, %v3569
        %v3578 = vpack.c.bf16 %v3570, %v3570
        %v3579 = vpack.c.bf16 %v3571, %v3571
        %v3581 = vsel %vm1589, %v3572, 0
        %v3584 = vsel %vm1857, %v3308, 0
        %3586 = vmatpush.bf16.msra.mxu0 0
        %3587 = vmatpush.bf16.msra.mxu0 0
        %3588 = vmatpush.bf16.msra.mxu0 0
        %3589 = vmatpush.bf16.msra.mxu0 0
        %3590 = vmatpush.bf16.msra.mxu0 0
        %3591 = vmatpush.bf16.msra.mxu0 0
        %3592 = vmatpush.bf16.msra.mxu0 0
        %3593 = vmatpush.bf16.msra.mxu0 %v3584
        %3594 = vmatmul.bf16.gmra.mxu0 %v3581
        %v3595 = vpop.f32.mrf.mxu0
        %v3596 = vadd.f32 0.0, %v3595
        %v3597 = vpop.f32.mrf.mxu0
        %3598 = vdwg.mxu0
        %v3600 = vsel %vm1589, %v3573, 0
        %v3603 = vsel %vm1857, %v3309, 0
        %3605 = vmatpush.bf16.msra.mxu0 0
        %3606 = vmatpush.bf16.msra.mxu0 0
        %3607 = vmatpush.bf16.msra.mxu0 0
        %3608 = vmatpush.bf16.msra.mxu0 0
        %3609 = vmatpush.bf16.msra.mxu0 0
        %3610 = vmatpush.bf16.msra.mxu0 0
        %3611 = vmatpush.bf16.msra.mxu0 0
        %3612 = vmatpush.bf16.msra.mxu0 %v3603
        %3613 = vmatmul.bf16.gmra.mxu0 %v3600
        %v3614 = vpop.f32.mrf.mxu0
        %v3615 = vadd.f32 0.0, %v3614
        %v3616 = vpop.f32.mrf.mxu0
        %3617 = vdwg.mxu0
        %v3619 = vsel %vm1589, %v3574, 0
        %v3622 = vsel %vm1857, %v3310, 0
        %3624 = vmatpush.bf16.msra.mxu0 0
        %3625 = vmatpush.bf16.msra.mxu0 0
        %3626 = vmatpush.bf16.msra.mxu0 0
        %3627 = vmatpush.bf16.msra.mxu0 0
        %3628 = vmatpush.bf16.msra.mxu0 0
        %3629 = vmatpush.bf16.msra.mxu0 0
        %3630 = vmatpush.bf16.msra.mxu0 0
        %3631 = vmatpush.bf16.msra.mxu0 %v3622
        %3632 = vmatmul.bf16.gmra.mxu0 %v3619
        %v3633 = vpop.f32.mrf.mxu0
        %v3634 = vadd.f32 0.0, %v3633
        %v3635 = vpop.f32.mrf.mxu0
        %3636 = vdwg.mxu0
        %v3638 = vsel %vm1589, %v3575, 0
        %v3641 = vsel %vm1857, %v3311, 0
        %3643 = vmatpush.bf16.msra.mxu0 0
        %3644 = vmatpush.bf16.msra.mxu0 0
        %3645 = vmatpush.bf16.msra.mxu0 0
        %3646 = vmatpush.bf16.msra.mxu0 0
        %3647 = vmatpush.bf16.msra.mxu0 0
        %3648 = vmatpush.bf16.msra.mxu0 0
        %3649 = vmatpush.bf16.msra.mxu0 0
        %3650 = vmatpush.bf16.msra.mxu0 %v3641
        %3651 = vmatmul.bf16.gmra.mxu0 %v3638
        %v3652 = vpop.f32.mrf.mxu0
        %v3653 = vadd.f32 0.0, %v3652
        %v3654 = vpop.f32.mrf.mxu0
        %3655 = vdwg.mxu0
        %v3657 = vsel %vm1589, %v3576, 0
        %v3660 = vsel %vm1857, %v3312, 0
        %3662 = vmatpush.bf16.msra.mxu0 0
        %3663 = vmatpush.bf16.msra.mxu0 0
        %3664 = vmatpush.bf16.msra.mxu0 0
        %3665 = vmatpush.bf16.msra.mxu0 0
        %3666 = vmatpush.bf16.msra.mxu0 0
        %3667 = vmatpush.bf16.msra.mxu0 0
        %3668 = vmatpush.bf16.msra.mxu0 0
        %3669 = vmatpush.bf16.msra.mxu0 %v3660
        %3670 = vmatmul.bf16.gmra.mxu0 %v3657
        %v3671 = vpop.f32.mrf.mxu0
        %v3672 = vadd.f32 0.0, %v3671
        %v3673 = vpop.f32.mrf.mxu0
        %3674 = vdwg.mxu0
        %v3676 = vsel %vm1589, %v3577, 0
        %v3679 = vsel %vm1857, %v3313, 0
        %3681 = vmatpush.bf16.msra.mxu0 0
        %3682 = vmatpush.bf16.msra.mxu0 0
        %3683 = vmatpush.bf16.msra.mxu0 0
        %3684 = vmatpush.bf16.msra.mxu0 0
        %3685 = vmatpush.bf16.msra.mxu0 0
        %3686 = vmatpush.bf16.msra.mxu0 0
        %3687 = vmatpush.bf16.msra.mxu0 0
        %3688 = vmatpush.bf16.msra.mxu0 %v3679
        %3689 = vmatmul.bf16.gmra.mxu0 %v3676
        %v3690 = vpop.f32.mrf.mxu0
        %v3691 = vadd.f32 0.0, %v3690
        %v3692 = vpop.f32.mrf.mxu0
        %3693 = vdwg.mxu0
        %v3695 = vsel %vm1589, %v3578, 0
        %v3698 = vsel %vm1857, %v3314, 0
        %3700 = vmatpush.bf16.msra.mxu0 0
        %3701 = vmatpush.bf16.msra.mxu0 0
        %3702 = vmatpush.bf16.msra.mxu0 0
        %3703 = vmatpush.bf16.msra.mxu0 0
        %3704 = vmatpush.bf16.msra.mxu0 0
        %3705 = vmatpush.bf16.msra.mxu0 0
        %3706 = vmatpush.bf16.msra.mxu0 0
        %3707 = vmatpush.bf16.msra.mxu0 %v3698
        %3708 = vmatmul.bf16.gmra.mxu0 %v3695
        %v3709 = vpop.f32.mrf.mxu0
        %v3710 = vadd.f32 0.0, %v3709
        %v3711 = vpop.f32.mrf.mxu0
        %3712 = vdwg.mxu0
        %v3714 = vsel %vm1589, %v3579, 0
        %v3717 = vsel %vm1857, %v3315, 0
        %3719 = vmatpush.bf16.msra.mxu0 0
        %3720 = vmatpush.bf16.msra.mxu0 0
        %3721 = vmatpush.bf16.msra.mxu0 0
        %3722 = vmatpush.bf16.msra.mxu0 0
        %3723 = vmatpush.bf16.msra.mxu0 0
        %3724 = vmatpush.bf16.msra.mxu0 0
        %3725 = vmatpush.bf16.msra.mxu0 0
        %3726 = vmatpush.bf16.msra.mxu0 %v3717
        %3727 = vmatmul.bf16.gmra.mxu0 %v3714
        %v3728 = vpop.f32.mrf.mxu0
        %v3729 = vadd.f32 0.0, %v3728
        %v3730 = vpop.f32.mrf.mxu0
        %3731 = vdwg.mxu0
        %v3732 = vrot.slane %v3634, 4
        %v3733 = vsel %vm857, %v3732, %v3596
        %v3734 = vrot.slane %v3596, 4
        %v3735 = vsel %vm857, %v3634, %v3734
        %v3737 = vunpack.c.l.s4 1983009808
        %v3738 = vunpack.c.0.s8 %v3737
        %v3739 = vperm.slane %v3733, %v3738
        %v3741 = vunpack.c.l.s4 1983009808
        %v3742 = vunpack.c.0.s8 %v3741
        %v3743 = vperm.slane %v3735, %v3742
        %v3744 = vrot.slane %v3653, 4
        %v3745 = vsel %vm857, %v3744, %v3615
        %v3746 = vrot.slane %v3615, 4
        %v3747 = vsel %vm857, %v3653, %v3746
        %v3749 = vunpack.c.l.s4 1983009808
        %v3750 = vunpack.c.0.s8 %v3749
        %v3751 = vperm.slane %v3745, %v3750
        %v3753 = vunpack.c.l.s4 1983009808
        %v3754 = vunpack.c.0.s8 %v3753
        %v3755 = vperm.slane %v3747, %v3754
        %v3756 = vrot.slane %v3751, 4
        %v3757 = vsel %vm857, %v3756, %v3739
        %v3758 = vrot.slane %v3739, 4
        %v3759 = vsel %vm857, %v3751, %v3758
        %v3761 = vunpack.c.l.s4 1934713408
        %v3762 = vunpack.c.0.s8 %v3761
        %v3763 = vperm.slane %v3757, %v3762
        %v3765 = vunpack.c.l.s4 1934713408
        %v3766 = vunpack.c.0.s8 %v3765
        %v3767 = vperm.slane %v3759, %v3766
        %v3768 = vrot.slane %v3755, 4
        %v3769 = vsel %vm857, %v3768, %v3743
        %v3770 = vrot.slane %v3743, 4
        %v3771 = vsel %vm857, %v3755, %v3770
        %v3773 = vunpack.c.l.s4 1934713408
        %v3774 = vunpack.c.0.s8 %v3773
        %v3775 = vperm.slane %v3769, %v3774
        %v3777 = vunpack.c.l.s4 1934713408
        %v3778 = vunpack.c.0.s8 %v3777
        %v3779 = vperm.slane %v3771, %v3778
        %v3780 = vrot.slane %v3763, 4
        %v3781 = vsel %vm857, 0.0, %v3780
        %v3782 = vrot.slane %v3767, 4
        %v3783 = vsel %vm857, 0.0, %v3782
        %v3784 = vrot.slane %v3775, 4
        %v3785 = vsel %vm857, 0.0, %v3784
        %v3786 = vrot.slane %v3779, 4
        %v3787 = vsel %vm857, 0.0, %v3786
        %v3788 = vrot.slane %v3710, 4
        %v3789 = vsel %vm857, %v3788, %v3672
        %v3790 = vrot.slane %v3672, 4
        %v3791 = vsel %vm857, %v3710, %v3790
        %v3793 = vunpack.c.l.s4 1983009808
        %v3794 = vunpack.c.0.s8 %v3793
        %v3795 = vperm.slane %v3789, %v3794
        %v3797 = vunpack.c.l.s4 1983009808
        %v3798 = vunpack.c.0.s8 %v3797
        %v3799 = vperm.slane %v3791, %v3798
        %v3800 = vrot.slane %v3729, 4
        %v3801 = vsel %vm857, %v3800, %v3691
        %v3802 = vrot.slane %v3691, 4
        %v3803 = vsel %vm857, %v3729, %v3802
        %v3805 = vunpack.c.l.s4 1983009808
        %v3806 = vunpack.c.0.s8 %v3805
        %v3807 = vperm.slane %v3801, %v3806
        %v3809 = vunpack.c.l.s4 1983009808
        %v3810 = vunpack.c.0.s8 %v3809
        %v3811 = vperm.slane %v3803, %v3810
        %v3812 = vrot.slane %v3807, 4
        %v3813 = vsel %vm857, %v3812, %v3795
        %v3814 = vrot.slane %v3795, 4
        %v3815 = vsel %vm857, %v3807, %v3814
        %v3817 = vunpack.c.l.s4 1934713408
        %v3818 = vunpack.c.0.s8 %v3817
        %v3819 = vperm.slane %v3813, %v3818
        %v3821 = vunpack.c.l.s4 1934713408
        %v3822 = vunpack.c.0.s8 %v3821
        %v3823 = vperm.slane %v3815, %v3822
        %v3824 = vrot.slane %v3811, 4
        %v3825 = vsel %vm857, %v3824, %v3799
        %v3826 = vrot.slane %v3799, 4
        %v3827 = vsel %vm857, %v3811, %v3826
        %v3829 = vunpack.c.l.s4 1934713408
        %v3830 = vunpack.c.0.s8 %v3829
        %v3831 = vperm.slane %v3825, %v3830
        %v3833 = vunpack.c.l.s4 1934713408
        %v3834 = vunpack.c.0.s8 %v3833
        %v3835 = vperm.slane %v3827, %v3834
        %v3836 = vrot.slane %v3819, 4
        %v3837 = vsel %vm857, 0.0, %v3836
        %v3838 = vrot.slane %v3823, 4
        %v3839 = vsel %vm857, 0.0, %v3838
        %v3840 = vrot.slane %v3831, 4
        %v3841 = vsel %vm857, 0.0, %v3840
        %v3842 = vrot.slane %v3835, 4
        %v3843 = vsel %vm857, 0.0, %v3842
        %v3844 = vsel %vm857, %v3782, %v3763
        %v3846 = vunpack.c.l.s4 1983009808
        %v3847 = vunpack.c.0.s8 %v3846
        %v3848 = vperm.slane %v3844, %v3847
        %v3849 = vrot.slane %v3783, 4
        %v3850 = vsel %vm857, %v3849, %v3781
        %v3852 = vunpack.c.l.s4 1983009808
        %v3853 = vunpack.c.0.s8 %v3852
        %v3854 = vperm.slane %v3850, %v3853
        %v3855 = vsel %vm857, %v3786, %v3775
        %v3857 = vunpack.c.l.s4 1983009808
        %v3858 = vunpack.c.0.s8 %v3857
        %v3859 = vperm.slane %v3855, %v3858
        %v3860 = vrot.slane %v3787, 4
        %v3861 = vsel %vm857, %v3860, %v3785
        %v3863 = vunpack.c.l.s4 1983009808
        %v3864 = vunpack.c.0.s8 %v3863
        %v3865 = vperm.slane %v3861, %v3864
        %v3866 = vrot.slane %v3854, 4
        %v3867 = vsel %vm857, %v3866, %v3848
        %v3868 = vrot.slane %v3848, 4
        %v3869 = vsel %vm857, %v3854, %v3868
        %v3871 = vunpack.c.l.s4 1934713408
        %v3872 = vunpack.c.0.s8 %v3871
        %v3873 = vperm.slane %v3867, %v3872
        %v3875 = vunpack.c.l.s4 1934713408
        %v3876 = vunpack.c.0.s8 %v3875
        %v3877 = vperm.slane %v3869, %v3876
        %v3878 = vrot.slane %v3865, 4
        %v3879 = vsel %vm857, %v3878, %v3859
        %v3880 = vrot.slane %v3859, 4
        %v3881 = vsel %vm857, %v3865, %v3880
        %v3883 = vunpack.c.l.s4 1934713408
        %v3884 = vunpack.c.0.s8 %v3883
        %v3885 = vperm.slane %v3879, %v3884
        %v3887 = vunpack.c.l.s4 1934713408
        %v3888 = vunpack.c.0.s8 %v3887
        %v3889 = vperm.slane %v3881, %v3888
        %v3890 = vrot.slane %v3885, 4
        %v3891 = vsel %vm857, %v3890, %v3873
        %v3892 = vrot.slane %v3873, 4
        %v3893 = vsel %vm857, %v3885, %v3892
        %v3894 = vrot.slane %v3889, 4
        %v3895 = vsel %vm857, %v3894, %v3877
        %v3896 = vrot.slane %v3877, 4
        %v3897 = vsel %vm857, %v3889, %v3896
        %v3898 = vsel %vm857, %v3838, %v3819
        %v3900 = vunpack.c.l.s4 1983009808
        %v3901 = vunpack.c.0.s8 %v3900
        %v3902 = vperm.slane %v3898, %v3901
        %v3903 = vrot.slane %v3839, 4
        %v3904 = vsel %vm857, %v3903, %v3837
        %v3906 = vunpack.c.l.s4 1983009808
        %v3907 = vunpack.c.0.s8 %v3906
        %v3908 = vperm.slane %v3904, %v3907
        %v3909 = vsel %vm857, %v3842, %v3831
        %v3911 = vunpack.c.l.s4 1983009808
        %v3912 = vunpack.c.0.s8 %v3911
        %v3913 = vperm.slane %v3909, %v3912
        %v3914 = vrot.slane %v3843, 4
        %v3915 = vsel %vm857, %v3914, %v3841
        %v3917 = vunpack.c.l.s4 1983009808
        %v3918 = vunpack.c.0.s8 %v3917
        %v3919 = vperm.slane %v3915, %v3918
        %v3920 = vrot.slane %v3908, 4
        %v3921 = vsel %vm857, %v3920, %v3902
        %v3922 = vrot.slane %v3902, 4
        %v3923 = vsel %vm857, %v3908, %v3922
        %v3925 = vunpack.c.l.s4 1934713408
        %v3926 = vunpack.c.0.s8 %v3925
        %v3927 = vperm.slane %v3921, %v3926
        %v3929 = vunpack.c.l.s4 1934713408
        %v3930 = vunpack.c.0.s8 %v3929
        %v3931 = vperm.slane %v3923, %v3930
        %v3932 = vrot.slane %v3919, 4
        %v3933 = vsel %vm857, %v3932, %v3913
        %v3934 = vrot.slane %v3913, 4
        %v3935 = vsel %vm857, %v3919, %v3934
        %v3937 = vunpack.c.l.s4 1934713408
        %v3938 = vunpack.c.0.s8 %v3937
        %v3939 = vperm.slane %v3933, %v3938
        %v3941 = vunpack.c.l.s4 1934713408
        %v3942 = vunpack.c.0.s8 %v3941
        %v3943 = vperm.slane %v3935, %v3942
        %v3944 = vrot.slane %v3939, 4
        %v3945 = vsel %vm857, %v3944, %v3927
        %v3946 = vrot.slane %v3927, 4
        %v3947 = vsel %vm857, %v3939, %v3946
        %v3948 = vrot.slane %v3943, 4
        %v3949 = vsel %vm857, %v3948, %v3931
        %v3950 = vrot.slane %v3931, 4
        %v3951 = vsel %vm857, %v3943, %v3950
        %3954 = vrot.lane.b32.xlu0 %v3893, 8
        %v3955 = vpop.permute.xlu0 %3954
        %3956 = vrot.lane.b32.xlu0 %v3947, 8
        %v3957 = vpop.permute.xlu0 %3956
        %3962 = vrot.lane.b32.xlu0 %v3895, 16
        %v3963 = vpop.permute.xlu0 %3962
        %3964 = vrot.lane.b32.xlu0 %v3949, 16
        %v3965 = vpop.permute.xlu0 %3964
        %3970 = vrot.lane.b32.xlu0 %v3897, 24
        %v3971 = vpop.permute.xlu0 %3970
        %3972 = vrot.lane.b32.xlu0 %v3951, 24
        %v3973 = vpop.permute.xlu0 %3972
        %v3976 = vsel %vm1589, %v3891, %v3955
        %v3977 = vsel %vm1589, %v3945, %v3957
        %v3978 = vsel %vm2253, %v3976, %v3963
        %v3979 = vsel %vm2253, %v3977, %v3965
        %v3980 = vsel %vm2256, %v3978, %v3971
        %v3981 = vsel %vm2256, %v3979, %v3973
        %v3982 = vpack.c.bf16 %v3981, %v3980
        %s3983 = scalar_lea.vmem %s8, 16
        %v3984 = vld [vmem:[%s3983] sm:$0xf]
        %v3985 = vld [vmem:[%s3983 + $0x4] sm:$0xf]
        %v3986 = vld [vmem:[%s3983 + $0x8] sm:$0xf]
        %v3987 = vld [vmem:[%s3983 + $0xc] sm:$0xf]
        %s3988 = scalar_lea.vmem %s9, 1
        %v3989 = vld [vmem:[%s3988] sm:$0x1]
        %v3991 = vperm.slane %v3989, 0
        %v3997 = vunpack.c.l.b16 %v3984
        %v3998 = vunpack.c.l.b16 %v3985
        %v3999 = vunpack.c.l.b16 %v3986
        %v4000 = vunpack.c.l.b16 %v3987
        %v4001 = vpack.c.b16 %v3998, %v3997
        %v4002 = vpack.c.b16 %v4000, %v3999
        %v4006 = vsel %vm727, %v3982, 0
        %4008 = vmatpush.bf16.msra.mxu0 0
        %4009 = vmatpush.bf16.msra.mxu0 0
        %4010 = vmatpush.bf16.msra.mxu0 0
        %4011 = vmatpush.bf16.msra.mxu0 0
        %4012 = vmatpush.bf16.msra.mxu0 0
        %4013 = vmatpush.bf16.msra.mxu0 0
        %4014 = vmatpush.bf16.msra.mxu0 %v4002
        %4015 = vmatpush.bf16.msra.mxu0 %v4001
        %4016 = vmatmul.bf16.gmra.mxu0 %v4006
        %v4017 = vpop.f32.mrf.mxu0
        %v4018 = vadd.f32 %v3991, %v4017
        %v4019 = vpop.f32.mrf.mxu0
        %v4020 = vadd.f32 %v3991, %v4019
        %4021 = vdwg.mxu0
        %v4022 = vadd.f32 %v4018, %v2522
        %v4023 = vadd.f32 %v4020, %v2523
        %s4024 = scalar_lea.vmem %s10, 1
        %v4025 = vld [vmem:[%s4024] sm:$0x1]
        %s4026 = scalar_lea.vmem %s11, 1
        %v4027 = vld [vmem:[%s4026] sm:$0x1]
        %v4028 = vsel %vm727, %v4022, 0.0
        %4029 = vadd.xlane.f32.xlu0 %v4028
        %v4030 = vpop.xlane.xlu0 %4029
        %v4031 = vsel %vm727, %v4023, 0.0
        %4032 = vadd.xlane.f32.xlu0 %v4031
        %v4033 = vpop.xlane.xlu0 %4032
        %v4034 = vmul.f32 %v4030, %v740
        %v4035 = vmul.f32 %v4033, %v740
        %v4036 = vsub.f32 %v4022, %v4034
        %v4037 = vsub.f32 %v4023, %v4035
        %v4038 = vmul.f32 %v4036, %v4036
        %v4039 = vmul.f32 %v4037, %v4037
        %v4040 = vsel %vm727, %v4038, 0.0
        %4041 = vadd.xlane.f32.xlu0 %v4040
        %v4042 = vpop.xlane.xlu0 %4041
        %v4043 = vsel %vm727, %v4039, 0.0
        %4044 = vadd.xlane.f32.xlu0 %v4043
        %v4045 = vpop.xlane.xlu0 %4044
        %v4046 = vmul.f32 %v4042, %v740
        %v4047 = vmul.f32 %v4045, %v740
        %v4048 = vadd.f32 %v4046, 1e-12
        %v4049 = vadd.f32 %v4047, 1e-12
        %v4050 = vrsqrt.pop %v4048
        %v4051 = vmul.f32 %v4050, %v4048
        %v4052 = vmul.f32 %v4051, %v4050
        %v4053 = vmul.f32 0.5, %v4052
        %v4054 = vsub.f32 1.5, %v4053
        %v4055 = vmul.f32 %v4050, %v4054
        %vm4056 = vweird.f32 %v4048
        %vm4057 = vweird.f32 %v4050
        %vm4058 = vmor %vm4056, %vm4057
        %v4059 = vsel %vm4058, %v4050, %v4055
        %v4060 = vrsqrt.pop %v4049
        %v4061 = vmul.f32 %v4060, %v4049
        %v4062 = vmul.f32 %v4061, %v4060
        %v4063 = vmul.f32 0.5, %v4062
        %v4064 = vsub.f32 1.5, %v4063
        %v4065 = vmul.f32 %v4060, %v4064
        %vm4066 = vweird.f32 %v4049
        %vm4067 = vweird.f32 %v4060
        %vm4068 = vmor %vm4066, %vm4067
        %v4069 = vsel %vm4068, %v4060, %v4065
        %v4070 = vmul.f32 %v4036, %v4059
        %v4071 = vmul.f32 %v4037, %v4069
        %v4073 = vperm.slane %v4025, 0
        %v4075 = vmul.f32 %v4070, %v4073
        %v4076 = vmul.f32 %v4071, %v4073
        %v4078 = vperm.slane %v4027, 0
        %v4080 = vadd.f32 %v4075, %v4078
        %v4081 = vadd.f32 %v4076, %v4078
        %v4082 = vpack.c.bf16 %v4081, %v4080
        %s4083 = scalar_lea.vmem %s12, 16
        %v4084 = vld [vmem:[%s4083] sm:$0xf]
        %v4085 = vld [vmem:[%s4083 + $0x4] sm:$0xf]
        %v4086 = vld [vmem:[%s4083 + $0x8] sm:$0xf]
        %v4087 = vld [vmem:[%s4083 + $0xc] sm:$0xf]
        %s4088 = scalar_lea.vmem %s13, 1
        %v4089 = vld [vmem:[%s4088] sm:$0x1]
        %v4091 = vperm.slane %v4089, 0
        %v4097 = vunpack.c.l.b16 %v4084
        %v4098 = vunpack.c.l.b16 %v4085
        %v4099 = vunpack.c.l.b16 %v4086
        %v4100 = vunpack.c.l.b16 %v4087
        %v4101 = vpack.c.b16 %v4098, %v4097
        %v4102 = vpack.c.b16 %v4100, %v4099
        %v4106 = vsel %vm727, %v4082, 0
        %4108 = vmatpush.bf16.msra.mxu0 0
        %4109 = vmatpush.bf16.msra.mxu0 0
        %4110 = vmatpush.bf16.msra.mxu0 0
        %4111 = vmatpush.bf16.msra.mxu0 0
        %4112 = vmatpush.bf16.msra.mxu0 0
        %4113 = vmatpush.bf16.msra.mxu0 0
        %4114 = vmatpush.bf16.msra.mxu0 %v4102
        %4115 = vmatpush.bf16.msra.mxu0 %v4101
        %4116 = vmatmul.bf16.gmra.mxu0 %v4106
        %v4117 = vpop.f32.mrf.mxu0
        %v4118 = vadd.f32 %v4091, %v4117
        %v4119 = vpop.f32.mrf.mxu0
        %v4120 = vadd.f32 %v4091, %v4119
        %4121 = vdwg.mxu0
        %v4122 = vmul.f32 %v4118, %v4118
        %v4123 = vmul.f32 %v4120, %v4120
        %v4124 = vmul.f32 %v4118, %v4122
        %v4125 = vmul.f32 %v4120, %v4123
        %v4126 = vmul.f32 %v4124, 0.044715
        %v4127 = vmul.f32 %v4125, 0.044715
        %v4128 = vadd.f32 %v4118, %v4126
        %v4129 = vadd.f32 %v4120, %v4127
        %v4130 = vmul.f32 %v4128, 0.7978846
        %v4131 = vmul.f32 %v4129, 0.7978846
        %v4132 = vtanh.pop %v4130
        %v4133 = vtanh.pop %v4131
        %v4134 = vadd.f32 %v4132, 1.0
        %v4135 = vadd.f32 %v4133, 1.0
        %v4136 = vmul.f32 %v4134, 0.5
        %v4137 = vmul.f32 %v4135, 0.5
        %v4138 = vmul.f32 %v4118, %v4136
        %v4139 = vmul.f32 %v4120, %v4137
        %v4140 = vpack.c.bf16 %v4139, %v4138
        %s4141 = scalar_lea.vmem %s14, 32
        %v4142 = vld [vmem:[%s4141] sm:$0xf]
        %v4143 = vld [vmem:[%s4141 + $0x4] sm:$0xf]
        %v4144 = vld [vmem:[%s4141 + $0x8] sm:$0xf]
        %v4145 = vld [vmem:[%s4141 + $0xc] sm:$0xf]
        %v4146 = vld [vmem:[%s4141 + $0x10] sm:$0xf]
        %v4147 = vld [vmem:[%s4141 + $0x14] sm:$0xf]
        %v4148 = vld [vmem:[%s4141 + $0x18] sm:$0xf]
        %v4149 = vld [vmem:[%s4141 + $0x1c] sm:$0xf]
        %s4150 = scalar_lea.vmem %s15, 1
        %v4151 = vld [vmem:[%s4150] sm:$0x1]
        %v4153 = vperm.slane %v4151, 0
        %v4163 = vunpack.c.l.b16 %v4142
        %v4164 = vunpack.c.l.b16 %v4143
        %v4165 = vunpack.c.l.b16 %v4144
        %v4166 = vunpack.c.l.b16 %v4145
        %v4167 = vunpack.c.l.b16 %v4146
        %v4168 = vunpack.c.l.b16 %v4147
        %v4169 = vunpack.c.l.b16 %v4148
        %v4170 = vunpack.c.l.b16 %v4149
        %v4171 = vpack.c.b16 %v4164, %v4163
        %v4172 = vpack.c.b16 %v4166, %v4165
        %v4173 = vpack.c.b16 %v4168, %v4167
        %v4174 = vpack.c.b16 %v4170, %v4169
        %v4180 = vsel %vm2448, %v4140, 0
        %4182 = vmatpush.bf16.msra.mxu0 0
        %4183 = vmatpush.bf16.msra.mxu0 0
        %4184 = vmatpush.bf16.msra.mxu0 0
        %4185 = vmatpush.bf16.msra.mxu0 0
        %4186 = vmatpush.bf16.msra.mxu0 %v4174
        %4187 = vmatpush.bf16.msra.mxu0 %v4173
        %4188 = vmatpush.bf16.msra.mxu0 %v4172
        %4189 = vmatpush.bf16.msra.mxu0 %v4171
        %4190 = vmatmul.bf16.gmra.mxu0 %v4180
        %v4191 = vpop.f32.mrf.mxu0
        %v4192 = vadd.f32 %v4153, %v4191
        %v4193 = vpop.f32.mrf.mxu0
        %v4194 = vadd.f32 %v4153, %v4193
        %4195 = vdwg.mxu0
        %v4196 = vadd.f32 %v4192, %v4080
        %v4197 = vadd.f32 %v4194, %v4081
        %s4198 = scalar_lea.vmem %s16, 1
        %v4199 = vld [vmem:[%s4198] sm:$0x1]
        %s4200 = scalar_lea.vmem %s17, 1
        %v4201 = vld [vmem:[%s4200] sm:$0x1]
        %v4202 = vsel %vm727, %v4196, 0.0
        %4203 = vadd.xlane.f32.xlu0 %v4202
        %v4204 = vpop.xlane.xlu0 %4203
        %v4205 = vsel %vm727, %v4197, 0.0
        %4206 = vadd.xlane.f32.xlu0 %v4205
        %v4207 = vpop.xlane.xlu0 %4206
        %v4208 = vmul.f32 %v4204, %v740
        %v4209 = vmul.f32 %v4207, %v740
        %v4210 = vsub.f32 %v4196, %v4208
        %v4211 = vsub.f32 %v4197, %v4209
        %v4212 = vmul.f32 %v4210, %v4210
        %v4213 = vmul.f32 %v4211, %v4211
        %v4214 = vsel %vm727, %v4212, 0.0
        %4215 = vadd.xlane.f32.xlu0 %v4214
        %v4216 = vpop.xlane.xlu0 %4215
        %v4217 = vsel %vm727, %v4213, 0.0
        %4218 = vadd.xlane.f32.xlu0 %v4217
        %v4219 = vpop.xlane.xlu0 %4218
        %v4220 = vmul.f32 %v4216, %v740
        %v4221 = vmul.f32 %v4219, %v740
        %v4222 = vadd.f32 %v4220, 1e-12
        %v4223 = vadd.f32 %v4221, 1e-12
        %v4224 = vrsqrt.pop %v4222
        %v4225 = vmul.f32 %v4224, %v4222
        %v4226 = vmul.f32 %v4225, %v4224
        %v4227 = vmul.f32 0.5, %v4226
        %v4228 = vsub.f32 1.5, %v4227
        %v4229 = vmul.f32 %v4224, %v4228
        %vm4230 = vweird.f32 %v4222
        %vm4231 = vweird.f32 %v4224
        %vm4232 = vmor %vm4230, %vm4231
        %v4233 = vsel %vm4232, %v4224, %v4229
        %v4234 = vrsqrt.pop %v4223
        %v4235 = vmul.f32 %v4234, %v4223
        %v4236 = vmul.f32 %v4235, %v4234
        %v4237 = vmul.f32 0.5, %v4236
        %v4238 = vsub.f32 1.5, %v4237
        %v4239 = vmul.f32 %v4234, %v4238
        %vm4240 = vweird.f32 %v4223
        %vm4241 = vweird.f32 %v4234
        %vm4242 = vmor %vm4240, %vm4241
        %v4243 = vsel %vm4242, %v4234, %v4239
        %v4244 = vmul.f32 %v4210, %v4233
        %v4245 = vmul.f32 %v4211, %v4243
        %v4247 = vperm.slane %v4199, 0
        %v4249 = vmul.f32 %v4244, %v4247
        %v4250 = vmul.f32 %v4245, %v4247
        %v4252 = vperm.slane %v4201, 0
        %v4254 = vadd.f32 %v4249, %v4252
        %v4255 = vadd.f32 %v4250, %v4252
        %v4256 = vperm.slane %v789, 0
        %v4257 = vlaneseq
        %v4258 = vshrl.u32 %v4257, 7
        %4260 = vset.pattern.permute.xlu0 %v4258
        %4261 = vperm.xlu0 %4260, %v4256
        %v4262 = vpop.permute.xlu0 %4261
        %v4263 = vperm.slane %v789, 1
        %v4264 = vlaneseq
        %v4265 = vshrl.u32 %v4264, 7
        %4267 = vset.pattern.permute.xlu0 %v4265
        %4268 = vperm.xlu0 %4267, %v4263
        %v4269 = vpop.permute.xlu0 %4268
        %v4270 = vmul.f32 %v4254, %v4262
        %v4271 = vmul.f32 %v4255, %v4269
        %v4272 = vsel %vm727, %v4270, 0.0
        %v4273 = vrot.slane %v4272, 4
        %v4274 = vadd.f32 %v4272, %v4273
        %v4275 = vrot.slane %v4274, 2
        %v4276 = vadd.f32 %v4274, %v4275
        %v4277 = vrot.slane %v4276, 1
        %v4278 = vadd.f32 %v4276, %v4277
        %v4279 = vsel %vm727, %v4271, 0.0
        %v4280 = vrot.slane %v4279, 4
        %v4281 = vadd.f32 %v4279, %v4280
        %v4282 = vrot.slane %v4281, 2
        %v4283 = vadd.f32 %v4281, %v4282
        %v4284 = vrot.slane %v4283, 1
        %v4285 = vadd.f32 %v4283, %v4284
        %vm4286 = vcmask 58368
        %v4287 = vsel %vm4286, %v789, 0.0
        %4288 = vadd.xlane.f32.xlu0 %v4287
        %v4289 = vpop.xlane.xlu0 %4288
        %v4290 = vmax.f32 %v4289, 1e-09
        %v4292 = vrot.slane %v4290, 1
        %v4295 = vrcp.pop %v4290
        %v4296 = vmul.f32 %v4290, %v4295
        %v4297 = vsub.f32 1.0, %v4296
        %v4298 = vmul.f32 %v4295, %v4297
        %v4299 = vadd.f32 %v4295, %v4298
        %vm4300 = vweird.f32 %v4290
        %vm4301 = vweird.f32 %v4295
        %vm4302 = vmor %vm4300, %vm4301
        %v4303 = vsel %vm4302, %v4295, %v4299
        %v4304 = vand.u32 2147483647, %v4290
        %vm4305 = vcmp.eq.f32.partialorder %v4304, 8.507059e+37
        %v4306 = vand.u32 %v4290, 2147483648
        %v4307 = vor.u32 1.1754944e-38, %v4306
        %v4308 = vsel %vm4305, %v4307, %v4303
        %v4309 = vmul.f32 %v4278, %v4308
        %v4310 = vrcp.pop %v4292
        %v4311 = vmul.f32 %v4292, %v4310
        %v4312 = vsub.f32 1.0, %v4311
        %v4313 = vmul.f32 %v4310, %v4312
        %v4314 = vadd.f32 %v4310, %v4313
        %vm4315 = vweird.f32 %v4292
        %vm4316 = vweird.f32 %v4310
        %vm4317 = vmor %vm4315, %vm4316
        %v4318 = vsel %vm4317, %v4310, %v4314
        %v4319 = vand.u32 2147483647, %v4292
        %vm4320 = vcmp.eq.f32.partialorder %v4319, 8.507059e+37
        %v4321 = vand.u32 %v4292, 2147483648
        %v4322 = vor.u32 1.1754944e-38, %v4321
        %v4323 = vsel %vm4320, %v4322, %v4318
        %v4324 = vmul.f32 %v4285, %v4323
        %v4325 = vpack.c.bf16 %v4309, %v4309
        %v4326 = vpack.c.bf16 %v4324, %v4324
        %v4327 = vld [vmem:[%s18] sm:$0xff]
        %v4328 = vld [vmem:[%s18 + $0x8] sm:$0xff]
        %v4329 = vld [vmem:[%s18 + $0x10] sm:$0xff]
        %v4330 = vld [vmem:[%s18 + $0x18] sm:$0xff]
        %v4331 = vld [vmem:[%s19] sm:$0x3]
        %v4333 = vperm.slane %v4331, 0
        %v4334 = vperm.slane %v4331, 1
        %v4339 = vunpack.c.l.b16 %v4325
        %v4340 = vunpack.c.l.b16 %v4326
        %v4341 = vrot.slane %v4340, 7
        %vm4342 = vcmask 1041409
        %v4343 = vsel %vm4342, %v4341, %v4339
        %v4344 = vpack.c.b16 %v4343, %v4343
        %v4349 = vunpack.c.l.b16 %v4327
        %v4350 = vunpack.c.h.b16 %v4327
        %v4351 = vunpack.c.l.b16 %v4328
        %v4352 = vunpack.c.h.b16 %v4328
        %v4353 = vunpack.c.l.b16 %v4329
        %v4354 = vunpack.c.h.b16 %v4329
        %v4355 = vunpack.c.l.b16 %v4330
        %v4356 = vunpack.c.h.b16 %v4330
        %v4357 = vpack.c.b16 %v4351, %v4349
        %v4358 = vpack.c.b16 %v4352, %v4350
        %v4359 = vpack.c.b16 %v4355, %v4353
        %v4360 = vpack.c.b16 %v4356, %v4354
        %v4366 = vsel %vm727, %v4344, 0
        %4368 = vmatpush.bf16.msra.mxu0 0
        %4369 = vmatpush.bf16.msra.mxu0 0
        %4370 = vmatpush.bf16.msra.mxu0 0
        %4371 = vmatpush.bf16.msra.mxu0 0
        %4372 = vmatpush.bf16.msra.mxu0 0
        %4373 = vmatpush.bf16.msra.mxu0 0
        %4374 = vmatpush.bf16.msra.mxu0 %v4359
        %4375 = vmatpush.bf16.msra.mxu0 %v4357
        %4376 = vmatmul.bf16.gmra.mxu0 %v4366
        %v4377 = vpop.f32.mrf.mxu0
        %v4378 = vadd.f32 %v4333, %v4377
        %v4379 = vpop.f32.mrf.mxu0
        %4380 = vdwg.mxu0
        %4381 = vmatpush.bf16.msra.mxu0 0
        %4382 = vmatpush.bf16.msra.mxu0 0
        %4383 = vmatpush.bf16.msra.mxu0 0
        %4384 = vmatpush.bf16.msra.mxu0 0
        %4385 = vmatpush.bf16.msra.mxu0 0
        %4386 = vmatpush.bf16.msra.mxu0 0
        %4387 = vmatpush.bf16.msra.mxu0 %v4360
        %4388 = vmatpush.bf16.msra.mxu0 %v4358
        %4389 = vmatmul.bf16.gmra.mxu0 %v4366
        %v4390 = vpop.f32.mrf.mxu0
        %v4391 = vadd.f32 %v4334, %v4390
        %v4392 = vpop.f32.mrf.mxu0
        %4393 = vdwg.mxu0
        %v4394 = vtanh.pop %v4378
        %v4395 = vtanh.pop %v4391
        %v4398 = vrot.slane %v4394, 1
        %v4399 = vrot.slane %v4395, 1
        %v4402 = vmul.f32 %v4394, %v4398
        %v4403 = vmul.f32 %v4395, %v4399
        %vm4404 = vcmask 1040384
        %v4405 = vsel %vm4404, %v4402, 0.0
        %v4406 = vsel %vm4404, %v4403, 0.0
        %v4407 = vadd.f32 %v4405, %v4406
        %4408 = vadd.xlane.f32.xlu0 %v4407
        %v4409 = vpop.xlane.xlu0 %4408
        %v4410 = vmul.f32 %v4394, %v4394
        %v4411 = vmul.f32 %v4395, %v4395
        %v4412 = vsel %vm4404, %v4410, 0.0
        %v4413 = vsel %vm4404, %v4411, 0.0
        %v4414 = vadd.f32 %v4412, %v4413
        %4415 = vadd.xlane.f32.xlu0 %v4414
        %v4416 = vpop.xlane.xlu0 %4415
        %v4417 = vrsqrt.pop %v4416
        %v4418 = vmul.f32 %v4417, %v4416
        %v4419 = vmul.f32 %v4418, %v4417
        %v4420 = vmul.f32 0.5, %v4419
        %v4421 = vsub.f32 1.5, %v4420
        %v4422 = vmul.f32 %v4417, %v4421
        %v4423 = vmul.f32 %v4416, %v4422
        %vm4424 = vcmp.eq.f32.partialorder %v4416, inf
        %v4425 = vsel %vm4424, %v4416, %v4423
        %vm4426 = vcmp.eq.f32.partialorder %v4416, 0.0
        %v4427 = vand.u32 %v4416, 2147483648
        %v4428 = vsel %vm4426, %v4427, %v4425
        %v4429 = vsel %vm4342, %v4410, 0.0
        %v4430 = vsel %vm4342, %v4411, 0.0
        %v4431 = vadd.f32 %v4429, %v4430
        %4432 = vadd.xlane.f32.xlu0 %v4431
        %v4433 = vpop.xlane.xlu0 %4432
        %v4434 = vrsqrt.pop %v4433
        %v4435 = vmul.f32 %v4434, %v4433
        %v4436 = vmul.f32 %v4435, %v4434
        %v4437 = vmul.f32 0.5, %v4436
        %v4438 = vsub.f32 1.5, %v4437
        %v4439 = vmul.f32 %v4434, %v4438
        %v4440 = vmul.f32 %v4433, %v4439
        %vm4441 = vcmp.eq.f32.partialorder %v4433, inf
        %v4442 = vsel %vm4441, %v4433, %v4440
        %vm4443 = vcmp.eq.f32.partialorder %v4433, 0.0
        %v4444 = vand.u32 %v4433, 2147483648
        %v4445 = vsel %vm4443, %v4444, %v4442
        %v4447 = vrot.slane %v4445, 1
        %v4449 = vmul.f32 %v4428, %v4447
        %v4450 = vmax.f32 %v4449, 1e-06
        %v4451 = vrcp.pop %v4450
        %v4452 = vmul.f32 %v4450, %v4451
        %v4453 = vsub.f32 1.0, %v4452
        %v4454 = vmul.f32 %v4451, %v4453
        %v4455 = vadd.f32 %v4451, %v4454
        %vm4456 = vweird.f32 %v4450
        %vm4457 = vweird.f32 %v4451
        %vm4458 = vmor %vm4456, %vm4457
        %v4459 = vsel %vm4458, %v4451, %v4455
        %v4460 = vand.u32 2147483647, %v4450
        %vm4461 = vcmp.eq.f32.partialorder %v4460, 8.507059e+37
        %v4462 = vand.u32 %v4450, 2147483648
        %v4463 = vor.u32 1.1754944e-38, %v4462
        %v4464 = vsel %vm4461, %v4463, %v4459
        %v4465 = vmul.f32 %v4409, %v4464
        %4467 = vset.pattern.permute.xlu0 0
        %4468 = vperm.xlu0 %4467, %v4465
        %v4469 = vpop.permute.xlu0 %4468
        %4471 = vst [vmem:[%s636] sm:$0x1] %v4469
        %p4472 = scmp.lt.s32.totalorder %s32, 1
        %s4473 = scalar_select %p4472, %s32, 1
        %s4474 = scalar_lea.vmem %s20, %s4473
        // Predicated region
        $region105: #{shroom_forward.1} parent=99 // pred_check
          %p4475 = pneg %p475
        $region106: #{shroom_forward.1} parent=99 // pred_check_branch
          %4477 = sbr.rel (%p4475) target = $region108
        $region107: #{shroom_forward.1} parent=99 // pred_region
          _
        $region108: #{shroom_forward.1} parent=99 // pred_fallthru
          _
      $region100: #{shroom_forward.1} parent=5 // pred_fallthru
        _
      %p4478 = scmp.le.s32.totalorder 2, %s27
      // Predicated region
      $region109: #{shroom_forward.1} parent=5 // pred_check
        %p4479 = pneg %p4478
      $region110: #{shroom_forward.1} parent=5 // pred_check_branch
        %4481 = sbr.rel (%p4479) target = $region112
      $region111: #{shroom_forward.1} parent=5 // pred_region
        %s4482 = ssub.s32 %s27, 2
        // Predicated region
        $region113: #{shroom_forward.1} parent=111 // pred_check
          %p4483 = pneg %p481
        $region114: #{shroom_forward.1} parent=111 // pred_check_branch
          %4485 = sbr.rel (%p4483) target = $region116
        $region115: #{shroom_forward.1} parent=111 // pred_region
          %p4486 = scmp.lt.s32.totalorder %s33, 1
          %s4487 = scalar_select %p4486, %s33, 1
          %s4488 = scalar_lea.vmem %s20, %s4487
        $region116: #{shroom_forward.1} parent=111 // pred_fallthru
          _
      $region112: #{shroom_forward.1} parent=5 // pred_fallthru
        _
    $region6: #{shroom_forward.1} parent=1 // loop_footer
      %s31 = sadd.s32 1, %s27
    $region7: #{shroom_forward.1} parent=1 // loop_footer_branch
      %26 = sbr.rel target = $region3
    $region8: #{shroom_forward.1} parent=1 // loop_exit
      _
    %4489 = vsyncpa [#allocation4], 1
    %s4490 = scalar_lea.sflag [#allocation4], 1
    %4491 = vsyncpa %s4490, 1

</llo_original>
